<compile_context>
chip_gen: v5e
topology: v5e:2x2
jax: 0.10.0
libtpu: 0.0.40
codegen_flags: <defaults>
</compile_context>

<pallas_src>
import jax
import jax.numpy as jnp
from jax.experimental import pallas as pl
from jax.experimental.pallas import tpu as pltpu


def _ceil_to(x, m):
    return (x + m - 1) // m * m


# -----------------------------------------------------------------------------
# Pallas kernel: row-tiled matmul (+bias).  bf16 MXU, fp32 accumulation.
# Used for the fused q/k/v projection and for to_out.
# -----------------------------------------------------------------------------
def _matmul_bias_kernel(a_ref, b_ref, bias_ref, o_ref):
    a = a_ref[...].astype(jnp.bfloat16)          # cast in-kernel (no wrapper HBM pass)
    acc = jnp.dot(a, b_ref[...], preferred_element_type=jnp.float32)
    o_ref[...] = (acc + bias_ref[...]).astype(o_ref.dtype)


def pallas_matmul(a, w, bias=None, out_dtype=jnp.float32, tm=1024):
    """a [M,K] @ w [K,N] + bias[N].  `w` should be bf16; `a` may be f32 or bf16."""
    M, K = a.shape
    N = w.shape[1]
    w = w.astype(jnp.bfloat16)
    if bias is None:
        bias = jnp.zeros((N,), jnp.float32)
    bias2 = bias.astype(jnp.float32).reshape(1, N)

    tm = min(tm, _ceil_to(M, 8))
    mp = _ceil_to(M, tm)
    a_p = jnp.pad(a, ((0, mp - M), (0, 0))) if mp != M else a

    out = pl.pallas_call(
        _matmul_bias_kernel,
        grid=(mp // tm,),
        in_specs=[
            pl.BlockSpec((tm, K), lambda i: (i, 0)),
            pl.BlockSpec((K, N), lambda i: (0, 0)),
            pl.BlockSpec((1, N), lambda i: (0, 0)),
        ],
        out_specs=pl.BlockSpec((tm, N), lambda i: (i, 0)),
        out_shape=jax.ShapeDtypeStruct((mp, N), out_dtype),
        compiler_params=pltpu.CompilerParams(
            dimension_semantics=("parallel",),
            vmem_limit_bytes=32 * 1024 * 1024,
        ),
    )(a_p, w, bias2)
    return out if mp == M else out[:M]


# -----------------------------------------------------------------------------
# Pallas kernel: batched windowed attention (lane-dense layout).
#   q:   [Gt, Hq, L, D]   (bf16, scale folded into the projection, pre-rolled)
#   k,v: [Gt, Hq, D, L]   (bf16, k pre-rolled)
#   pos: [Hp, L, L]       (f32, pre-rolled (1,1));  Hp == Hq, or Hq == 1 (local branch)
#   out: [Gt, Hp, D, L]   = transpose of softmax(q k^T + pos) @ v   (softmax in f32)
# -----------------------------------------------------------------------------
def _win_attn_kernel(q_ref, k_ref, v_ref, pos_ref, o_ref):
    gt, hq, L, D = q_ref.shape
    hp = pos_ref.shape[0]

    q = q_ref[...].reshape(gt * hq, L, D)
    k = k_ref[...].reshape(gt * hq, D, L)
    # scores: contract D (scale already folded into the q projection weights)
    sim = jax.lax.dot_general(q, k, (((2,), (1,)), ((0,), (0,))),
                              preferred_element_type=jnp.float32)       # [g*hq, L, L]
    sim = sim.reshape(gt, hq, L, L)
    if hp != hq:          # local branch, heads>1: single-head scores vs multi-head pos
        sim = jnp.broadcast_to(sim, (gt, hp, L, L))
    sim = sim + pos_ref[...]

    # f32 softmax; reciprocal rides the EUP slot
    m = jnp.max(sim, axis=-1, keepdims=True)
    e = jnp.exp(sim - m)
    attn = e * pl.reciprocal(jnp.sum(e, axis=-1, keepdims=True), approx=True)

    v = v_ref[...]                                                      # [gt, hq, D, L]
    if hp != hq:
        v = jnp.broadcast_to(v, (gt, hp, D, L))                         # hq == 1
    v = v.reshape(gt * hp, D, L)
    attn = attn.reshape(gt * hp, L, L).astype(v.dtype)
    # out^T[d, i] = sum_j v[d, j] * attn[i, j]   (contract the minor dim of both)
    outT = jax.lax.dot_general(v, attn, (((2,), (2,)), ((0,), (0,))),
                               preferred_element_type=jnp.float32)      # [g*hp, D, L]
    o_ref[...] = outT.reshape(gt, hp, D, L).astype(o_ref.dtype)


def _pick_group_tile(G, hq, hp, L, D, budget=16 << 20):
    """Largest divisor of G whose padded per-step footprint fits `budget`, keeping >=2 steps."""
    # double-buffered bf16 I/O tiles (last-two-dim padding: sublane 16 for bf16, lane 128)
    q_b = hq * _ceil_to(L, 16) * _ceil_to(D, 128) * 2
    kv_b = hq * _ceil_to(D, 16) * _ceil_to(L, 128) * 2
    o_b = hp * _ceil_to(D, 16) * _ceil_to(L, 128) * 2
    io = 2 * (q_b + 2 * kv_b + o_b)
    # in-kernel f32 temporaries: sim / e / attn [hp,L,L] + f32 output accumulator [hp,D,L]
    tmp = hp * (3 * _ceil_to(L, 8) * _ceil_to(L, 128) * 4
                + _ceil_to(D, 8) * _ceil_to(L, 128) * 4)
    per_group = io + tmp
    cap = max(1, G // 2)                 # keep the parallel grid >= 2 steps (v7x: 2 TCs)
    max_gt = max(1, min(cap, budget // max(per_group, 1)))
    for gt in range(max_gt, 0, -1):
        if G % gt == 0:
            return gt
    return 1


def windowed_attention(q, k, v, pos, out_dtype=jnp.bfloat16):
    """q: [G,Hq,L,D]; k,v: [G,Hq,D,L]; pos: [Hp,L,L].  Returns out^T [G,Hp,D,L]."""
    G, Hq, L, D = q.shape
    Hp = pos.shape[0]
    assert Hq == Hp or Hq == 1
    gt = _pick_group_tile(G, Hq, Hp, L, D)
    return pl.pallas_call(
        _win_attn_kernel,
        grid=(G // gt,),
        in_specs=[
            pl.BlockSpec((gt, Hq, L, D), lambda i: (i, 0, 0, 0)),
            pl.BlockSpec((gt, Hq, D, L), lambda i: (i, 0, 0, 0)),
            pl.BlockSpec((gt, Hq, D, L), lambda i: (i, 0, 0, 0)),
            pl.BlockSpec((Hp, L, L), lambda i: (0, 0, 0)),
        ],
        out_specs=pl.BlockSpec((gt, Hp, D, L), lambda i: (i, 0, 0, 0)),
        out_shape=jax.ShapeDtypeStruct((G, Hp, D, L), out_dtype),
        compiler_params=pltpu.CompilerParams(
            dimension_semantics=("parallel",),
            vmem_limit_bytes=32 * 1024 * 1024,
        ),
    )(q.astype(jnp.bfloat16), k.astype(jnp.bfloat16), v.astype(jnp.bfloat16),
      pos.astype(jnp.float32))


# -----------------------------------------------------------------------------
# SS_MSA forward (matches the PyTorch reference; activations are NHWC like torch's [b,h,w,c])
# -----------------------------------------------------------------------------
def ss_msa_forward(x, params, *, heads, dim_head=28, window_size=(8, 8),
                   only_local_branch=False):
    b, h, w, c = x.shape
    ws0, ws1 = window_size
    assert h % ws0 == 0 and w % ws1 == 0, "fmap dims must be divisible by window size"
    scale = dim_head ** -0.5
    inner = dim_head * heads

    # fused q/k/v projection; the attention scale is folded into the q weight columns
    w_qkv = jnp.concatenate(
        [params["to_q_w"].T * scale, params["to_kv_w"].T], axis=1
    ).astype(jnp.bfloat16)                                                # [c, 3*inner]
    qkv = pallas_matmul(x.reshape(b * h * w, c), w_qkv, out_dtype=jnp.bfloat16)
    q = qkv[:, :inner]
    k = qkv[:, inner:2 * inner]
    v = qkv[:, 2 * inner:]

    if only_local_branch:
        b0, b1 = ws0 * 2, ws1 * 2
        nh, nw = h // b0, w // b1
        n = nh * nw
        L = b0 * b1

        def win_ld(t):   # [b*h*w, inner] -> [b*n, 1, L, inner]   (q layout)
            t = t.reshape(b, nh, b0, nw, b1, inner)
            t = jnp.transpose(t, (0, 1, 3, 2, 4, 5))
            return t.reshape(b * n, 1, L, inner)

        def win_dl(t):   # [b*h*w, inner] -> [b*n, 1, inner, L]   (k/v layout, L in lanes)
            t = t.reshape(b, nh, b0, nw, b1, inner)
            t = jnp.transpose(t, (0, 1, 3, 5, 2, 4))
            return t.reshape(b * n, 1, inner, L)

        # torch.roll((1,1)) on (sim+pos) == pre-roll q,k along the window sequence and
        # pre-roll pos_emb along its last two axes (exact; v and the output stay unrolled).
        qw = jnp.roll(win_ld(q), 1, axis=-2)
        kw = jnp.roll(win_dl(k), 1, axis=-1)
        vw = win_dl(v)
        pos = jnp.roll(params["pos_emb"].reshape(heads, L, L), (1, 1), axis=(-2, -1))
        # kernel computes QK^T once (Hq=1) and broadcasts only softmax/AV over `heads`
        oT = windowed_attention(qw, kw, vw, pos, out_dtype=jnp.float32)  # [b*n, heads, inner, L]
        o = jnp.transpose(oT.reshape(b, n, heads, inner, L), (0, 1, 4, 2, 3))
        # faithful to the reference local branch: windowed layout, no to_out
        return o.reshape(b, n, L, heads * inner)

    # ---- dual-branch (heads >= 2) ----
    hh = heads // 2
    half = c // 2                      # reference splits at c//2 (== inner//2 when c == inner)
    ch2 = inner - half
    assert half % hh == 0 and ch2 % hh == 0
    dh1, dh2 = half // hh, ch2 // hh
    nh, nw = h // ws0, w // ws1
    n1 = nh * nw
    L1 = ws0 * ws1

    # layout helpers producing the kernel layouts directly (one transpose per tensor)
    def b1_ld(t, dh):   # branch-1 q:   [b*h*w, ch] -> [b*n1, hh, L1, dh]
        t = t.reshape(b, nh, ws0, nw, ws1, hh, dh)
        t = jnp.transpose(t, (0, 1, 3, 5, 2, 4, 6))
        return t.reshape(b * n1, hh, L1, dh)

    def b1_dl(t, dh):   # branch-1 k/v: [b*h*w, ch] -> [b*n1, hh, dh, L1]
        t = t.reshape(b, nh, ws0, nw, ws1, hh, dh)
        t = jnp.transpose(t, (0, 1, 3, 5, 6, 2, 4))
        return t.reshape(b * n1, hh, dh, L1)

    def b2_ld(t, dh):   # branch-2 q:   [b*h*w, ch] -> [b*L1, hh, n1, dh]
        t = t.reshape(b, nh, ws0, nw, ws1, hh, dh)
        t = jnp.transpose(t, (0, 2, 4, 5, 1, 3, 6))
        return t.reshape(b * L1, hh, n1, dh)

    def b2_dl(t, dh):   # branch-2 k/v: [b*h*w, ch] -> [b*L1, hh, dh, n1]
        t = t.reshape(b, nh, ws0, nw, ws1, hh, dh)
        t = jnp.transpose(t, (0, 2, 4, 5, 6, 1, 3))
        return t.reshape(b * L1, hh, dh, n1)

    q1, q2 = q[:, :half], q[:, half:]
    k1, k2 = k[:, :half], k[:, half:]
    v1, v2 = v[:, :half], v[:, half:]

    # branch 1: attention inside each ws0 x ws1 window
    pos1 = jnp.roll(params["pos_emb1"].reshape(hh, L1, L1), (1, 1), axis=(-2, -1))
    q1s = jnp.roll(b1_ld(q1, dh1), 1, axis=-2)
    k1s = jnp.roll(b1_dl(k1, dh1), 1, axis=-1)
    v1s = b1_dl(v1, dh1)
    o1T = windowed_attention(q1s, k1s, v1s, pos1)               # [b*n1, hh, dh1, L1] bf16
    out1 = jnp.transpose(o1T.reshape(b, n1, hh, dh1, L1),
                         (0, 1, 4, 2, 3)).reshape(b, n1, L1, half)

    # branch 2: attention across windows at the same in-window position
    seq_l2 = params["pos_emb2"].shape[-1]
    assert seq_l2 == n1, "pos_emb2 hard-codes the spatial resolution (256 // heads)"
    pos2 = jnp.roll(params["pos_emb2"].reshape(hh, n1, n1), (1, 1), axis=(-2, -1))
    q2s = jnp.roll(b2_ld(q2, dh2), 1, axis=-2)
    k2s = jnp.roll(b2_dl(k2, dh2), 1, axis=-1)
    v2s = b2_dl(v2, dh2)
    o2T = windowed_attention(q2s, k2s, v2s, pos2)               # [b*L1, hh, dh2, n1] bf16
    out2 = jnp.transpose(o2T.reshape(b, L1, hh, dh2, n1),
                         (0, 4, 1, 2, 3)).reshape(b, n1, L1, ch2)

    out = jnp.concatenate([out1, out2], axis=-1)                # [b, n1, L1, inner] bf16
    cout = params["to_out_w"].shape[0]
    out = pallas_matmul(out.reshape(b * n1 * L1, inner),
                        params["to_out_w"].T.astype(jnp.bfloat16),
                        params["to_out_b"], out_dtype=jnp.float32)
    out = out.reshape(b, nh, nw, ws0, ws1, cout)
    out = jnp.transpose(out, (0, 1, 3, 2, 4, 5)).reshape(b, h, w, cout)
    return out


# -----------------------------------------------------------------------------
# deterministic parameter initialization (shapes follow SS_MSA.__init__)
# -----------------------------------------------------------------------------
def init_ss_msa_params(key, dim, heads, dim_head=28, window_size=(8, 8),
                       only_local_branch=False):
    ks = iter(jax.random.split(key, 8))
    inner = dim_head * heads

    def w(shape, std=0.02):
        return std * jax.random.normal(next(ks), shape, dtype=jnp.float32)

    def tn(shape):
        # TODO(synk): stands in for trunc_normal_(mean=0, std=1, a=-2, b=2)
        return jnp.clip(jax.random.normal(next(ks), shape, dtype=jnp.float32), -2.0, 2.0)

    p = {
        "to_q_w": w((inner, dim)),
        "to_kv_w": w((inner * 2, dim)),
        "to_out_w": w((dim, inner)),
        "to_out_b": w((dim,)),
    }
    seq_l = window_size[0] * window_size[1]
    if only_local_branch:
        p["pos_emb"] = tn((1, heads, seq_l * 4, seq_l * 4))
    else:
        seq_l2 = (256 // heads) * (256 // heads) // seq_l
        p["pos_emb1"] = tn((1, 1, heads // 2, seq_l, seq_l))
        p["pos_emb2"] = tn((1, 1, heads // 2, seq_l2, seq_l2))
    return p


# -----------------------------------------------------------------------------
# main
# -----------------------------------------------------------------------------
if __name__ == "__main__":
    key = jax.random.PRNGKey(0)
    k0, k1, k2, k3 = jax.random.split(key, 4)

    # default config (only_local_branch=False, heads=8, dim_head=28):
    # pos_emb2 fixes num_windows to (256//8)^2 / 64 = 16  ->  smallest spatial size 32x32.
    heads, dim_head = 8, 28
    dim = dim_head * heads                       # 224
    B, H, W = 2, 32, 32
    params = init_ss_msa_params(k0, dim, heads, dim_head)
    x = jax.random.normal(k1, (B, H, W, dim), jnp.float32)
    out = ss_msa_forward(x, params, heads=heads, dim_head=dim_head)
    out = jax.block_until_ready(out)
    assert out.shape == (B, H, W, dim), out.shape
    assert bool(jnp.all(jnp.isfinite(out)))

    # only_local_branch config (heads=1, 16x16 local windows, L=256)
    paramsL = init_ss_msa_params(k2, 28, 1, 28, only_local_branch=True)
    xL = jax.random.normal(k3, (2, 32, 32, 28), jnp.float32)
    outL = ss_msa_forward(xL, paramsL, heads=1, dim_head=28, only_local_branch=True)
    outL = jax.block_until_ready(outL)
    # reference local branch returns the windowed layout [b, n_windows, L, inner]
    assert outL.shape == (2, 4, 256, 28), outL.shape
    assert bool(jnp.all(jnp.isfinite(outL)))

    print("KERNEL_OK")
</pallas_src>

<mosaic_0001>
module attributes {stable_mosaic.version = 11 : i64} {
  func.func @_matmul_bias_kernel(%arg0: i32, %arg1: memref<1024x224xf32, #tpu.memory_space<vmem>>, %arg2: memref<224x672xbf16, #tpu.memory_space<vmem>>, %arg3: memref<1x672xf32, #tpu.memory_space<vmem>>, %arg4: memref<1024x672xbf16, #tpu.memory_space<vmem>>) attributes {dimension_semantics = [#tpu.dimension_semantics<parallel>], iteration_bounds = array<i64: 2>, scalar_prefetch = 0 : i64, scratch_operands = 0 : i64, tpu.core_type = #tpu.core_type<tc>, window_params = [{transform_indices = @transform_0, window_bounds = array<i64: 1024, 224>}, {pipeline_mode = #tpu.pipeline_mode<synchronous>, transform_indices = @transform_1, window_bounds = array<i64: 224, 672>}, {pipeline_mode = #tpu.pipeline_mode<synchronous>, transform_indices = @transform_2, window_bounds = array<i64: 1, 672>}, {transform_indices = @transform_3, window_bounds = array<i64: 1024, 672>}]} {
    %c0 = arith.constant 0 : index
    %c0_0 = arith.constant 0 : index
    %0 = vector.load %arg1[%c0, %c0_0] : memref<1024x224xf32, #tpu.memory_space<vmem>>, vector<1024x224xf32>
    %1 = arith.truncf %0 : vector<1024x224xf32> to vector<1024x224xbf16>
    %c0_1 = arith.constant 0 : index
    %c0_2 = arith.constant 0 : index
    %2 = vector.load %arg2[%c0_1, %c0_2] : memref<224x672xbf16, #tpu.memory_space<vmem>>, vector<224x672xbf16>
    %cst = arith.constant dense<0.000000e+00> : vector<1024x672xf32>
    %3 = tpu.matmul %1, %2, %cst {dimension_numbers = #tpu.dot_dimension_numbers<[1], [0], [0], [1], [0, 0, 1, 1], [], []>} : vector<1024x224xbf16>, vector<224x672xbf16>, vector<1024x672xf32> -> vector<1024x672xf32>
    %c0_3 = arith.constant 0 : index
    %c0_4 = arith.constant 0 : index
    %4 = vector.load %arg3[%c0_3, %c0_4] : memref<1x672xf32, #tpu.memory_space<vmem>>, vector<1x672xf32>
    %5 = vector.broadcast %4 : vector<1x672xf32> to vector<1024x672xf32>
    %6 = arith.addf %3, %5 : vector<1024x672xf32>
    %7 = arith.truncf %6 : vector<1024x672xf32> to vector<1024x672xbf16>
    %c0_5 = arith.constant 0 : index
    %c0_6 = arith.constant 0 : index
    %8 = vector.load %arg4[%c0_5, %c0_6] : memref<1024x672xbf16, #tpu.memory_space<vmem>>, vector<1024x672xbf16>
    tpu.vector_store %arg4[%c0_5, %c0_6], %7 {strides = array<i32>} : memref<1024x672xbf16, #tpu.memory_space<vmem>>, vector<1024x672xbf16>,
    return
  }
  func.func @transform_0(%arg0: i32) -> (i32, i32) {
    %c0_i32 = arith.constant 0 : i32
    %c0_i32_0 = arith.constant 0 : i32
    return %arg0, %c0_i32 : i32, i32
  }
  func.func @transform_1(%arg0: i32) -> (i32, i32) {
    %c0_i32 = arith.constant 0 : i32
    %c0_i32_0 = arith.constant 0 : i32
    %c0_i32_1 = arith.constant 0 : i32
    return %c0_i32, %c0_i32_0 : i32, i32
  }
  func.func @transform_2(%arg0: i32) -> (i32, i32) {
    %c0_i32 = arith.constant 0 : i32
    %c0_i32_0 = arith.constant 0 : i32
    %c0_i32_1 = arith.constant 0 : i32
    return %c0_i32, %c0_i32_0 : i32, i32
  }
  func.func @transform_3(%arg0: i32) -> (i32, i32) {
    %c0_i32 = arith.constant 0 : i32
    %c0_i32_0 = arith.constant 0 : i32
    return %arg0, %c0_i32 : i32, i32
  }
}

</mosaic_0001>

<llo_original>
// kernel: tpu_custom_call.1
$region0: #{tpu_custom_call.1}
  #allocation0 [shape = 'u32[]', space=smem, size = 0x4, offset = 0x4, fixed_abs, tag = 'smem constant byte address 0x4 - core index']
  #allocation1 [shape = 'u32[72,128]{1,0:T(1,128)}', space=vmem, size = 0x9000, scoped, tag = 'internal scratch']
  %s0 = inlined_call_operand.vmem [shape: f32[2048,224], index: 0, kind: input, shape index: {}]
  %s1 = inlined_call_operand.vmem [shape: bf16[224,672], index: 1, kind: input, shape index: {}]
  %s2 = inlined_call_operand.vmem [shape: f32[1,672], index: 2, kind: input, shape index: {}]
  %s3 = inlined_call_operand.vmem [shape: bf16[2048,672], index: 3, kind: output, shape index: {}]
  %s4 = sld [smem:[#allocation0]]
  $region45: #{tpu_custom_call.1} parent=0
    _
  %s6 = ssub.s32 1, %s4
  %s7 = scalar_select 0, %s6, %s4
  loop: start=0, step=1, limit=4
  $region2: #{tpu_custom_call.1} parent=0 // loop_pre_header
    _
  $region3: #{tpu_custom_call.1} parent=0 // loop_header
    %s9 = sphi 0, %s13
    %p10 = scmp.ge.s32.totalorder %s9, 4
    %s19 = sphi 0, %s21
    %s22 = sphi 0, %s19
    %s23 = sphi 0, %s22
    %s39 = sphi 0, %s23
    %s43 = sphi 0, %s43
    %s45 = sphi 0, %s43
    %s46 = sphi 0, %s45
    %s60 = sphi 0, %s46
    %s64 = sphi 0, %s64
    %s66 = sphi 0, %s64
    %s67 = sphi 0, %s66
    %s81 = sphi 0, %s67
    %s87 = sphi 0, %s89
    %s90 = sphi 0, %s87
    %s91 = sphi 0, %s90
    %s107 = sphi 0, %s91
  $region4: #{tpu_custom_call.1} parent=0 // loop_header_branch
    %12 = sbr.rel (%p10) target = $region8
  $region5: #{tpu_custom_call.1} parent=0 // loop_body
    %s14 = ssub.s32 %s9, 1
    %s15 = ssub.s32 %s9, 2
    %s16 = sadd.s32 %s9, 1
    %s17 = ssub.s32 %s9, %s16
    %p18 = scmp.eq.s32.totalorder %s17, 0
    %s20 = sadd.s32 %s19, 1
    %s21 = scalar_select %p18, %s19, %s20
    %p24 = pneg %p18
    %p25 = scmp.eq.s32.totalorder %s9, 1
    %p26 = por %p24, %p25
    %p27 = scmp.ne.s32.totalorder %s19, %s22
    %p28 = scmp.eq.s32.totalorder %s9, 0
    %p29 = por %p27, %p28
    %p30 = scmp.ne.s32.totalorder %s19, %s22
    %p31 = scmp.eq.s32.totalorder %s14, 1
    %p32 = por %p30, %p31
    %p33 = scmp.ne.s32.totalorder %s22, %s23
    %p34 = scmp.eq.s32.totalorder %s14, 0
    %p35 = por %p33, %p34
    %p36 = scmp.ne.s32.totalorder %s22, %s23
    %p37 = scmp.eq.s32.totalorder %s15, 1
    %p38 = por %p36, %p37
    %p40 = scmp.ne.s32.totalorder %s23, %s39
    %p41 = scmp.eq.s32.totalorder %s15, 0
    %p42 = por %p40, %p41
    %s44 = sadd.s32 %s43, 1
    %p47 = scmp.eq.s32.totalorder %s9, 1
    %p48 = scmp.ne.s32.totalorder %s43, %s45
    %p49 = scmp.eq.s32.totalorder %s9, 0
    %p50 = por %p48, %p49
    %p51 = scmp.ne.s32.totalorder %s43, %s45
    %p52 = scmp.eq.s32.totalorder %s14, 1
    %p53 = por %p51, %p52
    %p54 = scmp.ne.s32.totalorder %s45, %s46
    %p55 = scmp.eq.s32.totalorder %s14, 0
    %p56 = por %p54, %p55
    %p57 = scmp.ne.s32.totalorder %s45, %s46
    %p58 = scmp.eq.s32.totalorder %s15, 1
    %p59 = por %p57, %p58
    %p61 = scmp.ne.s32.totalorder %s46, %s60
    %p62 = scmp.eq.s32.totalorder %s15, 0
    %p63 = por %p61, %p62
    %s65 = sadd.s32 %s64, 1
    %p68 = scmp.eq.s32.totalorder %s9, 1
    %p69 = scmp.ne.s32.totalorder %s64, %s66
    %p70 = scmp.eq.s32.totalorder %s9, 0
    %p71 = por %p69, %p70
    %p72 = scmp.ne.s32.totalorder %s64, %s66
    %p73 = scmp.eq.s32.totalorder %s14, 1
    %p74 = por %p72, %p73
    %p75 = scmp.ne.s32.totalorder %s66, %s67
    %p76 = scmp.eq.s32.totalorder %s14, 0
    %p77 = por %p75, %p76
    %p78 = scmp.ne.s32.totalorder %s66, %s67
    %p79 = scmp.eq.s32.totalorder %s15, 1
    %p80 = por %p78, %p79
    %p82 = scmp.ne.s32.totalorder %s67, %s81
    %p83 = scmp.eq.s32.totalorder %s15, 0
    %p84 = por %p82, %p83
    %s85 = ssub.s32 %s9, %s16
    %p86 = scmp.eq.s32.totalorder %s85, 0
    %s88 = sadd.s32 %s87, 1
    %s89 = scalar_select %p86, %s87, %s88
    %p92 = pneg %p86
    %p93 = scmp.eq.s32.totalorder %s9, 1
    %p94 = por %p92, %p93
    %p95 = scmp.ne.s32.totalorder %s87, %s90
    %p96 = scmp.eq.s32.totalorder %s9, 0
    %p97 = por %p95, %p96
    %p98 = scmp.ne.s32.totalorder %s87, %s90
    %p99 = scmp.eq.s32.totalorder %s14, 1
    %p100 = por %p98, %p99
    %p101 = scmp.ne.s32.totalorder %s90, %s91
    %p102 = scmp.eq.s32.totalorder %s14, 0
    %p103 = por %p101, %p102
    %p104 = scmp.ne.s32.totalorder %s90, %s91
    %p105 = scmp.eq.s32.totalorder %s15, 1
    %p106 = por %p104, %p105
    %p108 = scmp.ne.s32.totalorder %s91, %s107
    %p109 = scmp.eq.s32.totalorder %s15, 0
    %p110 = por %p108, %p109
    %p111 = scmp.le.s32.totalorder 1, %s9
    %p112 = scmp.lt.s32.totalorder %s9, 3
    %p113 = pnand %p111, %p112
    %p114 = pneg %p113
    // Predicated region
    $region9: #{tpu_custom_call.1} parent=5 // pred_check
      _
    $region10: #{tpu_custom_call.1} parent=5 // pred_check_branch
      %116 = sbr.rel (%p113) target = $region12
    $region11: #{tpu_custom_call.1} parent=5 // pred_region
      %s117 = ssub.s32 %s9, 1
      // Predicated region
      $region13: #{tpu_custom_call.1} parent=11 // pred_check
        %p118 = pneg %p56
      $region14: #{tpu_custom_call.1} parent=11 // pred_check_branch
        %120 = sbr.rel (%p118) target = $region16
      $region15: #{tpu_custom_call.1} parent=11 // pred_region
        _
      $region16: #{tpu_custom_call.1} parent=11 // pred_fallthru
        _
      // Predicated region
      $region17: #{tpu_custom_call.1} parent=11 // pred_check
        %p121 = pneg %p77
      $region18: #{tpu_custom_call.1} parent=11 // pred_check_branch
        %123 = sbr.rel (%p121) target = $region20
      $region19: #{tpu_custom_call.1} parent=11 // pred_region
        _
      $region20: #{tpu_custom_call.1} parent=11 // pred_fallthru
        _
    $region12: #{tpu_custom_call.1} parent=5 // pred_fallthru
      _
    %p124 = scmp.lt.s32.totalorder %s9, 2
    // Predicated region
    $region21: #{tpu_custom_call.1} parent=5 // pred_check
      %p125 = pneg %p124
    $region22: #{tpu_custom_call.1} parent=5 // pred_check_branch
      %127 = sbr.rel (%p125) target = $region24
    $region23: #{tpu_custom_call.1} parent=5 // pred_region
      // Predicated region
      $region25: #{tpu_custom_call.1} parent=23 // pred_check
        %p128 = pneg %p29
      $region26: #{tpu_custom_call.1} parent=23 // pred_check_branch
        %130 = sbr.rel (%p128) target = $region28
      $region27: #{tpu_custom_call.1} parent=23 // pred_region
        %s131 = smul.u32 128, %s9
        %p132 = scmp.lt.s32.totalorder %s131, 255
        %s133 = scalar_select %p132, %s131, 255
        %s134 = smul.addr %s133, 2
        %s135 = smul.addr %s134, 8
        %s136 = scalar_lea.vmem %s0, %s135
        %s137 = smul.u32 128, %s9
      $region28: #{tpu_custom_call.1} parent=23 // pred_fallthru
        _
    $region24: #{tpu_custom_call.1} parent=5 // pred_fallthru
      _
    %p138 = scmp.le.s32.totalorder 1, %s9
    %p139 = scmp.lt.s32.totalorder %s9, 3
    %p140 = pnand %p138, %p139
    %p141 = pneg %p140
    // Predicated region
    $region29: #{tpu_custom_call.1} parent=5 // pred_check
      _
    $region30: #{tpu_custom_call.1} parent=5 // pred_check_branch
      %143 = sbr.rel (%p140) target = $region32
    $region31: #{tpu_custom_call.1} parent=5 // pred_region
      %s144 = ssub.s32 %s9, 1
      %s145 = smul.u32 128, %s14
      %p146 = scmp.lt.s32.totalorder %s145, 255
      %s147 = scalar_select %p146, %s145, 255
      %s148 = smul.addr %s147, 2
      %s149 = smul.addr %s148, 8
      %s150 = scalar_lea.vmem %s0, %s149
      %p151 = pneg %p35
      %p152 = pneg %p32
      %p153 = pneg %p56
      %p154 = pneg %p53
      %p155 = pneg %p77
      %p156 = pneg %p74
      %p157 = pneg %p103
      %p158 = pneg %p100
      %s159 = smul.u32 128, %s14
      %p160 = scmp.lt.s32.totalorder %s159, 255
      %s161 = scalar_select %p160, %s159, 255
      %s162 = smul.addr %s161, 6
      %s163 = smul.addr %s162, 4
      %s164 = scalar_lea.vmem %s3, %s163
      %s165 = smul.u32 128, %s14
      %p166 = scmp.lt.s32.totalorder %s165, 255
      %s167 = scalar_select %p166, %s165, 255
      %s168 = smul.addr %s167, 2
      %s169 = smul.addr %s168, 8
      %s170 = scalar_lea.vmem %s0, %s169
      %s171 = smul.u32 128, %s14
      %s172 = smul.u32 128, %s14
      %p173 = scmp.lt.s32.totalorder %s172, 255
      %s174 = scalar_select %p173, %s172, 255
      %s175 = smul.addr %s174, 6
      %s176 = smul.addr %s175, 4
      %s177 = scalar_lea.vmem %s3, %s176
      %s178 = smul.u32 128, %s14
      %v180 = vld [vmem:[%s170] sm:$0xff]
      %v181 = vld [vmem:[%s170 + $0x8] sm:$0xff]
      %v182 = vld [vmem:[%s170 + $0x10] sm:$0xff]
      %v183 = vld [vmem:[%s170 + $0x18] sm:$0xff]
      %v184 = vld [vmem:[%s170 + $0x20] sm:$0xff]
      %v185 = vld [vmem:[%s170 + $0x28] sm:$0xff]
      %v186 = vld [vmem:[%s170 + $0x30] sm:$0xff]
      %v187 = vld [vmem:[%s170 + $0x38] sm:$0xff]
      %v188 = vld [vmem:[%s170 + $0x40] sm:$0xff]
      %v189 = vld [vmem:[%s170 + $0x48] sm:$0xff]
      %v190 = vld [vmem:[%s170 + $0x50] sm:$0xff]
      %v191 = vld [vmem:[%s170 + $0x58] sm:$0xff]
      %v192 = vld [vmem:[%s170 + $0x60] sm:$0xff]
      %v193 = vld [vmem:[%s170 + $0x68] sm:$0xff]
      %v194 = vld [vmem:[%s170 + $0x70] sm:$0xff]
      %v195 = vld [vmem:[%s170 + $0x78] sm:$0xff]
      %v196 = vld [vmem:[%s170 + $0x80] sm:$0xff]
      %v197 = vld [vmem:[%s170 + $0x88] sm:$0xff]
      %v198 = vld [vmem:[%s170 + $0x90] sm:$0xff]
      %v199 = vld [vmem:[%s170 + $0x98] sm:$0xff]
      %v200 = vld [vmem:[%s170 + $0xa0] sm:$0xff]
      %v201 = vld [vmem:[%s170 + $0xa8] sm:$0xff]
      %v202 = vld [vmem:[%s170 + $0xb0] sm:$0xff]
      %v203 = vld [vmem:[%s170 + $0xb8] sm:$0xff]
      %v204 = vld [vmem:[%s170 + $0xc0] sm:$0xff]
      %v205 = vld [vmem:[%s170 + $0xc8] sm:$0xff]
      %v206 = vld [vmem:[%s170 + $0xd0] sm:$0xff]
      %v207 = vld [vmem:[%s170 + $0xd8] sm:$0xff]
      %v208 = vld [vmem:[%s170 + $0xe0] sm:$0xff]
      %v209 = vld [vmem:[%s170 + $0xe8] sm:$0xff]
      %v210 = vld [vmem:[%s170 + $0xf0] sm:$0xff]
      %v211 = vld [vmem:[%s170 + $0xf8] sm:$0xff]
      %v212 = vld [vmem:[%s170 + $0x100] sm:$0xff]
      %v213 = vld [vmem:[%s170 + $0x108] sm:$0xff]
      %v214 = vld [vmem:[%s170 + $0x110] sm:$0xff]
      %v215 = vld [vmem:[%s170 + $0x118] sm:$0xff]
      %v216 = vld [vmem:[%s170 + $0x120] sm:$0xff]
      %v217 = vld [vmem:[%s170 + $0x128] sm:$0xff]
      %v218 = vld [vmem:[%s170 + $0x130] sm:$0xff]
      %v219 = vld [vmem:[%s170 + $0x138] sm:$0xff]
      %v220 = vld [vmem:[%s170 + $0x140] sm:$0xff]
      %v221 = vld [vmem:[%s170 + $0x148] sm:$0xff]
      %v222 = vld [vmem:[%s170 + $0x150] sm:$0xff]
      %v223 = vld [vmem:[%s170 + $0x158] sm:$0xff]
      %v224 = vld [vmem:[%s170 + $0x160] sm:$0xff]
      %v225 = vld [vmem:[%s170 + $0x168] sm:$0xff]
      %v226 = vld [vmem:[%s170 + $0x170] sm:$0xff]
      %v227 = vld [vmem:[%s170 + $0x178] sm:$0xff]
      %v228 = vld [vmem:[%s170 + $0x180] sm:$0xff]
      %v229 = vld [vmem:[%s170 + $0x188] sm:$0xff]
      %v230 = vld [vmem:[%s170 + $0x190] sm:$0xff]
      %v231 = vld [vmem:[%s170 + $0x198] sm:$0xff]
      %v232 = vld [vmem:[%s170 + $0x1a0] sm:$0xff]
      %v233 = vld [vmem:[%s170 + $0x1a8] sm:$0xff]
      %v234 = vld [vmem:[%s170 + $0x1b0] sm:$0xff]
      %v235 = vld [vmem:[%s170 + $0x1b8] sm:$0xff]
      %v236 = vld [vmem:[%s170 + $0x1c0] sm:$0xff]
      %v237 = vld [vmem:[%s170 + $0x1c8] sm:$0xff]
      %v238 = vld [vmem:[%s170 + $0x1d0] sm:$0xff]
      %v239 = vld [vmem:[%s170 + $0x1d8] sm:$0xff]
      %v240 = vld [vmem:[%s170 + $0x1e0] sm:$0xff]
      %v241 = vld [vmem:[%s170 + $0x1e8] sm:$0xff]
      %v242 = vld [vmem:[%s170 + $0x1f0] sm:$0xff]
      %v243 = vld [vmem:[%s170 + $0x1f8] sm:$0xff]
      %v244 = vld [vmem:[%s170 + $0x200] sm:$0xff]
      %v245 = vld [vmem:[%s170 + $0x208] sm:$0xff]
      %v246 = vld [vmem:[%s170 + $0x210] sm:$0xff]
      %v247 = vld [vmem:[%s170 + $0x218] sm:$0xff]
      %v248 = vld [vmem:[%s170 + $0x220] sm:$0xff]
      %v249 = vld [vmem:[%s170 + $0x228] sm:$0xff]
      %v250 = vld [vmem:[%s170 + $0x230] sm:$0xff]
      %v251 = vld [vmem:[%s170 + $0x238] sm:$0xff]
      %v252 = vld [vmem:[%s170 + $0x240] sm:$0xff]
      %v253 = vld [vmem:[%s170 + $0x248] sm:$0xff]
      %v254 = vld [vmem:[%s170 + $0x250] sm:$0xff]
      %v255 = vld [vmem:[%s170 + $0x258] sm:$0xff]
      %v256 = vld [vmem:[%s170 + $0x260] sm:$0xff]
      %v257 = vld [vmem:[%s170 + $0x268] sm:$0xff]
      %v258 = vld [vmem:[%s170 + $0x270] sm:$0xff]
      %v259 = vld [vmem:[%s170 + $0x278] sm:$0xff]
      %v260 = vld [vmem:[%s170 + $0x280] sm:$0xff]
      %v261 = vld [vmem:[%s170 + $0x288] sm:$0xff]
      %v262 = vld [vmem:[%s170 + $0x290] sm:$0xff]
      %v263 = vld [vmem:[%s170 + $0x298] sm:$0xff]
      %v264 = vld [vmem:[%s170 + $0x2a0] sm:$0xff]
      %v265 = vld [vmem:[%s170 + $0x2a8] sm:$0xff]
      %v266 = vld [vmem:[%s170 + $0x2b0] sm:$0xff]
      %v267 = vld [vmem:[%s170 + $0x2b8] sm:$0xff]
      %v268 = vld [vmem:[%s170 + $0x2c0] sm:$0xff]
      %v269 = vld [vmem:[%s170 + $0x2c8] sm:$0xff]
      %v270 = vld [vmem:[%s170 + $0x2d0] sm:$0xff]
      %v271 = vld [vmem:[%s170 + $0x2d8] sm:$0xff]
      %v272 = vld [vmem:[%s170 + $0x2e0] sm:$0xff]
      %v273 = vld [vmem:[%s170 + $0x2e8] sm:$0xff]
      %v274 = vld [vmem:[%s170 + $0x2f0] sm:$0xff]
      %v275 = vld [vmem:[%s170 + $0x2f8] sm:$0xff]
      %v276 = vld [vmem:[%s170 + $0x300] sm:$0xff]
      %v277 = vld [vmem:[%s170 + $0x308] sm:$0xff]
      %v278 = vld [vmem:[%s170 + $0x310] sm:$0xff]
      %v279 = vld [vmem:[%s170 + $0x318] sm:$0xff]
      %v280 = vld [vmem:[%s170 + $0x320] sm:$0xff]
      %v281 = vld [vmem:[%s170 + $0x328] sm:$0xff]
      %v282 = vld [vmem:[%s170 + $0x330] sm:$0xff]
      %v283 = vld [vmem:[%s170 + $0x338] sm:$0xff]
      %v284 = vld [vmem:[%s170 + $0x340] sm:$0xff]
      %v285 = vld [vmem:[%s170 + $0x348] sm:$0xff]
      %v286 = vld [vmem:[%s170 + $0x350] sm:$0xff]
      %v287 = vld [vmem:[%s170 + $0x358] sm:$0xff]
      %v288 = vld [vmem:[%s170 + $0x360] sm:$0xff]
      %v289 = vld [vmem:[%s170 + $0x368] sm:$0xff]
      %v290 = vld [vmem:[%s170 + $0x370] sm:$0xff]
      %v291 = vld [vmem:[%s170 + $0x378] sm:$0xff]
      %v292 = vld [vmem:[%s170 + $0x380] sm:$0xff]
      %v293 = vld [vmem:[%s170 + $0x388] sm:$0xff]
      %v294 = vld [vmem:[%s170 + $0x390] sm:$0xff]
      %v295 = vld [vmem:[%s170 + $0x398] sm:$0xff]
      %v296 = vld [vmem:[%s170 + $0x3a0] sm:$0xff]
      %v297 = vld [vmem:[%s170 + $0x3a8] sm:$0xff]
      %v298 = vld [vmem:[%s170 + $0x3b0] sm:$0xff]
      %v299 = vld [vmem:[%s170 + $0x3b8] sm:$0xff]
      %v300 = vld [vmem:[%s170 + $0x3c0] sm:$0xff]
      %v301 = vld [vmem:[%s170 + $0x3c8] sm:$0xff]
      %v302 = vld [vmem:[%s170 + $0x3d0] sm:$0xff]
      %v303 = vld [vmem:[%s170 + $0x3d8] sm:$0xff]
      %v304 = vld [vmem:[%s170 + $0x3e0] sm:$0xff]
      %v305 = vld [vmem:[%s170 + $0x3e8] sm:$0xff]
      %v306 = vld [vmem:[%s170 + $0x3f0] sm:$0xff]
      %v307 = vld [vmem:[%s170 + $0x3f8] sm:$0xff]
      %v308 = vld [vmem:[%s170 + $0x400] sm:$0xff]
      %v309 = vld [vmem:[%s170 + $0x408] sm:$0xff]
      %v310 = vld [vmem:[%s170 + $0x410] sm:$0xff]
      %v311 = vld [vmem:[%s170 + $0x418] sm:$0xff]
      %v312 = vld [vmem:[%s170 + $0x420] sm:$0xff]
      %v313 = vld [vmem:[%s170 + $0x428] sm:$0xff]
      %v314 = vld [vmem:[%s170 + $0x430] sm:$0xff]
      %v315 = vld [vmem:[%s170 + $0x438] sm:$0xff]
      %v316 = vld [vmem:[%s170 + $0x440] sm:$0xff]
      %v317 = vld [vmem:[%s170 + $0x448] sm:$0xff]
      %v318 = vld [vmem:[%s170 + $0x450] sm:$0xff]
      %v319 = vld [vmem:[%s170 + $0x458] sm:$0xff]
      %v320 = vld [vmem:[%s170 + $0x460] sm:$0xff]
      %v321 = vld [vmem:[%s170 + $0x468] sm:$0xff]
      %v322 = vld [vmem:[%s170 + $0x470] sm:$0xff]
      %v323 = vld [vmem:[%s170 + $0x478] sm:$0xff]
      %v324 = vld [vmem:[%s170 + $0x480] sm:$0xff]
      %v325 = vld [vmem:[%s170 + $0x488] sm:$0xff]
      %v326 = vld [vmem:[%s170 + $0x490] sm:$0xff]
      %v327 = vld [vmem:[%s170 + $0x498] sm:$0xff]
      %v328 = vld [vmem:[%s170 + $0x4a0] sm:$0xff]
      %v329 = vld [vmem:[%s170 + $0x4a8] sm:$0xff]
      %v330 = vld [vmem:[%s170 + $0x4b0] sm:$0xff]
      %v331 = vld [vmem:[%s170 + $0x4b8] sm:$0xff]
      %v332 = vld [vmem:[%s170 + $0x4c0] sm:$0xff]
      %v333 = vld [vmem:[%s170 + $0x4c8] sm:$0xff]
      %v334 = vld [vmem:[%s170 + $0x4d0] sm:$0xff]
      %v335 = vld [vmem:[%s170 + $0x4d8] sm:$0xff]
      %v336 = vld [vmem:[%s170 + $0x4e0] sm:$0xff]
      %v337 = vld [vmem:[%s170 + $0x4e8] sm:$0xff]
      %v338 = vld [vmem:[%s170 + $0x4f0] sm:$0xff]
      %v339 = vld [vmem:[%s170 + $0x4f8] sm:$0xff]
      %v340 = vld [vmem:[%s170 + $0x500] sm:$0xff]
      %v341 = vld [vmem:[%s170 + $0x508] sm:$0xff]
      %v342 = vld [vmem:[%s170 + $0x510] sm:$0xff]
      %v343 = vld [vmem:[%s170 + $0x518] sm:$0xff]
      %v344 = vld [vmem:[%s170 + $0x520] sm:$0xff]
      %v345 = vld [vmem:[%s170 + $0x528] sm:$0xff]
      %v346 = vld [vmem:[%s170 + $0x530] sm:$0xff]
      %v347 = vld [vmem:[%s170 + $0x538] sm:$0xff]
      %v348 = vld [vmem:[%s170 + $0x540] sm:$0xff]
      %v349 = vld [vmem:[%s170 + $0x548] sm:$0xff]
      %v350 = vld [vmem:[%s170 + $0x550] sm:$0xff]
      %v351 = vld [vmem:[%s170 + $0x558] sm:$0xff]
      %v352 = vld [vmem:[%s170 + $0x560] sm:$0xff]
      %v353 = vld [vmem:[%s170 + $0x568] sm:$0xff]
      %v354 = vld [vmem:[%s170 + $0x570] sm:$0xff]
      %v355 = vld [vmem:[%s170 + $0x578] sm:$0xff]
      %v356 = vld [vmem:[%s170 + $0x580] sm:$0xff]
      %v357 = vld [vmem:[%s170 + $0x588] sm:$0xff]
      %v358 = vld [vmem:[%s170 + $0x590] sm:$0xff]
      %v359 = vld [vmem:[%s170 + $0x598] sm:$0xff]
      %v360 = vld [vmem:[%s170 + $0x5a0] sm:$0xff]
      %v361 = vld [vmem:[%s170 + $0x5a8] sm:$0xff]
      %v362 = vld [vmem:[%s170 + $0x5b0] sm:$0xff]
      %v363 = vld [vmem:[%s170 + $0x5b8] sm:$0xff]
      %v364 = vld [vmem:[%s170 + $0x5c0] sm:$0xff]
      %v365 = vld [vmem:[%s170 + $0x5c8] sm:$0xff]
      %v366 = vld [vmem:[%s170 + $0x5d0] sm:$0xff]
      %v367 = vld [vmem:[%s170 + $0x5d8] sm:$0xff]
      %v368 = vld [vmem:[%s170 + $0x5e0] sm:$0xff]
      %v369 = vld [vmem:[%s170 + $0x5e8] sm:$0xff]
      %v370 = vld [vmem:[%s170 + $0x5f0] sm:$0xff]
      %v371 = vld [vmem:[%s170 + $0x5f8] sm:$0xff]
      %v372 = vld [vmem:[%s170 + $0x600] sm:$0xff]
      %v373 = vld [vmem:[%s170 + $0x608] sm:$0xff]
      %v374 = vld [vmem:[%s170 + $0x610] sm:$0xff]
      %v375 = vld [vmem:[%s170 + $0x618] sm:$0xff]
      %v376 = vld [vmem:[%s170 + $0x620] sm:$0xff]
      %v377 = vld [vmem:[%s170 + $0x628] sm:$0xff]
      %v378 = vld [vmem:[%s170 + $0x630] sm:$0xff]
      %v379 = vld [vmem:[%s170 + $0x638] sm:$0xff]
      %v380 = vld [vmem:[%s170 + $0x640] sm:$0xff]
      %v381 = vld [vmem:[%s170 + $0x648] sm:$0xff]
      %v382 = vld [vmem:[%s170 + $0x650] sm:$0xff]
      %v383 = vld [vmem:[%s170 + $0x658] sm:$0xff]
      %v384 = vld [vmem:[%s170 + $0x660] sm:$0xff]
      %v385 = vld [vmem:[%s170 + $0x668] sm:$0xff]
      %v386 = vld [vmem:[%s170 + $0x670] sm:$0xff]
      %v387 = vld [vmem:[%s170 + $0x678] sm:$0xff]
      %v388 = vld [vmem:[%s170 + $0x680] sm:$0xff]
      %v389 = vld [vmem:[%s170 + $0x688] sm:$0xff]
      %v390 = vld [vmem:[%s170 + $0x690] sm:$0xff]
      %v391 = vld [vmem:[%s170 + $0x698] sm:$0xff]
      %v392 = vld [vmem:[%s170 + $0x6a0] sm:$0xff]
      %v393 = vld [vmem:[%s170 + $0x6a8] sm:$0xff]
      %v394 = vld [vmem:[%s170 + $0x6b0] sm:$0xff]
      %v395 = vld [vmem:[%s170 + $0x6b8] sm:$0xff]
      %v396 = vld [vmem:[%s170 + $0x6c0] sm:$0xff]
      %v397 = vld [vmem:[%s170 + $0x6c8] sm:$0xff]
      %v398 = vld [vmem:[%s170 + $0x6d0] sm:$0xff]
      %v399 = vld [vmem:[%s170 + $0x6d8] sm:$0xff]
      %v400 = vld [vmem:[%s170 + $0x6e0] sm:$0xff]
      %v401 = vld [vmem:[%s170 + $0x6e8] sm:$0xff]
      %v402 = vld [vmem:[%s170 + $0x6f0] sm:$0xff]
      %v403 = vld [vmem:[%s170 + $0x6f8] sm:$0xff]
      %v404 = vld [vmem:[%s170 + $0x700] sm:$0xff]
      %v405 = vld [vmem:[%s170 + $0x708] sm:$0xff]
      %v406 = vld [vmem:[%s170 + $0x710] sm:$0xff]
      %v407 = vld [vmem:[%s170 + $0x718] sm:$0xff]
      %v408 = vld [vmem:[%s170 + $0x720] sm:$0xff]
      %v409 = vld [vmem:[%s170 + $0x728] sm:$0xff]
      %v410 = vld [vmem:[%s170 + $0x730] sm:$0xff]
      %v411 = vld [vmem:[%s170 + $0x738] sm:$0xff]
      %v412 = vld [vmem:[%s170 + $0x740] sm:$0xff]
      %v413 = vld [vmem:[%s170 + $0x748] sm:$0xff]
      %v414 = vld [vmem:[%s170 + $0x750] sm:$0xff]
      %v415 = vld [vmem:[%s170 + $0x758] sm:$0xff]
      %v416 = vld [vmem:[%s170 + $0x760] sm:$0xff]
      %v417 = vld [vmem:[%s170 + $0x768] sm:$0xff]
      %v418 = vld [vmem:[%s170 + $0x770] sm:$0xff]
      %v419 = vld [vmem:[%s170 + $0x778] sm:$0xff]
      %v420 = vld [vmem:[%s170 + $0x780] sm:$0xff]
      %v421 = vld [vmem:[%s170 + $0x788] sm:$0xff]
      %v422 = vld [vmem:[%s170 + $0x790] sm:$0xff]
      %v423 = vld [vmem:[%s170 + $0x798] sm:$0xff]
      %v424 = vld [vmem:[%s170 + $0x7a0] sm:$0xff]
      %v425 = vld [vmem:[%s170 + $0x7a8] sm:$0xff]
      %v426 = vld [vmem:[%s170 + $0x7b0] sm:$0xff]
      %v427 = vld [vmem:[%s170 + $0x7b8] sm:$0xff]
      %v428 = vld [vmem:[%s170 + $0x7c0] sm:$0xff]
      %v429 = vld [vmem:[%s170 + $0x7c8] sm:$0xff]
      %v430 = vld [vmem:[%s170 + $0x7d0] sm:$0xff]
      %v431 = vld [vmem:[%s170 + $0x7d8] sm:$0xff]
      %v432 = vld [vmem:[%s170 + $0x7e0] sm:$0xff]
      %v433 = vld [vmem:[%s170 + $0x7e8] sm:$0xff]
      %v434 = vld [vmem:[%s170 + $0x7f0] sm:$0xff]
      %v435 = vld [vmem:[%s170 + $0x7f8] sm:$0xff]
      %v436 = vpack.c.bf16 %v182, %v180
      %v437 = vpack.c.bf16 %v183, %v181
      %v438 = vpack.c.bf16 %v186, %v184
      %v439 = vpack.c.bf16 %v187, %v185
      %v440 = vpack.c.bf16 %v190, %v188
      %v441 = vpack.c.bf16 %v191, %v189
      %v442 = vpack.c.bf16 %v194, %v192
      %v443 = vpack.c.bf16 %v195, %v193
      %v444 = vpack.c.bf16 %v198, %v196
      %v445 = vpack.c.bf16 %v199, %v197
      %v446 = vpack.c.bf16 %v202, %v200
      %v447 = vpack.c.bf16 %v203, %v201
      %v448 = vpack.c.bf16 %v206, %v204
      %v449 = vpack.c.bf16 %v207, %v205
      %v450 = vpack.c.bf16 %v210, %v208
      %v451 = vpack.c.bf16 %v211, %v209
      %v452 = vpack.c.bf16 %v214, %v212
      %v453 = vpack.c.bf16 %v215, %v213
      %v454 = vpack.c.bf16 %v218, %v216
      %v455 = vpack.c.bf16 %v219, %v217
      %v456 = vpack.c.bf16 %v222, %v220
      %v457 = vpack.c.bf16 %v223, %v221
      %v458 = vpack.c.bf16 %v226, %v224
      %v459 = vpack.c.bf16 %v227, %v225
      %v460 = vpack.c.bf16 %v230, %v228
      %v461 = vpack.c.bf16 %v231, %v229
      %v462 = vpack.c.bf16 %v234, %v232
      %v463 = vpack.c.bf16 %v235, %v233
      %v464 = vpack.c.bf16 %v238, %v236
      %v465 = vpack.c.bf16 %v239, %v237
      %v466 = vpack.c.bf16 %v242, %v240
      %v467 = vpack.c.bf16 %v243, %v241
      %v468 = vpack.c.bf16 %v246, %v244
      %v469 = vpack.c.bf16 %v247, %v245
      %v470 = vpack.c.bf16 %v250, %v248
      %v471 = vpack.c.bf16 %v251, %v249
      %v472 = vpack.c.bf16 %v254, %v252
      %v473 = vpack.c.bf16 %v255, %v253
      %v474 = vpack.c.bf16 %v258, %v256
      %v475 = vpack.c.bf16 %v259, %v257
      %v476 = vpack.c.bf16 %v262, %v260
      %v477 = vpack.c.bf16 %v263, %v261
      %v478 = vpack.c.bf16 %v266, %v264
      %v479 = vpack.c.bf16 %v267, %v265
      %v480 = vpack.c.bf16 %v270, %v268
      %v481 = vpack.c.bf16 %v271, %v269
      %v482 = vpack.c.bf16 %v274, %v272
      %v483 = vpack.c.bf16 %v275, %v273
      %v484 = vpack.c.bf16 %v278, %v276
      %v485 = vpack.c.bf16 %v279, %v277
      %v486 = vpack.c.bf16 %v282, %v280
      %v487 = vpack.c.bf16 %v283, %v281
      %v488 = vpack.c.bf16 %v286, %v284
      %v489 = vpack.c.bf16 %v287, %v285
      %v490 = vpack.c.bf16 %v290, %v288
      %v491 = vpack.c.bf16 %v291, %v289
      %v492 = vpack.c.bf16 %v294, %v292
      %v493 = vpack.c.bf16 %v295, %v293
      %v494 = vpack.c.bf16 %v298, %v296
      %v495 = vpack.c.bf16 %v299, %v297
      %v496 = vpack.c.bf16 %v302, %v300
      %v497 = vpack.c.bf16 %v303, %v301
      %v498 = vpack.c.bf16 %v306, %v304
      %v499 = vpack.c.bf16 %v307, %v305
      %v500 = vpack.c.bf16 %v310, %v308
      %v501 = vpack.c.bf16 %v311, %v309
      %v502 = vpack.c.bf16 %v314, %v312
      %v503 = vpack.c.bf16 %v315, %v313
      %v504 = vpack.c.bf16 %v318, %v316
      %v505 = vpack.c.bf16 %v319, %v317
      %v506 = vpack.c.bf16 %v322, %v320
      %v507 = vpack.c.bf16 %v323, %v321
      %v508 = vpack.c.bf16 %v326, %v324
      %v509 = vpack.c.bf16 %v327, %v325
      %v510 = vpack.c.bf16 %v330, %v328
      %v511 = vpack.c.bf16 %v331, %v329
      %v512 = vpack.c.bf16 %v334, %v332
      %v513 = vpack.c.bf16 %v335, %v333
      %v514 = vpack.c.bf16 %v338, %v336
      %v515 = vpack.c.bf16 %v339, %v337
      %v516 = vpack.c.bf16 %v342, %v340
      %v517 = vpack.c.bf16 %v343, %v341
      %v518 = vpack.c.bf16 %v346, %v344
      %v519 = vpack.c.bf16 %v347, %v345
      %v520 = vpack.c.bf16 %v350, %v348
      %v521 = vpack.c.bf16 %v351, %v349
      %v522 = vpack.c.bf16 %v354, %v352
      %v523 = vpack.c.bf16 %v355, %v353
      %v524 = vpack.c.bf16 %v358, %v356
      %v525 = vpack.c.bf16 %v359, %v357
      %v526 = vpack.c.bf16 %v362, %v360
      %v527 = vpack.c.bf16 %v363, %v361
      %v528 = vpack.c.bf16 %v366, %v364
      %v529 = vpack.c.bf16 %v367, %v365
      %v530 = vpack.c.bf16 %v370, %v368
      %v531 = vpack.c.bf16 %v371, %v369
      %v532 = vpack.c.bf16 %v374, %v372
      %v533 = vpack.c.bf16 %v375, %v373
      %v534 = vpack.c.bf16 %v378, %v376
      %v535 = vpack.c.bf16 %v379, %v377
      %v536 = vpack.c.bf16 %v382, %v380
      %v537 = vpack.c.bf16 %v383, %v381
      %v538 = vpack.c.bf16 %v386, %v384
      %v539 = vpack.c.bf16 %v387, %v385
      %v540 = vpack.c.bf16 %v390, %v388
      %v541 = vpack.c.bf16 %v391, %v389
      %v542 = vpack.c.bf16 %v394, %v392
      %v543 = vpack.c.bf16 %v395, %v393
      %v544 = vpack.c.bf16 %v398, %v396
      %v545 = vpack.c.bf16 %v399, %v397
      %v546 = vpack.c.bf16 %v402, %v400
      %v547 = vpack.c.bf16 %v403, %v401
      %v548 = vpack.c.bf16 %v406, %v404
      %v549 = vpack.c.bf16 %v407, %v405
      %v550 = vpack.c.bf16 %v410, %v408
      %v551 = vpack.c.bf16 %v411, %v409
      %v552 = vpack.c.bf16 %v414, %v412
      %v553 = vpack.c.bf16 %v415, %v413
      %v554 = vpack.c.bf16 %v418, %v416
      %v555 = vpack.c.bf16 %v419, %v417
      %v556 = vpack.c.bf16 %v422, %v420
      %v557 = vpack.c.bf16 %v423, %v421
      %v558 = vpack.c.bf16 %v426, %v424
      %v559 = vpack.c.bf16 %v427, %v425
      %v560 = vpack.c.bf16 %v430, %v428
      %v561 = vpack.c.bf16 %v431, %v429
      %v562 = vpack.c.bf16 %v434, %v432
      %v563 = vpack.c.bf16 %v435, %v433
      %v564 = vld [vmem:[%s1] sm:$0xff]
      %v565 = vld [vmem:[%s1 + $0x8] sm:$0xff]
      %v566 = vld [vmem:[%s1 + $0x10] sm:$0xff]
      %v567 = vld [vmem:[%s1 + $0x18] sm:$0xff]
      %v568 = vld [vmem:[%s1 + $0x20] sm:$0xff]
      %v569 = vld [vmem:[%s1 + $0x28] sm:$0xff]
      %v570 = vld [vmem:[%s1 + $0x30] sm:$0xff]
      %v571 = vld [vmem:[%s1 + $0x38] sm:$0xff]
      %v572 = vld [vmem:[%s1 + $0x40] sm:$0xff]
      %v573 = vld [vmem:[%s1 + $0x48] sm:$0xff]
      %v574 = vld [vmem:[%s1 + $0x50] sm:$0xff]
      %v575 = vld [vmem:[%s1 + $0x58] sm:$0xff]
      %v576 = vld [vmem:[%s1 + $0x60] sm:$0xff]
      %v577 = vld [vmem:[%s1 + $0x68] sm:$0xff]
      %v578 = vld [vmem:[%s1 + $0x70] sm:$0xff]
      %v579 = vld [vmem:[%s1 + $0x78] sm:$0xff]
      %v580 = vld [vmem:[%s1 + $0x80] sm:$0xff]
      %v581 = vld [vmem:[%s1 + $0x88] sm:$0xff]
      %v582 = vld [vmem:[%s1 + $0x90] sm:$0xff]
      %v583 = vld [vmem:[%s1 + $0x98] sm:$0xff]
      %v584 = vld [vmem:[%s1 + $0xa0] sm:$0xff]
      %v585 = vld [vmem:[%s1 + $0xa8] sm:$0xff]
      %v586 = vld [vmem:[%s1 + $0xb0] sm:$0xff]
      %v587 = vld [vmem:[%s1 + $0xb8] sm:$0xff]
      %v588 = vld [vmem:[%s1 + $0xc0] sm:$0xff]
      %v589 = vld [vmem:[%s1 + $0xc8] sm:$0xff]
      %v590 = vld [vmem:[%s1 + $0xd0] sm:$0xff]
      %v591 = vld [vmem:[%s1 + $0xd8] sm:$0xff]
      %v592 = vld [vmem:[%s1 + $0xe0] sm:$0xff]
      %v593 = vld [vmem:[%s1 + $0xe8] sm:$0xff]
      %v594 = vld [vmem:[%s1 + $0xf0] sm:$0xff]
      %v595 = vld [vmem:[%s1 + $0xf8] sm:$0xff]
      %v596 = vld [vmem:[%s1 + $0x100] sm:$0xff]
      %v597 = vld [vmem:[%s1 + $0x108] sm:$0xff]
      %v598 = vld [vmem:[%s1 + $0x110] sm:$0xff]
      %v599 = vld [vmem:[%s1 + $0x118] sm:$0xff]
      %v600 = vld [vmem:[%s1 + $0x120] sm:$0xff]
      %v601 = vld [vmem:[%s1 + $0x128] sm:$0xff]
      %v602 = vld [vmem:[%s1 + $0x130] sm:$0xff]
      %v603 = vld [vmem:[%s1 + $0x138] sm:$0xff]
      %v604 = vld [vmem:[%s1 + $0x140] sm:$0xff]
      %v605 = vld [vmem:[%s1 + $0x148] sm:$0xff]
      %v606 = vld [vmem:[%s1 + $0x150] sm:$0xff]
      %v607 = vld [vmem:[%s1 + $0x158] sm:$0xff]
      %v608 = vld [vmem:[%s1 + $0x160] sm:$0xff]
      %v609 = vld [vmem:[%s1 + $0x168] sm:$0xff]
      %v610 = vld [vmem:[%s1 + $0x170] sm:$0xff]
      %v611 = vld [vmem:[%s1 + $0x178] sm:$0xff]
      %v612 = vld [vmem:[%s1 + $0x180] sm:$0xff]
      %v613 = vld [vmem:[%s1 + $0x188] sm:$0xff]
      %v614 = vld [vmem:[%s1 + $0x190] sm:$0xff]
      %v615 = vld [vmem:[%s1 + $0x198] sm:$0xff]
      %v616 = vld [vmem:[%s1 + $0x1a0] sm:$0xff]
      %v617 = vld [vmem:[%s1 + $0x1a8] sm:$0xff]
      %v618 = vld [vmem:[%s1 + $0x1b0] sm:$0xff]
      %v619 = vld [vmem:[%s1 + $0x1b8] sm:$0xff]
      %v620 = vld [vmem:[%s1 + $0x1c0] sm:$0xff]
      %v621 = vld [vmem:[%s1 + $0x1c8] sm:$0xff]
      %v622 = vld [vmem:[%s1 + $0x1d0] sm:$0xff]
      %v623 = vld [vmem:[%s1 + $0x1d8] sm:$0xff]
      %v624 = vld [vmem:[%s1 + $0x1e0] sm:$0xff]
      %v625 = vld [vmem:[%s1 + $0x1e8] sm:$0xff]
      %v626 = vld [vmem:[%s1 + $0x1f0] sm:$0xff]
      %v627 = vld [vmem:[%s1 + $0x1f8] sm:$0xff]
      %v628 = vld [vmem:[%s1 + $0x200] sm:$0xff]
      %v629 = vld [vmem:[%s1 + $0x208] sm:$0xff]
      %v630 = vld [vmem:[%s1 + $0x210] sm:$0xff]
      %v631 = vld [vmem:[%s1 + $0x218] sm:$0xff]
      %v632 = vld [vmem:[%s1 + $0x220] sm:$0xff]
      %v633 = vld [vmem:[%s1 + $0x228] sm:$0xff]
      %v634 = vld [vmem:[%s1 + $0x230] sm:$0xff]
      %v635 = vld [vmem:[%s1 + $0x238] sm:$0xff]
      %v636 = vld [vmem:[%s1 + $0x240] sm:$0xff]
      %v637 = vld [vmem:[%s1 + $0x248] sm:$0xff]
      %v638 = vld [vmem:[%s1 + $0x250] sm:$0xff]
      %v639 = vld [vmem:[%s1 + $0x258] sm:$0xff]
      %v640 = vld [vmem:[%s1 + $0x260] sm:$0xff]
      %v641 = vld [vmem:[%s1 + $0x268] sm:$0xff]
      %v642 = vld [vmem:[%s1 + $0x270] sm:$0xff]
      %v643 = vld [vmem:[%s1 + $0x278] sm:$0xff]
      %v644 = vld [vmem:[%s1 + $0x280] sm:$0xff]
      %v645 = vld [vmem:[%s1 + $0x288] sm:$0xff]
      %v646 = vld [vmem:[%s1 + $0x290] sm:$0xff]
      %v647 = vld [vmem:[%s1 + $0x298] sm:$0xff]
      %v648 = vld [vmem:[%s2] sm:$0x3f]
      %v650 = vperm.slane %v648, 0
      %v651 = vperm.slane %v648, 1
      %v652 = vperm.slane %v648, 2
      %v653 = vperm.slane %v648, 3
      %v654 = vperm.slane %v648, 4
      %v655 = vperm.slane %v648, 5
      %v746 = vunpack.c.l.b16 %v564
      %v747 = vunpack.c.h.b16 %v564
      %v748 = vunpack.c.l.b16 %v565
      %v749 = vunpack.c.h.b16 %v565
      %v750 = vunpack.c.l.b16 %v566
      %v751 = vunpack.c.h.b16 %v566
      %v752 = vunpack.c.l.b16 %v567
      %v753 = vunpack.c.h.b16 %v567
      %v754 = vunpack.c.l.b16 %v568
      %v755 = vunpack.c.h.b16 %v568
      %v756 = vunpack.c.l.b16 %v569
      %v757 = vunpack.c.h.b16 %v569
      %v758 = vunpack.c.l.b16 %v570
      %v759 = vunpack.c.h.b16 %v570
      %v760 = vunpack.c.l.b16 %v571
      %v761 = vunpack.c.h.b16 %v571
      %v762 = vunpack.c.l.b16 %v572
      %v763 = vunpack.c.h.b16 %v572
      %v764 = vunpack.c.l.b16 %v573
      %v765 = vunpack.c.h.b16 %v573
      %v766 = vunpack.c.l.b16 %v574
      %v767 = vunpack.c.h.b16 %v574
      %v768 = vunpack.c.l.b16 %v575
      %v769 = vunpack.c.h.b16 %v575
      %v770 = vunpack.c.l.b16 %v576
      %v771 = vunpack.c.h.b16 %v576
      %v772 = vunpack.c.l.b16 %v577
      %v773 = vunpack.c.h.b16 %v577
      %v774 = vunpack.c.l.b16 %v578
      %v775 = vunpack.c.h.b16 %v578
      %v776 = vunpack.c.l.b16 %v579
      %v777 = vunpack.c.h.b16 %v579
      %v778 = vunpack.c.l.b16 %v580
      %v779 = vunpack.c.h.b16 %v580
      %v780 = vunpack.c.l.b16 %v581
      %v781 = vunpack.c.h.b16 %v581
      %v782 = vunpack.c.l.b16 %v582
      %v783 = vunpack.c.h.b16 %v582
      %v784 = vunpack.c.l.b16 %v583
      %v785 = vunpack.c.h.b16 %v583
      %v786 = vunpack.c.l.b16 %v584
      %v787 = vunpack.c.h.b16 %v584
      %v788 = vunpack.c.l.b16 %v585
      %v789 = vunpack.c.h.b16 %v585
      %v790 = vunpack.c.l.b16 %v586
      %v791 = vunpack.c.h.b16 %v586
      %v792 = vunpack.c.l.b16 %v587
      %v793 = vunpack.c.h.b16 %v587
      %v794 = vunpack.c.l.b16 %v588
      %v795 = vunpack.c.h.b16 %v588
      %v796 = vunpack.c.l.b16 %v589
      %v797 = vunpack.c.h.b16 %v589
      %v798 = vunpack.c.l.b16 %v590
      %v799 = vunpack.c.h.b16 %v590
      %v800 = vunpack.c.l.b16 %v591
      %v801 = vunpack.c.h.b16 %v591
      %v802 = vunpack.c.l.b16 %v592
      %v803 = vunpack.c.h.b16 %v592
      %v804 = vunpack.c.l.b16 %v593
      %v805 = vunpack.c.h.b16 %v593
      %v806 = vunpack.c.l.b16 %v594
      %v807 = vunpack.c.h.b16 %v594
      %v808 = vunpack.c.l.b16 %v595
      %v809 = vunpack.c.h.b16 %v595
      %v810 = vunpack.c.l.b16 %v596
      %v811 = vunpack.c.h.b16 %v596
      %v812 = vunpack.c.l.b16 %v597
      %v813 = vunpack.c.h.b16 %v597
      %v814 = vunpack.c.l.b16 %v598
      %v815 = vunpack.c.h.b16 %v598
      %v816 = vunpack.c.l.b16 %v599
      %v817 = vunpack.c.h.b16 %v599
      %v818 = vunpack.c.l.b16 %v600
      %v819 = vunpack.c.h.b16 %v600
      %v820 = vunpack.c.l.b16 %v601
      %v821 = vunpack.c.h.b16 %v601
      %v822 = vunpack.c.l.b16 %v602
      %v823 = vunpack.c.h.b16 %v602
      %v824 = vunpack.c.l.b16 %v603
      %v825 = vunpack.c.h.b16 %v603
      %v826 = vunpack.c.l.b16 %v604
      %v827 = vunpack.c.h.b16 %v604
      %v828 = vunpack.c.l.b16 %v605
      %v829 = vunpack.c.h.b16 %v605
      %v830 = vunpack.c.l.b16 %v606
      %v831 = vunpack.c.h.b16 %v606
      %v832 = vunpack.c.l.b16 %v607
      %v833 = vunpack.c.h.b16 %v607
      %v834 = vunpack.c.l.b16 %v608
      %v835 = vunpack.c.h.b16 %v608
      %v836 = vunpack.c.l.b16 %v609
      %v837 = vunpack.c.h.b16 %v609
      %v838 = vunpack.c.l.b16 %v610
      %v839 = vunpack.c.h.b16 %v610
      %v840 = vunpack.c.l.b16 %v611
      %v841 = vunpack.c.h.b16 %v611
      %v842 = vunpack.c.l.b16 %v612
      %v843 = vunpack.c.h.b16 %v612
      %v844 = vunpack.c.l.b16 %v613
      %v845 = vunpack.c.h.b16 %v613
      %v846 = vunpack.c.l.b16 %v614
      %v847 = vunpack.c.h.b16 %v614
      %v848 = vunpack.c.l.b16 %v615
      %v849 = vunpack.c.h.b16 %v615
      %v850 = vunpack.c.l.b16 %v616
      %v851 = vunpack.c.h.b16 %v616
      %v852 = vunpack.c.l.b16 %v617
      %v853 = vunpack.c.h.b16 %v617
      %v854 = vunpack.c.l.b16 %v618
      %v855 = vunpack.c.h.b16 %v618
      %v856 = vunpack.c.l.b16 %v619
      %v857 = vunpack.c.h.b16 %v619
      %v858 = vunpack.c.l.b16 %v620
      %v859 = vunpack.c.h.b16 %v620
      %v860 = vunpack.c.l.b16 %v621
      %v861 = vunpack.c.h.b16 %v621
      %v862 = vunpack.c.l.b16 %v622
      %v863 = vunpack.c.h.b16 %v622
      %v864 = vunpack.c.l.b16 %v623
      %v865 = vunpack.c.h.b16 %v623
      %v866 = vunpack.c.l.b16 %v624
      %v867 = vunpack.c.h.b16 %v624
      %v868 = vunpack.c.l.b16 %v625
      %v869 = vunpack.c.h.b16 %v625
      %v870 = vunpack.c.l.b16 %v626
      %v871 = vunpack.c.h.b16 %v626
      %v872 = vunpack.c.l.b16 %v627
      %v873 = vunpack.c.h.b16 %v627
      %v874 = vunpack.c.l.b16 %v628
      %v875 = vunpack.c.h.b16 %v628
      %v876 = vunpack.c.l.b16 %v629
      %v877 = vunpack.c.h.b16 %v629
      %v878 = vunpack.c.l.b16 %v630
      %v879 = vunpack.c.h.b16 %v630
      %v880 = vunpack.c.l.b16 %v631
      %v881 = vunpack.c.h.b16 %v631
      %v882 = vunpack.c.l.b16 %v632
      %v883 = vunpack.c.h.b16 %v632
      %v884 = vunpack.c.l.b16 %v633
      %v885 = vunpack.c.h.b16 %v633
      %v886 = vunpack.c.l.b16 %v634
      %v887 = vunpack.c.h.b16 %v634
      %v888 = vunpack.c.l.b16 %v635
      %v889 = vunpack.c.h.b16 %v635
      %v890 = vunpack.c.l.b16 %v636
      %v891 = vunpack.c.h.b16 %v636
      %v892 = vunpack.c.l.b16 %v637
      %v893 = vunpack.c.h.b16 %v637
      %v894 = vunpack.c.l.b16 %v638
      %v895 = vunpack.c.h.b16 %v638
      %v896 = vunpack.c.l.b16 %v639
      %v897 = vunpack.c.h.b16 %v639
      %v898 = vunpack.c.l.b16 %v640
      %v899 = vunpack.c.h.b16 %v640
      %v900 = vunpack.c.l.b16 %v641
      %v901 = vunpack.c.h.b16 %v641
      %v902 = vunpack.c.l.b16 %v642
      %v903 = vunpack.c.h.b16 %v642
      %v904 = vunpack.c.l.b16 %v643
      %v905 = vunpack.c.h.b16 %v643
      %v906 = vunpack.c.l.b16 %v644
      %v907 = vunpack.c.h.b16 %v644
      %v908 = vunpack.c.l.b16 %v645
      %v909 = vunpack.c.h.b16 %v645
      %v910 = vunpack.c.l.b16 %v646
      %v911 = vunpack.c.h.b16 %v646
      %v912 = vunpack.c.l.b16 %v647
      %v913 = vunpack.c.h.b16 %v647
      %v914 = vpack.c.b16 %v752, %v746
      %v915 = vpack.c.b16 %v753, %v747
      %v916 = vpack.c.b16 %v754, %v748
      %v917 = vpack.c.b16 %v755, %v749
      %v918 = vpack.c.b16 %v756, %v750
      %v919 = vpack.c.b16 %v757, %v751
      %v920 = vpack.c.b16 %v764, %v758
      %v921 = vpack.c.b16 %v765, %v759
      %v922 = vpack.c.b16 %v766, %v760
      %v923 = vpack.c.b16 %v767, %v761
      %v924 = vpack.c.b16 %v768, %v762
      %v925 = vpack.c.b16 %v769, %v763
      %v926 = vpack.c.b16 %v776, %v770
      %v927 = vpack.c.b16 %v777, %v771
      %v928 = vpack.c.b16 %v778, %v772
      %v929 = vpack.c.b16 %v779, %v773
      %v930 = vpack.c.b16 %v780, %v774
      %v931 = vpack.c.b16 %v781, %v775
      %v932 = vpack.c.b16 %v788, %v782
      %v933 = vpack.c.b16 %v789, %v783
      %v934 = vpack.c.b16 %v790, %v784
      %v935 = vpack.c.b16 %v791, %v785
      %v936 = vpack.c.b16 %v792, %v786
      %v937 = vpack.c.b16 %v793, %v787
      %v938 = vpack.c.b16 %v800, %v794
      %v939 = vpack.c.b16 %v801, %v795
      %v940 = vpack.c.b16 %v802, %v796
      %v941 = vpack.c.b16 %v803, %v797
      %v942 = vpack.c.b16 %v804, %v798
      %v943 = vpack.c.b16 %v805, %v799
      %v944 = vpack.c.b16 %v812, %v806
      %v945 = vpack.c.b16 %v813, %v807
      %v946 = vpack.c.b16 %v814, %v808
      %v947 = vpack.c.b16 %v815, %v809
      %v948 = vpack.c.b16 %v816, %v810
      %v949 = vpack.c.b16 %v817, %v811
      %v950 = vpack.c.b16 %v824, %v818
      %v951 = vpack.c.b16 %v825, %v819
      %v952 = vpack.c.b16 %v826, %v820
      %v953 = vpack.c.b16 %v827, %v821
      %v954 = vpack.c.b16 %v828, %v822
      %v955 = vpack.c.b16 %v829, %v823
      %v956 = vpack.c.b16 %v836, %v830
      %v957 = vpack.c.b16 %v837, %v831
      %v958 = vpack.c.b16 %v838, %v832
      %v959 = vpack.c.b16 %v839, %v833
      %v960 = vpack.c.b16 %v840, %v834
      %v961 = vpack.c.b16 %v841, %v835
      %v962 = vpack.c.b16 %v848, %v842
      %v963 = vpack.c.b16 %v849, %v843
      %v964 = vpack.c.b16 %v850, %v844
      %v965 = vpack.c.b16 %v851, %v845
      %v966 = vpack.c.b16 %v852, %v846
      %v967 = vpack.c.b16 %v853, %v847
      %v968 = vpack.c.b16 %v860, %v854
      %v969 = vpack.c.b16 %v861, %v855
      %v970 = vpack.c.b16 %v862, %v856
      %v971 = vpack.c.b16 %v863, %v857
      %v972 = vpack.c.b16 %v864, %v858
      %v973 = vpack.c.b16 %v865, %v859
      %v974 = vpack.c.b16 %v872, %v866
      %v975 = vpack.c.b16 %v873, %v867
      %v976 = vpack.c.b16 %v874, %v868
      %v977 = vpack.c.b16 %v875, %v869
      %v978 = vpack.c.b16 %v876, %v870
      %v979 = vpack.c.b16 %v877, %v871
      %v980 = vpack.c.b16 %v884, %v878
      %v981 = vpack.c.b16 %v885, %v879
      %v982 = vpack.c.b16 %v886, %v880
      %v983 = vpack.c.b16 %v887, %v881
      %v984 = vpack.c.b16 %v888, %v882
      %v985 = vpack.c.b16 %v889, %v883
      %v986 = vpack.c.b16 %v896, %v890
      %v987 = vpack.c.b16 %v897, %v891
      %v988 = vpack.c.b16 %v898, %v892
      %v989 = vpack.c.b16 %v899, %v893
      %v990 = vpack.c.b16 %v900, %v894
      %v991 = vpack.c.b16 %v901, %v895
      %v992 = vpack.c.b16 %v908, %v902
      %v993 = vpack.c.b16 %v909, %v903
      %v994 = vpack.c.b16 %v910, %v904
      %v995 = vpack.c.b16 %v911, %v905
      %v996 = vpack.c.b16 %v912, %v906
      %v997 = vpack.c.b16 %v913, %v907
      %vm1082 = vcmask 785408
      %v1084 = vsel %vm1082, %v437, 0
      %v1087 = vsel %vm1082, %v439, 0
      %v1090 = vsel %vm1082, %v441, 0
      %v1093 = vsel %vm1082, %v443, 0
      %v1096 = vsel %vm1082, %v445, 0
      %v1099 = vsel %vm1082, %v447, 0
      %v1102 = vsel %vm1082, %v449, 0
      %v1105 = vsel %vm1082, %v451, 0
      %v1108 = vsel %vm1082, %v453, 0
      %v1111 = vsel %vm1082, %v455, 0
      %v1114 = vsel %vm1082, %v457, 0
      %v1117 = vsel %vm1082, %v459, 0
      %v1120 = vsel %vm1082, %v461, 0
      %v1123 = vsel %vm1082, %v463, 0
      %v1126 = vsel %vm1082, %v465, 0
      %v1129 = vsel %vm1082, %v467, 0
      %v1132 = vsel %vm1082, %v469, 0
      %v1135 = vsel %vm1082, %v471, 0
      %v1138 = vsel %vm1082, %v473, 0
      %v1141 = vsel %vm1082, %v475, 0
      %v1144 = vsel %vm1082, %v477, 0
      %v1147 = vsel %vm1082, %v479, 0
      %v1150 = vsel %vm1082, %v481, 0
      %v1153 = vsel %vm1082, %v483, 0
      %v1156 = vsel %vm1082, %v485, 0
      %v1159 = vsel %vm1082, %v487, 0
      %v1162 = vsel %vm1082, %v489, 0
      %v1165 = vsel %vm1082, %v491, 0
      %v1168 = vsel %vm1082, %v493, 0
      %v1171 = vsel %vm1082, %v495, 0
      %v1174 = vsel %vm1082, %v497, 0
      %v1177 = vsel %vm1082, %v499, 0
      %v1180 = vsel %vm1082, %v501, 0
      %v1183 = vsel %vm1082, %v503, 0
      %v1186 = vsel %vm1082, %v505, 0
      %v1189 = vsel %vm1082, %v507, 0
      %v1192 = vsel %vm1082, %v509, 0
      %v1195 = vsel %vm1082, %v511, 0
      %v1198 = vsel %vm1082, %v513, 0
      %v1201 = vsel %vm1082, %v515, 0
      %v1204 = vsel %vm1082, %v517, 0
      %v1207 = vsel %vm1082, %v519, 0
      %v1210 = vsel %vm1082, %v521, 0
      %v1213 = vsel %vm1082, %v523, 0
      %v1216 = vsel %vm1082, %v525, 0
      %v1219 = vsel %vm1082, %v527, 0
      %v1222 = vsel %vm1082, %v529, 0
      %v1225 = vsel %vm1082, %v531, 0
      %v1228 = vsel %vm1082, %v533, 0
      %v1231 = vsel %vm1082, %v535, 0
      %v1234 = vsel %vm1082, %v537, 0
      %v1237 = vsel %vm1082, %v539, 0
      %v1240 = vsel %vm1082, %v541, 0
      %v1243 = vsel %vm1082, %v543, 0
      %v1246 = vsel %vm1082, %v545, 0
      %v1249 = vsel %vm1082, %v547, 0
      %v1252 = vsel %vm1082, %v549, 0
      %v1255 = vsel %vm1082, %v551, 0
      %v1258 = vsel %vm1082, %v553, 0
      %v1261 = vsel %vm1082, %v555, 0
      %v1264 = vsel %vm1082, %v557, 0
      %v1267 = vsel %vm1082, %v559, 0
      %v1270 = vsel %vm1082, %v561, 0
      %v1273 = vsel %vm1082, %v563, 0
      %1275 = vmatpush.bf16.msra.mxu0 %v956
      %1276 = vmatpush.bf16.msra.mxu0 %v950
      %1277 = vmatpush.bf16.msra.mxu0 %v944
      %1278 = vmatpush.bf16.msra.mxu0 %v938
      %1279 = vmatpush.bf16.msra.mxu0 %v932
      %1280 = vmatpush.bf16.msra.mxu0 %v926
      %1281 = vmatpush.bf16.msra.mxu0 %v920
      %1282 = vmatpush.bf16.msra.mxu0 %v914
      %1283 = vmatmul.bf16.gmra.mxu0 %v436
      %v1284 = vpop.f32.mrf.mxu0
      %v1285 = vadd.f32 %v650, %v1284
      %v1286 = vpop.f32.mrf.mxu0
      %v1287 = vadd.f32 %v650, %v1286
      %1288 = vmatmul.bf16.gmra.mxu0 %v438
      %v1289 = vpop.f32.mrf.mxu0
      %v1290 = vadd.f32 %v650, %v1289
      %v1291 = vpop.f32.mrf.mxu0
      %v1292 = vadd.f32 %v650, %v1291
      %1293 = vmatmul.bf16.gmra.mxu0 %v440
      %v1294 = vpop.f32.mrf.mxu0
      %v1295 = vadd.f32 %v650, %v1294
      %v1296 = vpop.f32.mrf.mxu0
      %v1297 = vadd.f32 %v650, %v1296
      %1298 = vmatmul.bf16.gmra.mxu0 %v442
      %v1299 = vpop.f32.mrf.mxu0
      %v1300 = vadd.f32 %v650, %v1299
      %v1301 = vpop.f32.mrf.mxu0
      %v1302 = vadd.f32 %v650, %v1301
      %1303 = vmatmul.bf16.gmra.mxu0 %v444
      %v1304 = vpop.f32.mrf.mxu0
      %v1305 = vadd.f32 %v650, %v1304
      %v1306 = vpop.f32.mrf.mxu0
      %v1307 = vadd.f32 %v650, %v1306
      %1308 = vmatmul.bf16.gmra.mxu0 %v446
      %v1309 = vpop.f32.mrf.mxu0
      %v1310 = vadd.f32 %v650, %v1309
      %v1311 = vpop.f32.mrf.mxu0
      %v1312 = vadd.f32 %v650, %v1311
      %1313 = vmatmul.bf16.gmra.mxu0 %v448
      %v1314 = vpop.f32.mrf.mxu0
      %v1315 = vadd.f32 %v650, %v1314
      %v1316 = vpop.f32.mrf.mxu0
      %v1317 = vadd.f32 %v650, %v1316
      %1318 = vmatmul.bf16.gmra.mxu0 %v450
      %v1319 = vpop.f32.mrf.mxu0
      %v1320 = vadd.f32 %v650, %v1319
      %v1321 = vpop.f32.mrf.mxu0
      %v1322 = vadd.f32 %v650, %v1321
      %1323 = vmatmul.bf16.gmra.mxu0 %v452
      %v1324 = vpop.f32.mrf.mxu0
      %v1325 = vadd.f32 %v650, %v1324
      %v1326 = vpop.f32.mrf.mxu0
      %v1327 = vadd.f32 %v650, %v1326
      %1328 = vmatmul.bf16.gmra.mxu0 %v454
      %v1329 = vpop.f32.mrf.mxu0
      %v1330 = vadd.f32 %v650, %v1329
      %v1331 = vpop.f32.mrf.mxu0
      %v1332 = vadd.f32 %v650, %v1331
      %1333 = vmatmul.bf16.gmra.mxu0 %v456
      %v1334 = vpop.f32.mrf.mxu0
      %v1335 = vadd.f32 %v650, %v1334
      %v1336 = vpop.f32.mrf.mxu0
      %v1337 = vadd.f32 %v650, %v1336
      %1338 = vmatmul.bf16.gmra.mxu0 %v458
      %v1339 = vpop.f32.mrf.mxu0
      %v1340 = vadd.f32 %v650, %v1339
      %v1341 = vpop.f32.mrf.mxu0
      %v1342 = vadd.f32 %v650, %v1341
      %1343 = vmatmul.bf16.gmra.mxu0 %v460
      %v1344 = vpop.f32.mrf.mxu0
      %v1345 = vadd.f32 %v650, %v1344
      %v1346 = vpop.f32.mrf.mxu0
      %v1347 = vadd.f32 %v650, %v1346
      %1348 = vmatmul.bf16.gmra.mxu0 %v462
      %v1349 = vpop.f32.mrf.mxu0
      %v1350 = vadd.f32 %v650, %v1349
      %v1351 = vpop.f32.mrf.mxu0
      %v1352 = vadd.f32 %v650, %v1351
      %1353 = vmatmul.bf16.gmra.mxu0 %v464
      %v1354 = vpop.f32.mrf.mxu0
      %v1355 = vadd.f32 %v650, %v1354
      %v1356 = vpop.f32.mrf.mxu0
      %v1357 = vadd.f32 %v650, %v1356
      %1358 = vmatmul.bf16.gmra.mxu0 %v466
      %v1359 = vpop.f32.mrf.mxu0
      %v1360 = vadd.f32 %v650, %v1359
      %v1361 = vpop.f32.mrf.mxu0
      %v1362 = vadd.f32 %v650, %v1361
      %1363 = vmatmul.bf16.gmra.mxu0 %v468
      %v1364 = vpop.f32.mrf.mxu0
      %v1365 = vadd.f32 %v650, %v1364
      %v1366 = vpop.f32.mrf.mxu0
      %v1367 = vadd.f32 %v650, %v1366
      %1368 = vmatmul.bf16.gmra.mxu0 %v470
      %v1369 = vpop.f32.mrf.mxu0
      %v1370 = vadd.f32 %v650, %v1369
      %v1371 = vpop.f32.mrf.mxu0
      %v1372 = vadd.f32 %v650, %v1371
      %1373 = vmatmul.bf16.gmra.mxu0 %v472
      %v1374 = vpop.f32.mrf.mxu0
      %v1375 = vadd.f32 %v650, %v1374
      %v1376 = vpop.f32.mrf.mxu0
      %v1377 = vadd.f32 %v650, %v1376
      %1378 = vmatmul.bf16.gmra.mxu0 %v474
      %v1379 = vpop.f32.mrf.mxu0
      %v1380 = vadd.f32 %v650, %v1379
      %v1381 = vpop.f32.mrf.mxu0
      %v1382 = vadd.f32 %v650, %v1381
      %1383 = vmatmul.bf16.gmra.mxu0 %v476
      %v1384 = vpop.f32.mrf.mxu0
      %v1385 = vadd.f32 %v650, %v1384
      %v1386 = vpop.f32.mrf.mxu0
      %v1387 = vadd.f32 %v650, %v1386
      %1388 = vmatmul.bf16.gmra.mxu0 %v478
      %v1389 = vpop.f32.mrf.mxu0
      %v1390 = vadd.f32 %v650, %v1389
      %v1391 = vpop.f32.mrf.mxu0
      %v1392 = vadd.f32 %v650, %v1391
      %1393 = vmatmul.bf16.gmra.mxu0 %v480
      %v1394 = vpop.f32.mrf.mxu0
      %v1395 = vadd.f32 %v650, %v1394
      %v1396 = vpop.f32.mrf.mxu0
      %v1397 = vadd.f32 %v650, %v1396
      %1398 = vmatmul.bf16.gmra.mxu0 %v482
      %v1399 = vpop.f32.mrf.mxu0
      %v1400 = vadd.f32 %v650, %v1399
      %v1401 = vpop.f32.mrf.mxu0
      %v1402 = vadd.f32 %v650, %v1401
      %1403 = vmatmul.bf16.gmra.mxu0 %v484
      %v1404 = vpop.f32.mrf.mxu0
      %v1405 = vadd.f32 %v650, %v1404
      %v1406 = vpop.f32.mrf.mxu0
      %v1407 = vadd.f32 %v650, %v1406
      %1408 = vmatmul.bf16.gmra.mxu0 %v486
      %v1409 = vpop.f32.mrf.mxu0
      %v1410 = vadd.f32 %v650, %v1409
      %v1411 = vpop.f32.mrf.mxu0
      %v1412 = vadd.f32 %v650, %v1411
      %1413 = vmatmul.bf16.gmra.mxu0 %v488
      %v1414 = vpop.f32.mrf.mxu0
      %v1415 = vadd.f32 %v650, %v1414
      %v1416 = vpop.f32.mrf.mxu0
      %v1417 = vadd.f32 %v650, %v1416
      %1418 = vmatmul.bf16.gmra.mxu0 %v490
      %v1419 = vpop.f32.mrf.mxu0
      %v1420 = vadd.f32 %v650, %v1419
      %v1421 = vpop.f32.mrf.mxu0
      %v1422 = vadd.f32 %v650, %v1421
      %1423 = vmatmul.bf16.gmra.mxu0 %v492
      %v1424 = vpop.f32.mrf.mxu0
      %v1425 = vadd.f32 %v650, %v1424
      %v1426 = vpop.f32.mrf.mxu0
      %v1427 = vadd.f32 %v650, %v1426
      %1428 = vmatmul.bf16.gmra.mxu0 %v494
      %v1429 = vpop.f32.mrf.mxu0
      %v1430 = vadd.f32 %v650, %v1429
      %v1431 = vpop.f32.mrf.mxu0
      %v1432 = vadd.f32 %v650, %v1431
      %1433 = vmatmul.bf16.gmra.mxu0 %v496
      %v1434 = vpop.f32.mrf.mxu0
      %v1435 = vadd.f32 %v650, %v1434
      %v1436 = vpop.f32.mrf.mxu0
      %v1437 = vadd.f32 %v650, %v1436
      %1438 = vmatmul.bf16.gmra.mxu0 %v498
      %v1439 = vpop.f32.mrf.mxu0
      %v1440 = vadd.f32 %v650, %v1439
      %v1441 = vpop.f32.mrf.mxu0
      %v1442 = vadd.f32 %v650, %v1441
      %1443 = vmatmul.bf16.gmra.mxu0 %v500
      %v1444 = vpop.f32.mrf.mxu0
      %v1445 = vadd.f32 %v650, %v1444
      %v1446 = vpop.f32.mrf.mxu0
      %v1447 = vadd.f32 %v650, %v1446
      %1448 = vmatmul.bf16.gmra.mxu0 %v502
      %v1449 = vpop.f32.mrf.mxu0
      %v1450 = vadd.f32 %v650, %v1449
      %v1451 = vpop.f32.mrf.mxu0
      %v1452 = vadd.f32 %v650, %v1451
      %1453 = vmatmul.bf16.gmra.mxu0 %v504
      %v1454 = vpop.f32.mrf.mxu0
      %v1455 = vadd.f32 %v650, %v1454
      %v1456 = vpop.f32.mrf.mxu0
      %v1457 = vadd.f32 %v650, %v1456
      %1458 = vmatmul.bf16.gmra.mxu0 %v506
      %v1459 = vpop.f32.mrf.mxu0
      %v1460 = vadd.f32 %v650, %v1459
      %v1461 = vpop.f32.mrf.mxu0
      %v1462 = vadd.f32 %v650, %v1461
      %1463 = vmatmul.bf16.gmra.mxu0 %v508
      %v1464 = vpop.f32.mrf.mxu0
      %v1465 = vadd.f32 %v650, %v1464
      %v1466 = vpop.f32.mrf.mxu0
      %v1467 = vadd.f32 %v650, %v1466
      %1468 = vmatmul.bf16.gmra.mxu0 %v510
      %v1469 = vpop.f32.mrf.mxu0
      %v1470 = vadd.f32 %v650, %v1469
      %v1471 = vpop.f32.mrf.mxu0
      %v1472 = vadd.f32 %v650, %v1471
      %1473 = vmatmul.bf16.gmra.mxu0 %v512
      %v1474 = vpop.f32.mrf.mxu0
      %v1475 = vadd.f32 %v650, %v1474
      %v1476 = vpop.f32.mrf.mxu0
      %v1477 = vadd.f32 %v650, %v1476
      %1478 = vmatmul.bf16.gmra.mxu0 %v514
      %v1479 = vpop.f32.mrf.mxu0
      %v1480 = vadd.f32 %v650, %v1479
      %v1481 = vpop.f32.mrf.mxu0
      %v1482 = vadd.f32 %v650, %v1481
      %1483 = vmatmul.bf16.gmra.mxu0 %v516
      %v1484 = vpop.f32.mrf.mxu0
      %v1485 = vadd.f32 %v650, %v1484
      %v1486 = vpop.f32.mrf.mxu0
      %v1487 = vadd.f32 %v650, %v1486
      %1488 = vmatmul.bf16.gmra.mxu0 %v518
      %v1489 = vpop.f32.mrf.mxu0
      %v1490 = vadd.f32 %v650, %v1489
      %v1491 = vpop.f32.mrf.mxu0
      %v1492 = vadd.f32 %v650, %v1491
      %1493 = vmatmul.bf16.gmra.mxu0 %v520
      %v1494 = vpop.f32.mrf.mxu0
      %v1495 = vadd.f32 %v650, %v1494
      %v1496 = vpop.f32.mrf.mxu0
      %v1497 = vadd.f32 %v650, %v1496
      %1498 = vmatmul.bf16.gmra.mxu0 %v522
      %v1499 = vpop.f32.mrf.mxu0
      %v1500 = vadd.f32 %v650, %v1499
      %v1501 = vpop.f32.mrf.mxu0
      %v1502 = vadd.f32 %v650, %v1501
      %1503 = vmatmul.bf16.gmra.mxu0 %v524
      %v1504 = vpop.f32.mrf.mxu0
      %v1505 = vadd.f32 %v650, %v1504
      %v1506 = vpop.f32.mrf.mxu0
      %v1507 = vadd.f32 %v650, %v1506
      %1508 = vmatmul.bf16.gmra.mxu0 %v526
      %v1509 = vpop.f32.mrf.mxu0
      %v1510 = vadd.f32 %v650, %v1509
      %v1511 = vpop.f32.mrf.mxu0
      %v1512 = vadd.f32 %v650, %v1511
      %1513 = vmatmul.bf16.gmra.mxu0 %v528
      %v1514 = vpop.f32.mrf.mxu0
      %v1515 = vadd.f32 %v650, %v1514
      %v1516 = vpop.f32.mrf.mxu0
      %v1517 = vadd.f32 %v650, %v1516
      %1518 = vmatmul.bf16.gmra.mxu0 %v530
      %v1519 = vpop.f32.mrf.mxu0
      %v1520 = vadd.f32 %v650, %v1519
      %v1521 = vpop.f32.mrf.mxu0
      %v1522 = vadd.f32 %v650, %v1521
      %1523 = vmatmul.bf16.gmra.mxu0 %v532
      %v1524 = vpop.f32.mrf.mxu0
      %v1525 = vadd.f32 %v650, %v1524
      %v1526 = vpop.f32.mrf.mxu0
      %v1527 = vadd.f32 %v650, %v1526
      %1528 = vmatmul.bf16.gmra.mxu0 %v534
      %v1529 = vpop.f32.mrf.mxu0
      %v1530 = vadd.f32 %v650, %v1529
      %v1531 = vpop.f32.mrf.mxu0
      %v1532 = vadd.f32 %v650, %v1531
      %1533 = vmatmul.bf16.gmra.mxu0 %v536
      %v1534 = vpop.f32.mrf.mxu0
      %v1535 = vadd.f32 %v650, %v1534
      %v1536 = vpop.f32.mrf.mxu0
      %v1537 = vadd.f32 %v650, %v1536
      %1538 = vmatmul.bf16.gmra.mxu0 %v538
      %v1539 = vpop.f32.mrf.mxu0
      %v1540 = vadd.f32 %v650, %v1539
      %v1541 = vpop.f32.mrf.mxu0
      %v1542 = vadd.f32 %v650, %v1541
      %1543 = vmatmul.bf16.gmra.mxu0 %v540
      %v1544 = vpop.f32.mrf.mxu0
      %v1545 = vadd.f32 %v650, %v1544
      %v1546 = vpop.f32.mrf.mxu0
      %v1547 = vadd.f32 %v650, %v1546
      %1548 = vmatmul.bf16.gmra.mxu0 %v542
      %v1549 = vpop.f32.mrf.mxu0
      %v1550 = vadd.f32 %v650, %v1549
      %v1551 = vpop.f32.mrf.mxu0
      %v1552 = vadd.f32 %v650, %v1551
      %1553 = vmatmul.bf16.gmra.mxu0 %v544
      %v1554 = vpop.f32.mrf.mxu0
      %v1555 = vadd.f32 %v650, %v1554
      %v1556 = vpop.f32.mrf.mxu0
      %v1557 = vadd.f32 %v650, %v1556
      %1558 = vmatmul.bf16.gmra.mxu0 %v546
      %v1559 = vpop.f32.mrf.mxu0
      %v1560 = vadd.f32 %v650, %v1559
      %v1561 = vpop.f32.mrf.mxu0
      %v1562 = vadd.f32 %v650, %v1561
      %1563 = vmatmul.bf16.gmra.mxu0 %v548
      %v1564 = vpop.f32.mrf.mxu0
      %v1565 = vadd.f32 %v650, %v1564
      %v1566 = vpop.f32.mrf.mxu0
      %v1567 = vadd.f32 %v650, %v1566
      %1568 = vmatmul.bf16.gmra.mxu0 %v550
      %v1569 = vpop.f32.mrf.mxu0
      %v1570 = vadd.f32 %v650, %v1569
      %v1571 = vpop.f32.mrf.mxu0
      %v1572 = vadd.f32 %v650, %v1571
      %1573 = vmatmul.bf16.gmra.mxu0 %v552
      %v1574 = vpop.f32.mrf.mxu0
      %v1575 = vadd.f32 %v650, %v1574
      %v1576 = vpop.f32.mrf.mxu0
      %v1577 = vadd.f32 %v650, %v1576
      %1578 = vmatmul.bf16.gmra.mxu0 %v554
      %v1579 = vpop.f32.mrf.mxu0
      %v1580 = vadd.f32 %v650, %v1579
      %v1581 = vpop.f32.mrf.mxu0
      %v1582 = vadd.f32 %v650, %v1581
      %1583 = vmatmul.bf16.gmra.mxu0 %v556
      %v1584 = vpop.f32.mrf.mxu0
      %v1585 = vadd.f32 %v650, %v1584
      %v1586 = vpop.f32.mrf.mxu0
      %v1587 = vadd.f32 %v650, %v1586
      %1588 = vmatmul.bf16.gmra.mxu0 %v558
      %v1589 = vpop.f32.mrf.mxu0
      %v1590 = vadd.f32 %v650, %v1589
      %v1591 = vpop.f32.mrf.mxu0
      %v1592 = vadd.f32 %v650, %v1591
      %1593 = vmatmul.bf16.gmra.mxu0 %v560
      %v1594 = vpop.f32.mrf.mxu0
      %v1595 = vadd.f32 %v650, %v1594
      %v1596 = vpop.f32.mrf.mxu0
      %v1597 = vadd.f32 %v650, %v1596
      %1598 = vmatmul.bf16.gmra.mxu0 %v562
      %v1599 = vpop.f32.mrf.mxu0
      %v1600 = vadd.f32 %v650, %v1599
      %v1601 = vpop.f32.mrf.mxu0
      %v1602 = vadd.f32 %v650, %v1601
      %1603 = vdwg.mxu0
      %1604 = vmatpush.bf16.msra.mxu0 0
      %1605 = vmatpush.bf16.msra.mxu0 0
      %1606 = vmatpush.bf16.msra.mxu0 %v992
      %1607 = vmatpush.bf16.msra.mxu0 %v986
      %1608 = vmatpush.bf16.msra.mxu0 %v980
      %1609 = vmatpush.bf16.msra.mxu0 %v974
      %1610 = vmatpush.bf16.msra.mxu0 %v968
      %1611 = vmatpush.bf16.msra.mxu0 %v962
      %1612 = vmatmul.bf16.gmra.mxu0 %v1084
      %v1613 = vpop.f32.mrf.mxu0
      %v1614 = vadd.f32 %v1285, %v1613
      %v1615 = vpop.f32.mrf.mxu0
      %v1616 = vadd.f32 %v1287, %v1615
      %1617 = vmatmul.bf16.gmra.mxu0 %v1087
      %v1618 = vpop.f32.mrf.mxu0
      %v1619 = vadd.f32 %v1290, %v1618
      %v1620 = vpop.f32.mrf.mxu0
      %v1621 = vadd.f32 %v1292, %v1620
      %1622 = vmatmul.bf16.gmra.mxu0 %v1090
      %v1623 = vpop.f32.mrf.mxu0
      %v1624 = vadd.f32 %v1295, %v1623
      %v1625 = vpop.f32.mrf.mxu0
      %v1626 = vadd.f32 %v1297, %v1625
      %1627 = vmatmul.bf16.gmra.mxu0 %v1093
      %v1628 = vpop.f32.mrf.mxu0
      %v1629 = vadd.f32 %v1300, %v1628
      %v1630 = vpop.f32.mrf.mxu0
      %v1631 = vadd.f32 %v1302, %v1630
      %1632 = vmatmul.bf16.gmra.mxu0 %v1096
      %v1633 = vpop.f32.mrf.mxu0
      %v1634 = vadd.f32 %v1305, %v1633
      %v1635 = vpop.f32.mrf.mxu0
      %v1636 = vadd.f32 %v1307, %v1635
      %1637 = vmatmul.bf16.gmra.mxu0 %v1099
      %v1638 = vpop.f32.mrf.mxu0
      %v1639 = vadd.f32 %v1310, %v1638
      %v1640 = vpop.f32.mrf.mxu0
      %v1641 = vadd.f32 %v1312, %v1640
      %1642 = vmatmul.bf16.gmra.mxu0 %v1102
      %v1643 = vpop.f32.mrf.mxu0
      %v1644 = vadd.f32 %v1315, %v1643
      %v1645 = vpop.f32.mrf.mxu0
      %v1646 = vadd.f32 %v1317, %v1645
      %1647 = vmatmul.bf16.gmra.mxu0 %v1105
      %v1648 = vpop.f32.mrf.mxu0
      %v1649 = vadd.f32 %v1320, %v1648
      %v1650 = vpop.f32.mrf.mxu0
      %v1651 = vadd.f32 %v1322, %v1650
      %1652 = vmatmul.bf16.gmra.mxu0 %v1108
      %v1653 = vpop.f32.mrf.mxu0
      %v1654 = vadd.f32 %v1325, %v1653
      %v1655 = vpop.f32.mrf.mxu0
      %v1656 = vadd.f32 %v1327, %v1655
      %1657 = vmatmul.bf16.gmra.mxu0 %v1111
      %v1658 = vpop.f32.mrf.mxu0
      %v1659 = vadd.f32 %v1330, %v1658
      %v1660 = vpop.f32.mrf.mxu0
      %v1661 = vadd.f32 %v1332, %v1660
      %1662 = vmatmul.bf16.gmra.mxu0 %v1114
      %v1663 = vpop.f32.mrf.mxu0
      %v1664 = vadd.f32 %v1335, %v1663
      %v1665 = vpop.f32.mrf.mxu0
      %v1666 = vadd.f32 %v1337, %v1665
      %1667 = vmatmul.bf16.gmra.mxu0 %v1117
      %v1668 = vpop.f32.mrf.mxu0
      %v1669 = vadd.f32 %v1340, %v1668
      %v1670 = vpop.f32.mrf.mxu0
      %v1671 = vadd.f32 %v1342, %v1670
      %1672 = vmatmul.bf16.gmra.mxu0 %v1120
      %v1673 = vpop.f32.mrf.mxu0
      %v1674 = vadd.f32 %v1345, %v1673
      %v1675 = vpop.f32.mrf.mxu0
      %v1676 = vadd.f32 %v1347, %v1675
      %1677 = vmatmul.bf16.gmra.mxu0 %v1123
      %v1678 = vpop.f32.mrf.mxu0
      %v1679 = vadd.f32 %v1350, %v1678
      %v1680 = vpop.f32.mrf.mxu0
      %v1681 = vadd.f32 %v1352, %v1680
      %1682 = vmatmul.bf16.gmra.mxu0 %v1126
      %v1683 = vpop.f32.mrf.mxu0
      %v1684 = vadd.f32 %v1355, %v1683
      %v1685 = vpop.f32.mrf.mxu0
      %v1686 = vadd.f32 %v1357, %v1685
      %1687 = vmatmul.bf16.gmra.mxu0 %v1129
      %v1688 = vpop.f32.mrf.mxu0
      %v1689 = vadd.f32 %v1360, %v1688
      %v1690 = vpop.f32.mrf.mxu0
      %v1691 = vadd.f32 %v1362, %v1690
      %1692 = vmatmul.bf16.gmra.mxu0 %v1132
      %v1693 = vpop.f32.mrf.mxu0
      %v1694 = vadd.f32 %v1365, %v1693
      %v1695 = vpop.f32.mrf.mxu0
      %v1696 = vadd.f32 %v1367, %v1695
      %1697 = vmatmul.bf16.gmra.mxu0 %v1135
      %v1698 = vpop.f32.mrf.mxu0
      %v1699 = vadd.f32 %v1370, %v1698
      %v1700 = vpop.f32.mrf.mxu0
      %v1701 = vadd.f32 %v1372, %v1700
      %1702 = vmatmul.bf16.gmra.mxu0 %v1138
      %v1703 = vpop.f32.mrf.mxu0
      %v1704 = vadd.f32 %v1375, %v1703
      %v1705 = vpop.f32.mrf.mxu0
      %v1706 = vadd.f32 %v1377, %v1705
      %1707 = vmatmul.bf16.gmra.mxu0 %v1141
      %v1708 = vpop.f32.mrf.mxu0
      %v1709 = vadd.f32 %v1380, %v1708
      %v1710 = vpop.f32.mrf.mxu0
      %v1711 = vadd.f32 %v1382, %v1710
      %1712 = vmatmul.bf16.gmra.mxu0 %v1144
      %v1713 = vpop.f32.mrf.mxu0
      %v1714 = vadd.f32 %v1385, %v1713
      %v1715 = vpop.f32.mrf.mxu0
      %v1716 = vadd.f32 %v1387, %v1715
      %1717 = vmatmul.bf16.gmra.mxu0 %v1147
      %v1718 = vpop.f32.mrf.mxu0
      %v1719 = vadd.f32 %v1390, %v1718
      %v1720 = vpop.f32.mrf.mxu0
      %v1721 = vadd.f32 %v1392, %v1720
      %1722 = vmatmul.bf16.gmra.mxu0 %v1150
      %v1723 = vpop.f32.mrf.mxu0
      %v1724 = vadd.f32 %v1395, %v1723
      %v1725 = vpop.f32.mrf.mxu0
      %v1726 = vadd.f32 %v1397, %v1725
      %1727 = vmatmul.bf16.gmra.mxu0 %v1153
      %v1728 = vpop.f32.mrf.mxu0
      %v1729 = vadd.f32 %v1400, %v1728
      %v1730 = vpop.f32.mrf.mxu0
      %v1731 = vadd.f32 %v1402, %v1730
      %1732 = vmatmul.bf16.gmra.mxu0 %v1156
      %v1733 = vpop.f32.mrf.mxu0
      %v1734 = vadd.f32 %v1405, %v1733
      %v1735 = vpop.f32.mrf.mxu0
      %v1736 = vadd.f32 %v1407, %v1735
      %1737 = vmatmul.bf16.gmra.mxu0 %v1159
      %v1738 = vpop.f32.mrf.mxu0
      %v1739 = vadd.f32 %v1410, %v1738
      %v1740 = vpop.f32.mrf.mxu0
      %v1741 = vadd.f32 %v1412, %v1740
      %1742 = vmatmul.bf16.gmra.mxu0 %v1162
      %v1743 = vpop.f32.mrf.mxu0
      %v1744 = vadd.f32 %v1415, %v1743
      %v1745 = vpop.f32.mrf.mxu0
      %v1746 = vadd.f32 %v1417, %v1745
      %1747 = vmatmul.bf16.gmra.mxu0 %v1165
      %v1748 = vpop.f32.mrf.mxu0
      %v1749 = vadd.f32 %v1420, %v1748
      %v1750 = vpop.f32.mrf.mxu0
      %v1751 = vadd.f32 %v1422, %v1750
      %1752 = vmatmul.bf16.gmra.mxu0 %v1168
      %v1753 = vpop.f32.mrf.mxu0
      %v1754 = vadd.f32 %v1425, %v1753
      %v1755 = vpop.f32.mrf.mxu0
      %v1756 = vadd.f32 %v1427, %v1755
      %1757 = vmatmul.bf16.gmra.mxu0 %v1171
      %v1758 = vpop.f32.mrf.mxu0
      %v1759 = vadd.f32 %v1430, %v1758
      %v1760 = vpop.f32.mrf.mxu0
      %v1761 = vadd.f32 %v1432, %v1760
      %1762 = vmatmul.bf16.gmra.mxu0 %v1174
      %v1763 = vpop.f32.mrf.mxu0
      %v1764 = vadd.f32 %v1435, %v1763
      %v1765 = vpop.f32.mrf.mxu0
      %v1766 = vadd.f32 %v1437, %v1765
      %1767 = vmatmul.bf16.gmra.mxu0 %v1177
      %v1768 = vpop.f32.mrf.mxu0
      %v1769 = vadd.f32 %v1440, %v1768
      %v1770 = vpop.f32.mrf.mxu0
      %v1771 = vadd.f32 %v1442, %v1770
      %1772 = vmatmul.bf16.gmra.mxu0 %v1180
      %v1773 = vpop.f32.mrf.mxu0
      %v1774 = vadd.f32 %v1445, %v1773
      %v1775 = vpop.f32.mrf.mxu0
      %v1776 = vadd.f32 %v1447, %v1775
      %1777 = vmatmul.bf16.gmra.mxu0 %v1183
      %v1778 = vpop.f32.mrf.mxu0
      %v1779 = vadd.f32 %v1450, %v1778
      %v1780 = vpop.f32.mrf.mxu0
      %v1781 = vadd.f32 %v1452, %v1780
      %1782 = vmatmul.bf16.gmra.mxu0 %v1186
      %v1783 = vpop.f32.mrf.mxu0
      %v1784 = vadd.f32 %v1455, %v1783
      %v1785 = vpop.f32.mrf.mxu0
      %v1786 = vadd.f32 %v1457, %v1785
      %1787 = vmatmul.bf16.gmra.mxu0 %v1189
      %v1788 = vpop.f32.mrf.mxu0
      %v1789 = vadd.f32 %v1460, %v1788
      %v1790 = vpop.f32.mrf.mxu0
      %v1791 = vadd.f32 %v1462, %v1790
      %1792 = vmatmul.bf16.gmra.mxu0 %v1192
      %v1793 = vpop.f32.mrf.mxu0
      %v1794 = vadd.f32 %v1465, %v1793
      %v1795 = vpop.f32.mrf.mxu0
      %v1796 = vadd.f32 %v1467, %v1795
      %1797 = vmatmul.bf16.gmra.mxu0 %v1195
      %v1798 = vpop.f32.mrf.mxu0
      %v1799 = vadd.f32 %v1470, %v1798
      %v1800 = vpop.f32.mrf.mxu0
      %v1801 = vadd.f32 %v1472, %v1800
      %1802 = vmatmul.bf16.gmra.mxu0 %v1198
      %v1803 = vpop.f32.mrf.mxu0
      %v1804 = vadd.f32 %v1475, %v1803
      %v1805 = vpop.f32.mrf.mxu0
      %v1806 = vadd.f32 %v1477, %v1805
      %1807 = vmatmul.bf16.gmra.mxu0 %v1201
      %v1808 = vpop.f32.mrf.mxu0
      %v1809 = vadd.f32 %v1480, %v1808
      %v1810 = vpop.f32.mrf.mxu0
      %v1811 = vadd.f32 %v1482, %v1810
      %1812 = vmatmul.bf16.gmra.mxu0 %v1204
      %v1813 = vpop.f32.mrf.mxu0
      %v1814 = vadd.f32 %v1485, %v1813
      %v1815 = vpop.f32.mrf.mxu0
      %v1816 = vadd.f32 %v1487, %v1815
      %1817 = vmatmul.bf16.gmra.mxu0 %v1207
      %v1818 = vpop.f32.mrf.mxu0
      %v1819 = vadd.f32 %v1490, %v1818
      %v1820 = vpop.f32.mrf.mxu0
      %v1821 = vadd.f32 %v1492, %v1820
      %1822 = vmatmul.bf16.gmra.mxu0 %v1210
      %v1823 = vpop.f32.mrf.mxu0
      %v1824 = vadd.f32 %v1495, %v1823
      %v1825 = vpop.f32.mrf.mxu0
      %v1826 = vadd.f32 %v1497, %v1825
      %1827 = vmatmul.bf16.gmra.mxu0 %v1213
      %v1828 = vpop.f32.mrf.mxu0
      %v1829 = vadd.f32 %v1500, %v1828
      %v1830 = vpop.f32.mrf.mxu0
      %v1831 = vadd.f32 %v1502, %v1830
      %1832 = vmatmul.bf16.gmra.mxu0 %v1216
      %v1833 = vpop.f32.mrf.mxu0
      %v1834 = vadd.f32 %v1505, %v1833
      %v1835 = vpop.f32.mrf.mxu0
      %v1836 = vadd.f32 %v1507, %v1835
      %1837 = vmatmul.bf16.gmra.mxu0 %v1219
      %v1838 = vpop.f32.mrf.mxu0
      %v1839 = vadd.f32 %v1510, %v1838
      %v1840 = vpop.f32.mrf.mxu0
      %v1841 = vadd.f32 %v1512, %v1840
      %1842 = vmatmul.bf16.gmra.mxu0 %v1222
      %v1843 = vpop.f32.mrf.mxu0
      %v1844 = vadd.f32 %v1515, %v1843
      %v1845 = vpop.f32.mrf.mxu0
      %v1846 = vadd.f32 %v1517, %v1845
      %1847 = vmatmul.bf16.gmra.mxu0 %v1225
      %v1848 = vpop.f32.mrf.mxu0
      %v1849 = vadd.f32 %v1520, %v1848
      %v1850 = vpop.f32.mrf.mxu0
      %v1851 = vadd.f32 %v1522, %v1850
      %1852 = vmatmul.bf16.gmra.mxu0 %v1228
      %v1853 = vpop.f32.mrf.mxu0
      %v1854 = vadd.f32 %v1525, %v1853
      %v1855 = vpop.f32.mrf.mxu0
      %v1856 = vadd.f32 %v1527, %v1855
      %1857 = vmatmul.bf16.gmra.mxu0 %v1231
      %v1858 = vpop.f32.mrf.mxu0
      %v1859 = vadd.f32 %v1530, %v1858
      %v1860 = vpop.f32.mrf.mxu0
      %v1861 = vadd.f32 %v1532, %v1860
      %1862 = vmatmul.bf16.gmra.mxu0 %v1234
      %v1863 = vpop.f32.mrf.mxu0
      %v1864 = vadd.f32 %v1535, %v1863
      %v1865 = vpop.f32.mrf.mxu0
      %v1866 = vadd.f32 %v1537, %v1865
      %1867 = vmatmul.bf16.gmra.mxu0 %v1237
      %v1868 = vpop.f32.mrf.mxu0
      %v1869 = vadd.f32 %v1540, %v1868
      %v1870 = vpop.f32.mrf.mxu0
      %v1871 = vadd.f32 %v1542, %v1870
      %1872 = vmatmul.bf16.gmra.mxu0 %v1240
      %v1873 = vpop.f32.mrf.mxu0
      %v1874 = vadd.f32 %v1545, %v1873
      %v1875 = vpop.f32.mrf.mxu0
      %v1876 = vadd.f32 %v1547, %v1875
      %1877 = vmatmul.bf16.gmra.mxu0 %v1243
      %v1878 = vpop.f32.mrf.mxu0
      %v1879 = vadd.f32 %v1550, %v1878
      %v1880 = vpop.f32.mrf.mxu0
      %v1881 = vadd.f32 %v1552, %v1880
      %1882 = vmatmul.bf16.gmra.mxu0 %v1246
      %v1883 = vpop.f32.mrf.mxu0
      %v1884 = vadd.f32 %v1555, %v1883
      %v1885 = vpop.f32.mrf.mxu0
      %v1886 = vadd.f32 %v1557, %v1885
      %1887 = vmatmul.bf16.gmra.mxu0 %v1249
      %v1888 = vpop.f32.mrf.mxu0
      %v1889 = vadd.f32 %v1560, %v1888
      %v1890 = vpop.f32.mrf.mxu0
      %v1891 = vadd.f32 %v1562, %v1890
      %1892 = vmatmul.bf16.gmra.mxu0 %v1252
      %v1893 = vpop.f32.mrf.mxu0
      %v1894 = vadd.f32 %v1565, %v1893
      %v1895 = vpop.f32.mrf.mxu0
      %v1896 = vadd.f32 %v1567, %v1895
      %1897 = vmatmul.bf16.gmra.mxu0 %v1255
      %v1898 = vpop.f32.mrf.mxu0
      %v1899 = vadd.f32 %v1570, %v1898
      %v1900 = vpop.f32.mrf.mxu0
      %v1901 = vadd.f32 %v1572, %v1900
      %1902 = vmatmul.bf16.gmra.mxu0 %v1258
      %v1903 = vpop.f32.mrf.mxu0
      %v1904 = vadd.f32 %v1575, %v1903
      %v1905 = vpop.f32.mrf.mxu0
      %v1906 = vadd.f32 %v1577, %v1905
      %1907 = vmatmul.bf16.gmra.mxu0 %v1261
      %v1908 = vpop.f32.mrf.mxu0
      %v1909 = vadd.f32 %v1580, %v1908
      %v1910 = vpop.f32.mrf.mxu0
      %v1911 = vadd.f32 %v1582, %v1910
      %1912 = vmatmul.bf16.gmra.mxu0 %v1264
      %v1913 = vpop.f32.mrf.mxu0
      %v1914 = vadd.f32 %v1585, %v1913
      %v1915 = vpop.f32.mrf.mxu0
      %v1916 = vadd.f32 %v1587, %v1915
      %1917 = vmatmul.bf16.gmra.mxu0 %v1267
      %v1918 = vpop.f32.mrf.mxu0
      %v1919 = vadd.f32 %v1590, %v1918
      %v1920 = vpop.f32.mrf.mxu0
      %v1921 = vadd.f32 %v1592, %v1920
      %1922 = vmatmul.bf16.gmra.mxu0 %v1270
      %v1923 = vpop.f32.mrf.mxu0
      %v1924 = vadd.f32 %v1595, %v1923
      %v1925 = vpop.f32.mrf.mxu0
      %v1926 = vadd.f32 %v1597, %v1925
      %1927 = vmatmul.bf16.gmra.mxu0 %v1273
      %v1928 = vpop.f32.mrf.mxu0
      %v1929 = vadd.f32 %v1600, %v1928
      %v1930 = vpop.f32.mrf.mxu0
      %v1931 = vadd.f32 %v1602, %v1930
      %1932 = vdwg.mxu0
      %1933 = vmatpush.bf16.msra.mxu0 %v957
      %1934 = vmatpush.bf16.msra.mxu0 %v951
      %1935 = vmatpush.bf16.msra.mxu0 %v945
      %1936 = vmatpush.bf16.msra.mxu0 %v939
      %1937 = vmatpush.bf16.msra.mxu0 %v933
      %1938 = vmatpush.bf16.msra.mxu0 %v927
      %1939 = vmatpush.bf16.msra.mxu0 %v921
      %1940 = vmatpush.bf16.msra.mxu0 %v915
      %1941 = vmatmul.bf16.gmra.mxu0 %v436
      %v1942 = vpop.f32.mrf.mxu0
      %v1943 = vadd.f32 %v651, %v1942
      %v1944 = vpop.f32.mrf.mxu0
      %v1945 = vadd.f32 %v651, %v1944
      %1946 = vmatmul.bf16.gmra.mxu0 %v438
      %v1947 = vpop.f32.mrf.mxu0
      %v1948 = vadd.f32 %v651, %v1947
      %v1949 = vpop.f32.mrf.mxu0
      %v1950 = vadd.f32 %v651, %v1949
      %1951 = vmatmul.bf16.gmra.mxu0 %v440
      %v1952 = vpop.f32.mrf.mxu0
      %v1953 = vadd.f32 %v651, %v1952
      %v1954 = vpop.f32.mrf.mxu0
      %v1955 = vadd.f32 %v651, %v1954
      %1956 = vmatmul.bf16.gmra.mxu0 %v442
      %v1957 = vpop.f32.mrf.mxu0
      %v1958 = vadd.f32 %v651, %v1957
      %v1959 = vpop.f32.mrf.mxu0
      %v1960 = vadd.f32 %v651, %v1959
      %1961 = vmatmul.bf16.gmra.mxu0 %v444
      %v1962 = vpop.f32.mrf.mxu0
      %v1963 = vadd.f32 %v651, %v1962
      %v1964 = vpop.f32.mrf.mxu0
      %v1965 = vadd.f32 %v651, %v1964
      %1966 = vmatmul.bf16.gmra.mxu0 %v446
      %v1967 = vpop.f32.mrf.mxu0
      %v1968 = vadd.f32 %v651, %v1967
      %v1969 = vpop.f32.mrf.mxu0
      %v1970 = vadd.f32 %v651, %v1969
      %1971 = vmatmul.bf16.gmra.mxu0 %v448
      %v1972 = vpop.f32.mrf.mxu0
      %v1973 = vadd.f32 %v651, %v1972
      %v1974 = vpop.f32.mrf.mxu0
      %v1975 = vadd.f32 %v651, %v1974
      %1976 = vmatmul.bf16.gmra.mxu0 %v450
      %v1977 = vpop.f32.mrf.mxu0
      %v1978 = vadd.f32 %v651, %v1977
      %v1979 = vpop.f32.mrf.mxu0
      %v1980 = vadd.f32 %v651, %v1979
      %1981 = vmatmul.bf16.gmra.mxu0 %v452
      %v1982 = vpop.f32.mrf.mxu0
      %v1983 = vadd.f32 %v651, %v1982
      %v1984 = vpop.f32.mrf.mxu0
      %v1985 = vadd.f32 %v651, %v1984
      %1986 = vmatmul.bf16.gmra.mxu0 %v454
      %v1987 = vpop.f32.mrf.mxu0
      %v1988 = vadd.f32 %v651, %v1987
      %v1989 = vpop.f32.mrf.mxu0
      %v1990 = vadd.f32 %v651, %v1989
      %1991 = vmatmul.bf16.gmra.mxu0 %v456
      %v1992 = vpop.f32.mrf.mxu0
      %v1993 = vadd.f32 %v651, %v1992
      %v1994 = vpop.f32.mrf.mxu0
      %v1995 = vadd.f32 %v651, %v1994
      %1996 = vmatmul.bf16.gmra.mxu0 %v458
      %v1997 = vpop.f32.mrf.mxu0
      %v1998 = vadd.f32 %v651, %v1997
      %v1999 = vpop.f32.mrf.mxu0
      %v2000 = vadd.f32 %v651, %v1999
      %2001 = vmatmul.bf16.gmra.mxu0 %v460
      %v2002 = vpop.f32.mrf.mxu0
      %v2003 = vadd.f32 %v651, %v2002
      %v2004 = vpop.f32.mrf.mxu0
      %v2005 = vadd.f32 %v651, %v2004
      %2006 = vmatmul.bf16.gmra.mxu0 %v462
      %v2007 = vpop.f32.mrf.mxu0
      %v2008 = vadd.f32 %v651, %v2007
      %v2009 = vpop.f32.mrf.mxu0
      %v2010 = vadd.f32 %v651, %v2009
      %2011 = vmatmul.bf16.gmra.mxu0 %v464
      %v2012 = vpop.f32.mrf.mxu0
      %v2013 = vadd.f32 %v651, %v2012
      %v2014 = vpop.f32.mrf.mxu0
      %v2015 = vadd.f32 %v651, %v2014
      %2016 = vmatmul.bf16.gmra.mxu0 %v466
      %v2017 = vpop.f32.mrf.mxu0
      %v2018 = vadd.f32 %v651, %v2017
      %v2019 = vpop.f32.mrf.mxu0
      %v2020 = vadd.f32 %v651, %v2019
      %2021 = vmatmul.bf16.gmra.mxu0 %v468
      %v2022 = vpop.f32.mrf.mxu0
      %v2023 = vadd.f32 %v651, %v2022
      %v2024 = vpop.f32.mrf.mxu0
      %v2025 = vadd.f32 %v651, %v2024
      %2026 = vmatmul.bf16.gmra.mxu0 %v470
      %v2027 = vpop.f32.mrf.mxu0
      %v2028 = vadd.f32 %v651, %v2027
      %v2029 = vpop.f32.mrf.mxu0
      %v2030 = vadd.f32 %v651, %v2029
      %2031 = vmatmul.bf16.gmra.mxu0 %v472
      %v2032 = vpop.f32.mrf.mxu0
      %v2033 = vadd.f32 %v651, %v2032
      %v2034 = vpop.f32.mrf.mxu0
      %v2035 = vadd.f32 %v651, %v2034
      %2036 = vmatmul.bf16.gmra.mxu0 %v474
      %v2037 = vpop.f32.mrf.mxu0
      %v2038 = vadd.f32 %v651, %v2037
      %v2039 = vpop.f32.mrf.mxu0
      %v2040 = vadd.f32 %v651, %v2039
      %2041 = vmatmul.bf16.gmra.mxu0 %v476
      %v2042 = vpop.f32.mrf.mxu0
      %v2043 = vadd.f32 %v651, %v2042
      %v2044 = vpop.f32.mrf.mxu0
      %v2045 = vadd.f32 %v651, %v2044
      %2046 = vmatmul.bf16.gmra.mxu0 %v478
      %v2047 = vpop.f32.mrf.mxu0
      %v2048 = vadd.f32 %v651, %v2047
      %v2049 = vpop.f32.mrf.mxu0
      %v2050 = vadd.f32 %v651, %v2049
      %2051 = vmatmul.bf16.gmra.mxu0 %v480
      %v2052 = vpop.f32.mrf.mxu0
      %v2053 = vadd.f32 %v651, %v2052
      %v2054 = vpop.f32.mrf.mxu0
      %v2055 = vadd.f32 %v651, %v2054
      %2056 = vmatmul.bf16.gmra.mxu0 %v482
      %v2057 = vpop.f32.mrf.mxu0
      %v2058 = vadd.f32 %v651, %v2057
      %v2059 = vpop.f32.mrf.mxu0
      %v2060 = vadd.f32 %v651, %v2059
      %2061 = vmatmul.bf16.gmra.mxu0 %v484
      %v2062 = vpop.f32.mrf.mxu0
      %v2063 = vadd.f32 %v651, %v2062
      %v2064 = vpop.f32.mrf.mxu0
      %v2065 = vadd.f32 %v651, %v2064
      %2066 = vmatmul.bf16.gmra.mxu0 %v486
      %v2067 = vpop.f32.mrf.mxu0
      %v2068 = vadd.f32 %v651, %v2067
      %v2069 = vpop.f32.mrf.mxu0
      %v2070 = vadd.f32 %v651, %v2069
      %2071 = vmatmul.bf16.gmra.mxu0 %v488
      %v2072 = vpop.f32.mrf.mxu0
      %v2073 = vadd.f32 %v651, %v2072
      %v2074 = vpop.f32.mrf.mxu0
      %v2075 = vadd.f32 %v651, %v2074
      %2076 = vmatmul.bf16.gmra.mxu0 %v490
      %v2077 = vpop.f32.mrf.mxu0
      %v2078 = vadd.f32 %v651, %v2077
      %v2079 = vpop.f32.mrf.mxu0
      %v2080 = vadd.f32 %v651, %v2079
      %2081 = vmatmul.bf16.gmra.mxu0 %v492
      %v2082 = vpop.f32.mrf.mxu0
      %v2083 = vadd.f32 %v651, %v2082
      %v2084 = vpop.f32.mrf.mxu0
      %v2085 = vadd.f32 %v651, %v2084
      %2086 = vmatmul.bf16.gmra.mxu0 %v494
      %v2087 = vpop.f32.mrf.mxu0
      %v2088 = vadd.f32 %v651, %v2087
      %v2089 = vpop.f32.mrf.mxu0
      %v2090 = vadd.f32 %v651, %v2089
      %2091 = vmatmul.bf16.gmra.mxu0 %v496
      %v2092 = vpop.f32.mrf.mxu0
      %v2093 = vadd.f32 %v651, %v2092
      %v2094 = vpop.f32.mrf.mxu0
      %v2095 = vadd.f32 %v651, %v2094
      %2096 = vmatmul.bf16.gmra.mxu0 %v498
      %v2097 = vpop.f32.mrf.mxu0
      %v2098 = vadd.f32 %v651, %v2097
      %v2099 = vpop.f32.mrf.mxu0
      %v2100 = vadd.f32 %v651, %v2099
      %2101 = vmatmul.bf16.gmra.mxu0 %v500
      %v2102 = vpop.f32.mrf.mxu0
      %v2103 = vadd.f32 %v651, %v2102
      %v2104 = vpop.f32.mrf.mxu0
      %v2105 = vadd.f32 %v651, %v2104
      %2106 = vmatmul.bf16.gmra.mxu0 %v502
      %v2107 = vpop.f32.mrf.mxu0
      %v2108 = vadd.f32 %v651, %v2107
      %v2109 = vpop.f32.mrf.mxu0
      %v2110 = vadd.f32 %v651, %v2109
      %2111 = vmatmul.bf16.gmra.mxu0 %v504
      %v2112 = vpop.f32.mrf.mxu0
      %v2113 = vadd.f32 %v651, %v2112
      %v2114 = vpop.f32.mrf.mxu0
      %v2115 = vadd.f32 %v651, %v2114
      %2116 = vmatmul.bf16.gmra.mxu0 %v506
      %v2117 = vpop.f32.mrf.mxu0
      %v2118 = vadd.f32 %v651, %v2117
      %v2119 = vpop.f32.mrf.mxu0
      %v2120 = vadd.f32 %v651, %v2119
      %2121 = vmatmul.bf16.gmra.mxu0 %v508
      %v2122 = vpop.f32.mrf.mxu0
      %v2123 = vadd.f32 %v651, %v2122
      %v2124 = vpop.f32.mrf.mxu0
      %v2125 = vadd.f32 %v651, %v2124
      %2126 = vmatmul.bf16.gmra.mxu0 %v510
      %v2127 = vpop.f32.mrf.mxu0
      %v2128 = vadd.f32 %v651, %v2127
      %v2129 = vpop.f32.mrf.mxu0
      %v2130 = vadd.f32 %v651, %v2129
      %2131 = vmatmul.bf16.gmra.mxu0 %v512
      %v2132 = vpop.f32.mrf.mxu0
      %v2133 = vadd.f32 %v651, %v2132
      %v2134 = vpop.f32.mrf.mxu0
      %v2135 = vadd.f32 %v651, %v2134
      %2136 = vmatmul.bf16.gmra.mxu0 %v514
      %v2137 = vpop.f32.mrf.mxu0
      %v2138 = vadd.f32 %v651, %v2137
      %v2139 = vpop.f32.mrf.mxu0
      %v2140 = vadd.f32 %v651, %v2139
      %2141 = vmatmul.bf16.gmra.mxu0 %v516
      %v2142 = vpop.f32.mrf.mxu0
      %v2143 = vadd.f32 %v651, %v2142
      %v2144 = vpop.f32.mrf.mxu0
      %v2145 = vadd.f32 %v651, %v2144
      %2146 = vmatmul.bf16.gmra.mxu0 %v518
      %v2147 = vpop.f32.mrf.mxu0
      %v2148 = vadd.f32 %v651, %v2147
      %v2149 = vpop.f32.mrf.mxu0
      %v2150 = vadd.f32 %v651, %v2149
      %2151 = vmatmul.bf16.gmra.mxu0 %v520
      %v2152 = vpop.f32.mrf.mxu0
      %v2153 = vadd.f32 %v651, %v2152
      %v2154 = vpop.f32.mrf.mxu0
      %v2155 = vadd.f32 %v651, %v2154
      %2156 = vmatmul.bf16.gmra.mxu0 %v522
      %v2157 = vpop.f32.mrf.mxu0
      %v2158 = vadd.f32 %v651, %v2157
      %v2159 = vpop.f32.mrf.mxu0
      %v2160 = vadd.f32 %v651, %v2159
      %2161 = vmatmul.bf16.gmra.mxu0 %v524
      %v2162 = vpop.f32.mrf.mxu0
      %v2163 = vadd.f32 %v651, %v2162
      %v2164 = vpop.f32.mrf.mxu0
      %v2165 = vadd.f32 %v651, %v2164
      %2166 = vmatmul.bf16.gmra.mxu0 %v526
      %v2167 = vpop.f32.mrf.mxu0
      %v2168 = vadd.f32 %v651, %v2167
      %v2169 = vpop.f32.mrf.mxu0
      %v2170 = vadd.f32 %v651, %v2169
      %2171 = vmatmul.bf16.gmra.mxu0 %v528
      %v2172 = vpop.f32.mrf.mxu0
      %v2173 = vadd.f32 %v651, %v2172
      %v2174 = vpop.f32.mrf.mxu0
      %v2175 = vadd.f32 %v651, %v2174
      %2176 = vmatmul.bf16.gmra.mxu0 %v530
      %v2177 = vpop.f32.mrf.mxu0
      %v2178 = vadd.f32 %v651, %v2177
      %v2179 = vpop.f32.mrf.mxu0
      %v2180 = vadd.f32 %v651, %v2179
      %2181 = vmatmul.bf16.gmra.mxu0 %v532
      %v2182 = vpop.f32.mrf.mxu0
      %v2183 = vadd.f32 %v651, %v2182
      %v2184 = vpop.f32.mrf.mxu0
      %v2185 = vadd.f32 %v651, %v2184
      %2186 = vmatmul.bf16.gmra.mxu0 %v534
      %v2187 = vpop.f32.mrf.mxu0
      %v2188 = vadd.f32 %v651, %v2187
      %v2189 = vpop.f32.mrf.mxu0
      %v2190 = vadd.f32 %v651, %v2189
      %2191 = vmatmul.bf16.gmra.mxu0 %v536
      %v2192 = vpop.f32.mrf.mxu0
      %v2193 = vadd.f32 %v651, %v2192
      %v2194 = vpop.f32.mrf.mxu0
      %v2195 = vadd.f32 %v651, %v2194
      %2196 = vmatmul.bf16.gmra.mxu0 %v538
      %v2197 = vpop.f32.mrf.mxu0
      %v2198 = vadd.f32 %v651, %v2197
      %v2199 = vpop.f32.mrf.mxu0
      %v2200 = vadd.f32 %v651, %v2199
      %2201 = vmatmul.bf16.gmra.mxu0 %v540
      %v2202 = vpop.f32.mrf.mxu0
      %v2203 = vadd.f32 %v651, %v2202
      %v2204 = vpop.f32.mrf.mxu0
      %v2205 = vadd.f32 %v651, %v2204
      %2206 = vmatmul.bf16.gmra.mxu0 %v542
      %v2207 = vpop.f32.mrf.mxu0
      %v2208 = vadd.f32 %v651, %v2207
      %v2209 = vpop.f32.mrf.mxu0
      %v2210 = vadd.f32 %v651, %v2209
      %2211 = vmatmul.bf16.gmra.mxu0 %v544
      %v2212 = vpop.f32.mrf.mxu0
      %v2213 = vadd.f32 %v651, %v2212
      %v2214 = vpop.f32.mrf.mxu0
      %v2215 = vadd.f32 %v651, %v2214
      %2216 = vmatmul.bf16.gmra.mxu0 %v546
      %v2217 = vpop.f32.mrf.mxu0
      %v2218 = vadd.f32 %v651, %v2217
      %v2219 = vpop.f32.mrf.mxu0
      %v2220 = vadd.f32 %v651, %v2219
      %2221 = vmatmul.bf16.gmra.mxu0 %v548
      %v2222 = vpop.f32.mrf.mxu0
      %v2223 = vadd.f32 %v651, %v2222
      %v2224 = vpop.f32.mrf.mxu0
      %v2225 = vadd.f32 %v651, %v2224
      %2226 = vmatmul.bf16.gmra.mxu0 %v550
      %v2227 = vpop.f32.mrf.mxu0
      %v2228 = vadd.f32 %v651, %v2227
      %v2229 = vpop.f32.mrf.mxu0
      %v2230 = vadd.f32 %v651, %v2229
      %2231 = vmatmul.bf16.gmra.mxu0 %v552
      %v2232 = vpop.f32.mrf.mxu0
      %v2233 = vadd.f32 %v651, %v2232
      %v2234 = vpop.f32.mrf.mxu0
      %v2235 = vadd.f32 %v651, %v2234
      %2236 = vmatmul.bf16.gmra.mxu0 %v554
      %v2237 = vpop.f32.mrf.mxu0
      %v2238 = vadd.f32 %v651, %v2237
      %v2239 = vpop.f32.mrf.mxu0
      %v2240 = vadd.f32 %v651, %v2239
      %2241 = vmatmul.bf16.gmra.mxu0 %v556
      %v2242 = vpop.f32.mrf.mxu0
      %v2243 = vadd.f32 %v651, %v2242
      %v2244 = vpop.f32.mrf.mxu0
      %v2245 = vadd.f32 %v651, %v2244
      %2246 = vmatmul.bf16.gmra.mxu0 %v558
      %v2247 = vpop.f32.mrf.mxu0
      %v2248 = vadd.f32 %v651, %v2247
      %v2249 = vpop.f32.mrf.mxu0
      %v2250 = vadd.f32 %v651, %v2249
      %2251 = vmatmul.bf16.gmra.mxu0 %v560
      %v2252 = vpop.f32.mrf.mxu0
      %v2253 = vadd.f32 %v651, %v2252
      %v2254 = vpop.f32.mrf.mxu0
      %v2255 = vadd.f32 %v651, %v2254
      %2256 = vmatmul.bf16.gmra.mxu0 %v562
      %v2257 = vpop.f32.mrf.mxu0
      %v2258 = vadd.f32 %v651, %v2257
      %v2259 = vpop.f32.mrf.mxu0
      %v2260 = vadd.f32 %v651, %v2259
      %2261 = vdwg.mxu0
      %2262 = vmatpush.bf16.msra.mxu0 0
      %2263 = vmatpush.bf16.msra.mxu0 0
      %2264 = vmatpush.bf16.msra.mxu0 %v993
      %2265 = vmatpush.bf16.msra.mxu0 %v987
      %2266 = vmatpush.bf16.msra.mxu0 %v981
      %2267 = vmatpush.bf16.msra.mxu0 %v975
      %2268 = vmatpush.bf16.msra.mxu0 %v969
      %2269 = vmatpush.bf16.msra.mxu0 %v963
      %2270 = vmatmul.bf16.gmra.mxu0 %v1084
      %v2271 = vpop.f32.mrf.mxu0
      %v2272 = vadd.f32 %v1943, %v2271
      %v2273 = vpop.f32.mrf.mxu0
      %v2274 = vadd.f32 %v1945, %v2273
      %2275 = vmatmul.bf16.gmra.mxu0 %v1087
      %v2276 = vpop.f32.mrf.mxu0
      %v2277 = vadd.f32 %v1948, %v2276
      %v2278 = vpop.f32.mrf.mxu0
      %v2279 = vadd.f32 %v1950, %v2278
      %2280 = vmatmul.bf16.gmra.mxu0 %v1090
      %v2281 = vpop.f32.mrf.mxu0
      %v2282 = vadd.f32 %v1953, %v2281
      %v2283 = vpop.f32.mrf.mxu0
      %v2284 = vadd.f32 %v1955, %v2283
      %2285 = vmatmul.bf16.gmra.mxu0 %v1093
      %v2286 = vpop.f32.mrf.mxu0
      %v2287 = vadd.f32 %v1958, %v2286
      %v2288 = vpop.f32.mrf.mxu0
      %v2289 = vadd.f32 %v1960, %v2288
      %2290 = vmatmul.bf16.gmra.mxu0 %v1096
      %v2291 = vpop.f32.mrf.mxu0
      %v2292 = vadd.f32 %v1963, %v2291
      %v2293 = vpop.f32.mrf.mxu0
      %v2294 = vadd.f32 %v1965, %v2293
      %2295 = vmatmul.bf16.gmra.mxu0 %v1099
      %v2296 = vpop.f32.mrf.mxu0
      %v2297 = vadd.f32 %v1968, %v2296
      %v2298 = vpop.f32.mrf.mxu0
      %v2299 = vadd.f32 %v1970, %v2298
      %2300 = vmatmul.bf16.gmra.mxu0 %v1102
      %v2301 = vpop.f32.mrf.mxu0
      %v2302 = vadd.f32 %v1973, %v2301
      %v2303 = vpop.f32.mrf.mxu0
      %v2304 = vadd.f32 %v1975, %v2303
      %2305 = vmatmul.bf16.gmra.mxu0 %v1105
      %v2306 = vpop.f32.mrf.mxu0
      %v2307 = vadd.f32 %v1978, %v2306
      %v2308 = vpop.f32.mrf.mxu0
      %v2309 = vadd.f32 %v1980, %v2308
      %2310 = vmatmul.bf16.gmra.mxu0 %v1108
      %v2311 = vpop.f32.mrf.mxu0
      %v2312 = vadd.f32 %v1983, %v2311
      %v2313 = vpop.f32.mrf.mxu0
      %v2314 = vadd.f32 %v1985, %v2313
      %2315 = vmatmul.bf16.gmra.mxu0 %v1111
      %v2316 = vpop.f32.mrf.mxu0
      %v2317 = vadd.f32 %v1988, %v2316
      %v2318 = vpop.f32.mrf.mxu0
      %v2319 = vadd.f32 %v1990, %v2318
      %2320 = vmatmul.bf16.gmra.mxu0 %v1114
      %v2321 = vpop.f32.mrf.mxu0
      %v2322 = vadd.f32 %v1993, %v2321
      %v2323 = vpop.f32.mrf.mxu0
      %v2324 = vadd.f32 %v1995, %v2323
      %2325 = vmatmul.bf16.gmra.mxu0 %v1117
      %v2326 = vpop.f32.mrf.mxu0
      %v2327 = vadd.f32 %v1998, %v2326
      %v2328 = vpop.f32.mrf.mxu0
      %v2329 = vadd.f32 %v2000, %v2328
      %2330 = vmatmul.bf16.gmra.mxu0 %v1120
      %v2331 = vpop.f32.mrf.mxu0
      %v2332 = vadd.f32 %v2003, %v2331
      %v2333 = vpop.f32.mrf.mxu0
      %v2334 = vadd.f32 %v2005, %v2333
      %2335 = vmatmul.bf16.gmra.mxu0 %v1123
      %v2336 = vpop.f32.mrf.mxu0
      %v2337 = vadd.f32 %v2008, %v2336
      %v2338 = vpop.f32.mrf.mxu0
      %v2339 = vadd.f32 %v2010, %v2338
      %2340 = vmatmul.bf16.gmra.mxu0 %v1126
      %v2341 = vpop.f32.mrf.mxu0
      %v2342 = vadd.f32 %v2013, %v2341
      %v2343 = vpop.f32.mrf.mxu0
      %v2344 = vadd.f32 %v2015, %v2343
      %2345 = vmatmul.bf16.gmra.mxu0 %v1129
      %v2346 = vpop.f32.mrf.mxu0
      %v2347 = vadd.f32 %v2018, %v2346
      %v2348 = vpop.f32.mrf.mxu0
      %v2349 = vadd.f32 %v2020, %v2348
      %2350 = vmatmul.bf16.gmra.mxu0 %v1132
      %v2351 = vpop.f32.mrf.mxu0
      %v2352 = vadd.f32 %v2023, %v2351
      %v2353 = vpop.f32.mrf.mxu0
      %v2354 = vadd.f32 %v2025, %v2353
      %2355 = vmatmul.bf16.gmra.mxu0 %v1135
      %v2356 = vpop.f32.mrf.mxu0
      %v2357 = vadd.f32 %v2028, %v2356
      %v2358 = vpop.f32.mrf.mxu0
      %v2359 = vadd.f32 %v2030, %v2358
      %2360 = vmatmul.bf16.gmra.mxu0 %v1138
      %v2361 = vpop.f32.mrf.mxu0
      %v2362 = vadd.f32 %v2033, %v2361
      %v2363 = vpop.f32.mrf.mxu0
      %v2364 = vadd.f32 %v2035, %v2363
      %2365 = vmatmul.bf16.gmra.mxu0 %v1141
      %v2366 = vpop.f32.mrf.mxu0
      %v2367 = vadd.f32 %v2038, %v2366
      %v2368 = vpop.f32.mrf.mxu0
      %v2369 = vadd.f32 %v2040, %v2368
      %2370 = vmatmul.bf16.gmra.mxu0 %v1144
      %v2371 = vpop.f32.mrf.mxu0
      %v2372 = vadd.f32 %v2043, %v2371
      %v2373 = vpop.f32.mrf.mxu0
      %v2374 = vadd.f32 %v2045, %v2373
      %2375 = vmatmul.bf16.gmra.mxu0 %v1147
      %v2376 = vpop.f32.mrf.mxu0
      %v2377 = vadd.f32 %v2048, %v2376
      %v2378 = vpop.f32.mrf.mxu0
      %v2379 = vadd.f32 %v2050, %v2378
      %2380 = vmatmul.bf16.gmra.mxu0 %v1150
      %v2381 = vpop.f32.mrf.mxu0
      %v2382 = vadd.f32 %v2053, %v2381
      %v2383 = vpop.f32.mrf.mxu0
      %v2384 = vadd.f32 %v2055, %v2383
      %2385 = vmatmul.bf16.gmra.mxu0 %v1153
      %v2386 = vpop.f32.mrf.mxu0
      %v2387 = vadd.f32 %v2058, %v2386
      %v2388 = vpop.f32.mrf.mxu0
      %v2389 = vadd.f32 %v2060, %v2388
      %2390 = vmatmul.bf16.gmra.mxu0 %v1156
      %v2391 = vpop.f32.mrf.mxu0
      %v2392 = vadd.f32 %v2063, %v2391
      %v2393 = vpop.f32.mrf.mxu0
      %v2394 = vadd.f32 %v2065, %v2393
      %2395 = vmatmul.bf16.gmra.mxu0 %v1159
      %v2396 = vpop.f32.mrf.mxu0
      %v2397 = vadd.f32 %v2068, %v2396
      %v2398 = vpop.f32.mrf.mxu0
      %v2399 = vadd.f32 %v2070, %v2398
      %2400 = vmatmul.bf16.gmra.mxu0 %v1162
      %v2401 = vpop.f32.mrf.mxu0
      %v2402 = vadd.f32 %v2073, %v2401
      %v2403 = vpop.f32.mrf.mxu0
      %v2404 = vadd.f32 %v2075, %v2403
      %2405 = vmatmul.bf16.gmra.mxu0 %v1165
      %v2406 = vpop.f32.mrf.mxu0
      %v2407 = vadd.f32 %v2078, %v2406
      %v2408 = vpop.f32.mrf.mxu0
      %v2409 = vadd.f32 %v2080, %v2408
      %2410 = vmatmul.bf16.gmra.mxu0 %v1168
      %v2411 = vpop.f32.mrf.mxu0
      %v2412 = vadd.f32 %v2083, %v2411
      %v2413 = vpop.f32.mrf.mxu0
      %v2414 = vadd.f32 %v2085, %v2413
      %2415 = vmatmul.bf16.gmra.mxu0 %v1171
      %v2416 = vpop.f32.mrf.mxu0
      %v2417 = vadd.f32 %v2088, %v2416
      %v2418 = vpop.f32.mrf.mxu0
      %v2419 = vadd.f32 %v2090, %v2418
      %2420 = vmatmul.bf16.gmra.mxu0 %v1174
      %v2421 = vpop.f32.mrf.mxu0
      %v2422 = vadd.f32 %v2093, %v2421
      %v2423 = vpop.f32.mrf.mxu0
      %v2424 = vadd.f32 %v2095, %v2423
      %2425 = vmatmul.bf16.gmra.mxu0 %v1177
      %v2426 = vpop.f32.mrf.mxu0
      %v2427 = vadd.f32 %v2098, %v2426
      %v2428 = vpop.f32.mrf.mxu0
      %v2429 = vadd.f32 %v2100, %v2428
      %2430 = vmatmul.bf16.gmra.mxu0 %v1180
      %v2431 = vpop.f32.mrf.mxu0
      %v2432 = vadd.f32 %v2103, %v2431
      %v2433 = vpop.f32.mrf.mxu0
      %v2434 = vadd.f32 %v2105, %v2433
      %2435 = vmatmul.bf16.gmra.mxu0 %v1183
      %v2436 = vpop.f32.mrf.mxu0
      %v2437 = vadd.f32 %v2108, %v2436
      %v2438 = vpop.f32.mrf.mxu0
      %v2439 = vadd.f32 %v2110, %v2438
      %2440 = vmatmul.bf16.gmra.mxu0 %v1186
      %v2441 = vpop.f32.mrf.mxu0
      %v2442 = vadd.f32 %v2113, %v2441
      %v2443 = vpop.f32.mrf.mxu0
      %v2444 = vadd.f32 %v2115, %v2443
      %2445 = vmatmul.bf16.gmra.mxu0 %v1189
      %v2446 = vpop.f32.mrf.mxu0
      %v2447 = vadd.f32 %v2118, %v2446
      %v2448 = vpop.f32.mrf.mxu0
      %v2449 = vadd.f32 %v2120, %v2448
      %2450 = vmatmul.bf16.gmra.mxu0 %v1192
      %v2451 = vpop.f32.mrf.mxu0
      %v2452 = vadd.f32 %v2123, %v2451
      %v2453 = vpop.f32.mrf.mxu0
      %v2454 = vadd.f32 %v2125, %v2453
      %2455 = vmatmul.bf16.gmra.mxu0 %v1195
      %v2456 = vpop.f32.mrf.mxu0
      %v2457 = vadd.f32 %v2128, %v2456
      %v2458 = vpop.f32.mrf.mxu0
      %v2459 = vadd.f32 %v2130, %v2458
      %2460 = vmatmul.bf16.gmra.mxu0 %v1198
      %v2461 = vpop.f32.mrf.mxu0
      %v2462 = vadd.f32 %v2133, %v2461
      %v2463 = vpop.f32.mrf.mxu0
      %v2464 = vadd.f32 %v2135, %v2463
      %2465 = vmatmul.bf16.gmra.mxu0 %v1201
      %v2466 = vpop.f32.mrf.mxu0
      %v2467 = vadd.f32 %v2138, %v2466
      %v2468 = vpop.f32.mrf.mxu0
      %v2469 = vadd.f32 %v2140, %v2468
      %2470 = vmatmul.bf16.gmra.mxu0 %v1204
      %v2471 = vpop.f32.mrf.mxu0
      %v2472 = vadd.f32 %v2143, %v2471
      %v2473 = vpop.f32.mrf.mxu0
      %v2474 = vadd.f32 %v2145, %v2473
      %2475 = vmatmul.bf16.gmra.mxu0 %v1207
      %v2476 = vpop.f32.mrf.mxu0
      %v2477 = vadd.f32 %v2148, %v2476
      %v2478 = vpop.f32.mrf.mxu0
      %v2479 = vadd.f32 %v2150, %v2478
      %2480 = vmatmul.bf16.gmra.mxu0 %v1210
      %v2481 = vpop.f32.mrf.mxu0
      %v2482 = vadd.f32 %v2153, %v2481
      %v2483 = vpop.f32.mrf.mxu0
      %v2484 = vadd.f32 %v2155, %v2483
      %2485 = vmatmul.bf16.gmra.mxu0 %v1213
      %v2486 = vpop.f32.mrf.mxu0
      %v2487 = vadd.f32 %v2158, %v2486
      %v2488 = vpop.f32.mrf.mxu0
      %v2489 = vadd.f32 %v2160, %v2488
      %2490 = vmatmul.bf16.gmra.mxu0 %v1216
      %v2491 = vpop.f32.mrf.mxu0
      %v2492 = vadd.f32 %v2163, %v2491
      %v2493 = vpop.f32.mrf.mxu0
      %v2494 = vadd.f32 %v2165, %v2493
      %2495 = vmatmul.bf16.gmra.mxu0 %v1219
      %v2496 = vpop.f32.mrf.mxu0
      %v2497 = vadd.f32 %v2168, %v2496
      %v2498 = vpop.f32.mrf.mxu0
      %v2499 = vadd.f32 %v2170, %v2498
      %2500 = vmatmul.bf16.gmra.mxu0 %v1222
      %v2501 = vpop.f32.mrf.mxu0
      %v2502 = vadd.f32 %v2173, %v2501
      %v2503 = vpop.f32.mrf.mxu0
      %v2504 = vadd.f32 %v2175, %v2503
      %2505 = vmatmul.bf16.gmra.mxu0 %v1225
      %v2506 = vpop.f32.mrf.mxu0
      %v2507 = vadd.f32 %v2178, %v2506
      %v2508 = vpop.f32.mrf.mxu0
      %v2509 = vadd.f32 %v2180, %v2508
      %2510 = vmatmul.bf16.gmra.mxu0 %v1228
      %v2511 = vpop.f32.mrf.mxu0
      %v2512 = vadd.f32 %v2183, %v2511
      %v2513 = vpop.f32.mrf.mxu0
      %v2514 = vadd.f32 %v2185, %v2513
      %2515 = vmatmul.bf16.gmra.mxu0 %v1231
      %v2516 = vpop.f32.mrf.mxu0
      %v2517 = vadd.f32 %v2188, %v2516
      %v2518 = vpop.f32.mrf.mxu0
      %v2519 = vadd.f32 %v2190, %v2518
      %2520 = vmatmul.bf16.gmra.mxu0 %v1234
      %v2521 = vpop.f32.mrf.mxu0
      %v2522 = vadd.f32 %v2193, %v2521
      %v2523 = vpop.f32.mrf.mxu0
      %v2524 = vadd.f32 %v2195, %v2523
      %2525 = vmatmul.bf16.gmra.mxu0 %v1237
      %v2526 = vpop.f32.mrf.mxu0
      %v2527 = vadd.f32 %v2198, %v2526
      %v2528 = vpop.f32.mrf.mxu0
      %v2529 = vadd.f32 %v2200, %v2528
      %2530 = vmatmul.bf16.gmra.mxu0 %v1240
      %v2531 = vpop.f32.mrf.mxu0
      %v2532 = vadd.f32 %v2203, %v2531
      %v2533 = vpop.f32.mrf.mxu0
      %v2534 = vadd.f32 %v2205, %v2533
      %2535 = vmatmul.bf16.gmra.mxu0 %v1243
      %v2536 = vpop.f32.mrf.mxu0
      %v2537 = vadd.f32 %v2208, %v2536
      %v2538 = vpop.f32.mrf.mxu0
      %v2539 = vadd.f32 %v2210, %v2538
      %2540 = vmatmul.bf16.gmra.mxu0 %v1246
      %v2541 = vpop.f32.mrf.mxu0
      %v2542 = vadd.f32 %v2213, %v2541
      %v2543 = vpop.f32.mrf.mxu0
      %v2544 = vadd.f32 %v2215, %v2543
      %2545 = vmatmul.bf16.gmra.mxu0 %v1249
      %v2546 = vpop.f32.mrf.mxu0
      %v2547 = vadd.f32 %v2218, %v2546
      %v2548 = vpop.f32.mrf.mxu0
      %v2549 = vadd.f32 %v2220, %v2548
      %2550 = vmatmul.bf16.gmra.mxu0 %v1252
      %v2551 = vpop.f32.mrf.mxu0
      %v2552 = vadd.f32 %v2223, %v2551
      %v2553 = vpop.f32.mrf.mxu0
      %v2554 = vadd.f32 %v2225, %v2553
      %2555 = vmatmul.bf16.gmra.mxu0 %v1255
      %v2556 = vpop.f32.mrf.mxu0
      %v2557 = vadd.f32 %v2228, %v2556
      %v2558 = vpop.f32.mrf.mxu0
      %v2559 = vadd.f32 %v2230, %v2558
      %2560 = vmatmul.bf16.gmra.mxu0 %v1258
      %v2561 = vpop.f32.mrf.mxu0
      %v2562 = vadd.f32 %v2233, %v2561
      %v2563 = vpop.f32.mrf.mxu0
      %v2564 = vadd.f32 %v2235, %v2563
      %2565 = vmatmul.bf16.gmra.mxu0 %v1261
      %v2566 = vpop.f32.mrf.mxu0
      %v2567 = vadd.f32 %v2238, %v2566
      %v2568 = vpop.f32.mrf.mxu0
      %v2569 = vadd.f32 %v2240, %v2568
      %2570 = vmatmul.bf16.gmra.mxu0 %v1264
      %v2571 = vpop.f32.mrf.mxu0
      %v2572 = vadd.f32 %v2243, %v2571
      %v2573 = vpop.f32.mrf.mxu0
      %v2574 = vadd.f32 %v2245, %v2573
      %2575 = vmatmul.bf16.gmra.mxu0 %v1267
      %v2576 = vpop.f32.mrf.mxu0
      %v2577 = vadd.f32 %v2248, %v2576
      %v2578 = vpop.f32.mrf.mxu0
      %v2579 = vadd.f32 %v2250, %v2578
      %2580 = vmatmul.bf16.gmra.mxu0 %v1270
      %v2581 = vpop.f32.mrf.mxu0
      %v2582 = vadd.f32 %v2253, %v2581
      %v2583 = vpop.f32.mrf.mxu0
      %v2584 = vadd.f32 %v2255, %v2583
      %2585 = vmatmul.bf16.gmra.mxu0 %v1273
      %v2586 = vpop.f32.mrf.mxu0
      %v2587 = vadd.f32 %v2258, %v2586
      %v2588 = vpop.f32.mrf.mxu0
      %v2589 = vadd.f32 %v2260, %v2588
      %2590 = vdwg.mxu0
      %2591 = vmatpush.bf16.msra.mxu0 %v958
      %2592 = vmatpush.bf16.msra.mxu0 %v952
      %2593 = vmatpush.bf16.msra.mxu0 %v946
      %2594 = vmatpush.bf16.msra.mxu0 %v940
      %2595 = vmatpush.bf16.msra.mxu0 %v934
      %2596 = vmatpush.bf16.msra.mxu0 %v928
      %2597 = vmatpush.bf16.msra.mxu0 %v922
      %2598 = vmatpush.bf16.msra.mxu0 %v916
      %2599 = vmatmul.bf16.gmra.mxu0 %v436
      %v2600 = vpop.f32.mrf.mxu0
      %v2601 = vadd.f32 %v652, %v2600
      %v2602 = vpop.f32.mrf.mxu0
      %v2603 = vadd.f32 %v652, %v2602
      %2604 = vmatmul.bf16.gmra.mxu0 %v438
      %v2605 = vpop.f32.mrf.mxu0
      %v2606 = vadd.f32 %v652, %v2605
      %v2607 = vpop.f32.mrf.mxu0
      %v2608 = vadd.f32 %v652, %v2607
      %2609 = vmatmul.bf16.gmra.mxu0 %v440
      %v2610 = vpop.f32.mrf.mxu0
      %v2611 = vadd.f32 %v652, %v2610
      %v2612 = vpop.f32.mrf.mxu0
      %v2613 = vadd.f32 %v652, %v2612
      %2614 = vmatmul.bf16.gmra.mxu0 %v442
      %v2615 = vpop.f32.mrf.mxu0
      %v2616 = vadd.f32 %v652, %v2615
      %v2617 = vpop.f32.mrf.mxu0
      %v2618 = vadd.f32 %v652, %v2617
      %2619 = vmatmul.bf16.gmra.mxu0 %v444
      %v2620 = vpop.f32.mrf.mxu0
      %v2621 = vadd.f32 %v652, %v2620
      %v2622 = vpop.f32.mrf.mxu0
      %v2623 = vadd.f32 %v652, %v2622
      %2624 = vmatmul.bf16.gmra.mxu0 %v446
      %v2625 = vpop.f32.mrf.mxu0
      %v2626 = vadd.f32 %v652, %v2625
      %v2627 = vpop.f32.mrf.mxu0
      %v2628 = vadd.f32 %v652, %v2627
      %2629 = vmatmul.bf16.gmra.mxu0 %v448
      %v2630 = vpop.f32.mrf.mxu0
      %v2631 = vadd.f32 %v652, %v2630
      %v2632 = vpop.f32.mrf.mxu0
      %v2633 = vadd.f32 %v652, %v2632
      %2634 = vmatmul.bf16.gmra.mxu0 %v450
      %v2635 = vpop.f32.mrf.mxu0
      %v2636 = vadd.f32 %v652, %v2635
      %v2637 = vpop.f32.mrf.mxu0
      %v2638 = vadd.f32 %v652, %v2637
      %2639 = vmatmul.bf16.gmra.mxu0 %v452
      %v2640 = vpop.f32.mrf.mxu0
      %v2641 = vadd.f32 %v652, %v2640
      %v2642 = vpop.f32.mrf.mxu0
      %v2643 = vadd.f32 %v652, %v2642
      %2644 = vmatmul.bf16.gmra.mxu0 %v454
      %v2645 = vpop.f32.mrf.mxu0
      %v2646 = vadd.f32 %v652, %v2645
      %v2647 = vpop.f32.mrf.mxu0
      %v2648 = vadd.f32 %v652, %v2647
      %2649 = vmatmul.bf16.gmra.mxu0 %v456
      %v2650 = vpop.f32.mrf.mxu0
      %v2651 = vadd.f32 %v652, %v2650
      %v2652 = vpop.f32.mrf.mxu0
      %v2653 = vadd.f32 %v652, %v2652
      %2654 = vmatmul.bf16.gmra.mxu0 %v458
      %v2655 = vpop.f32.mrf.mxu0
      %v2656 = vadd.f32 %v652, %v2655
      %v2657 = vpop.f32.mrf.mxu0
      %v2658 = vadd.f32 %v652, %v2657
      %2659 = vmatmul.bf16.gmra.mxu0 %v460
      %v2660 = vpop.f32.mrf.mxu0
      %v2661 = vadd.f32 %v652, %v2660
      %v2662 = vpop.f32.mrf.mxu0
      %v2663 = vadd.f32 %v652, %v2662
      %2664 = vmatmul.bf16.gmra.mxu0 %v462
      %v2665 = vpop.f32.mrf.mxu0
      %v2666 = vadd.f32 %v652, %v2665
      %v2667 = vpop.f32.mrf.mxu0
      %v2668 = vadd.f32 %v652, %v2667
      %2669 = vmatmul.bf16.gmra.mxu0 %v464
      %v2670 = vpop.f32.mrf.mxu0
      %v2671 = vadd.f32 %v652, %v2670
      %v2672 = vpop.f32.mrf.mxu0
      %v2673 = vadd.f32 %v652, %v2672
      %2674 = vmatmul.bf16.gmra.mxu0 %v466
      %v2675 = vpop.f32.mrf.mxu0
      %v2676 = vadd.f32 %v652, %v2675
      %v2677 = vpop.f32.mrf.mxu0
      %v2678 = vadd.f32 %v652, %v2677
      %2679 = vmatmul.bf16.gmra.mxu0 %v468
      %v2680 = vpop.f32.mrf.mxu0
      %v2681 = vadd.f32 %v652, %v2680
      %v2682 = vpop.f32.mrf.mxu0
      %v2683 = vadd.f32 %v652, %v2682
      %2684 = vmatmul.bf16.gmra.mxu0 %v470
      %v2685 = vpop.f32.mrf.mxu0
      %v2686 = vadd.f32 %v652, %v2685
      %v2687 = vpop.f32.mrf.mxu0
      %v2688 = vadd.f32 %v652, %v2687
      %2689 = vmatmul.bf16.gmra.mxu0 %v472
      %v2690 = vpop.f32.mrf.mxu0
      %v2691 = vadd.f32 %v652, %v2690
      %v2692 = vpop.f32.mrf.mxu0
      %v2693 = vadd.f32 %v652, %v2692
      %2694 = vmatmul.bf16.gmra.mxu0 %v474
      %v2695 = vpop.f32.mrf.mxu0
      %v2696 = vadd.f32 %v652, %v2695
      %v2697 = vpop.f32.mrf.mxu0
      %v2698 = vadd.f32 %v652, %v2697
      %2699 = vmatmul.bf16.gmra.mxu0 %v476
      %v2700 = vpop.f32.mrf.mxu0
      %v2701 = vadd.f32 %v652, %v2700
      %v2702 = vpop.f32.mrf.mxu0
      %v2703 = vadd.f32 %v652, %v2702
      %2704 = vmatmul.bf16.gmra.mxu0 %v478
      %v2705 = vpop.f32.mrf.mxu0
      %v2706 = vadd.f32 %v652, %v2705
      %v2707 = vpop.f32.mrf.mxu0
      %v2708 = vadd.f32 %v652, %v2707
      %2709 = vmatmul.bf16.gmra.mxu0 %v480
      %v2710 = vpop.f32.mrf.mxu0
      %v2711 = vadd.f32 %v652, %v2710
      %v2712 = vpop.f32.mrf.mxu0
      %v2713 = vadd.f32 %v652, %v2712
      %2714 = vmatmul.bf16.gmra.mxu0 %v482
      %v2715 = vpop.f32.mrf.mxu0
      %v2716 = vadd.f32 %v652, %v2715
      %v2717 = vpop.f32.mrf.mxu0
      %v2718 = vadd.f32 %v652, %v2717
      %2719 = vmatmul.bf16.gmra.mxu0 %v484
      %v2720 = vpop.f32.mrf.mxu0
      %v2721 = vadd.f32 %v652, %v2720
      %v2722 = vpop.f32.mrf.mxu0
      %v2723 = vadd.f32 %v652, %v2722
      %2724 = vmatmul.bf16.gmra.mxu0 %v486
      %v2725 = vpop.f32.mrf.mxu0
      %v2726 = vadd.f32 %v652, %v2725
      %v2727 = vpop.f32.mrf.mxu0
      %v2728 = vadd.f32 %v652, %v2727
      %2729 = vmatmul.bf16.gmra.mxu0 %v488
      %v2730 = vpop.f32.mrf.mxu0
      %v2731 = vadd.f32 %v652, %v2730
      %v2732 = vpop.f32.mrf.mxu0
      %v2733 = vadd.f32 %v652, %v2732
      %2734 = vmatmul.bf16.gmra.mxu0 %v490
      %v2735 = vpop.f32.mrf.mxu0
      %v2736 = vadd.f32 %v652, %v2735
      %v2737 = vpop.f32.mrf.mxu0
      %v2738 = vadd.f32 %v652, %v2737
      %2739 = vmatmul.bf16.gmra.mxu0 %v492
      %v2740 = vpop.f32.mrf.mxu0
      %v2741 = vadd.f32 %v652, %v2740
      %v2742 = vpop.f32.mrf.mxu0
      %v2743 = vadd.f32 %v652, %v2742
      %2744 = vmatmul.bf16.gmra.mxu0 %v494
      %v2745 = vpop.f32.mrf.mxu0
      %v2746 = vadd.f32 %v652, %v2745
      %v2747 = vpop.f32.mrf.mxu0
      %v2748 = vadd.f32 %v652, %v2747
      %2749 = vmatmul.bf16.gmra.mxu0 %v496
      %v2750 = vpop.f32.mrf.mxu0
      %v2751 = vadd.f32 %v652, %v2750
      %v2752 = vpop.f32.mrf.mxu0
      %v2753 = vadd.f32 %v652, %v2752
      %2754 = vmatmul.bf16.gmra.mxu0 %v498
      %v2755 = vpop.f32.mrf.mxu0
      %v2756 = vadd.f32 %v652, %v2755
      %v2757 = vpop.f32.mrf.mxu0
      %v2758 = vadd.f32 %v652, %v2757
      %2759 = vmatmul.bf16.gmra.mxu0 %v500
      %v2760 = vpop.f32.mrf.mxu0
      %v2761 = vadd.f32 %v652, %v2760
      %v2762 = vpop.f32.mrf.mxu0
      %v2763 = vadd.f32 %v652, %v2762
      %2764 = vmatmul.bf16.gmra.mxu0 %v502
      %v2765 = vpop.f32.mrf.mxu0
      %v2766 = vadd.f32 %v652, %v2765
      %v2767 = vpop.f32.mrf.mxu0
      %v2768 = vadd.f32 %v652, %v2767
      %2769 = vmatmul.bf16.gmra.mxu0 %v504
      %v2770 = vpop.f32.mrf.mxu0
      %v2771 = vadd.f32 %v652, %v2770
      %v2772 = vpop.f32.mrf.mxu0
      %v2773 = vadd.f32 %v652, %v2772
      %2774 = vmatmul.bf16.gmra.mxu0 %v506
      %v2775 = vpop.f32.mrf.mxu0
      %v2776 = vadd.f32 %v652, %v2775
      %v2777 = vpop.f32.mrf.mxu0
      %v2778 = vadd.f32 %v652, %v2777
      %2779 = vmatmul.bf16.gmra.mxu0 %v508
      %v2780 = vpop.f32.mrf.mxu0
      %v2781 = vadd.f32 %v652, %v2780
      %v2782 = vpop.f32.mrf.mxu0
      %v2783 = vadd.f32 %v652, %v2782
      %2784 = vmatmul.bf16.gmra.mxu0 %v510
      %v2785 = vpop.f32.mrf.mxu0
      %v2786 = vadd.f32 %v652, %v2785
      %v2787 = vpop.f32.mrf.mxu0
      %v2788 = vadd.f32 %v652, %v2787
      %2789 = vmatmul.bf16.gmra.mxu0 %v512
      %v2790 = vpop.f32.mrf.mxu0
      %v2791 = vadd.f32 %v652, %v2790
      %v2792 = vpop.f32.mrf.mxu0
      %v2793 = vadd.f32 %v652, %v2792
      %2794 = vmatmul.bf16.gmra.mxu0 %v514
      %v2795 = vpop.f32.mrf.mxu0
      %v2796 = vadd.f32 %v652, %v2795
      %v2797 = vpop.f32.mrf.mxu0
      %v2798 = vadd.f32 %v652, %v2797
      %2799 = vmatmul.bf16.gmra.mxu0 %v516
      %v2800 = vpop.f32.mrf.mxu0
      %v2801 = vadd.f32 %v652, %v2800
      %v2802 = vpop.f32.mrf.mxu0
      %v2803 = vadd.f32 %v652, %v2802
      %2804 = vmatmul.bf16.gmra.mxu0 %v518
      %v2805 = vpop.f32.mrf.mxu0
      %v2806 = vadd.f32 %v652, %v2805
      %v2807 = vpop.f32.mrf.mxu0
      %v2808 = vadd.f32 %v652, %v2807
      %2809 = vmatmul.bf16.gmra.mxu0 %v520
      %v2810 = vpop.f32.mrf.mxu0
      %v2811 = vadd.f32 %v652, %v2810
      %v2812 = vpop.f32.mrf.mxu0
      %v2813 = vadd.f32 %v652, %v2812
      %2814 = vmatmul.bf16.gmra.mxu0 %v522
      %v2815 = vpop.f32.mrf.mxu0
      %v2816 = vadd.f32 %v652, %v2815
      %v2817 = vpop.f32.mrf.mxu0
      %v2818 = vadd.f32 %v652, %v2817
      %2819 = vmatmul.bf16.gmra.mxu0 %v524
      %v2820 = vpop.f32.mrf.mxu0
      %v2821 = vadd.f32 %v652, %v2820
      %v2822 = vpop.f32.mrf.mxu0
      %v2823 = vadd.f32 %v652, %v2822
      %2824 = vmatmul.bf16.gmra.mxu0 %v526
      %v2825 = vpop.f32.mrf.mxu0
      %v2826 = vadd.f32 %v652, %v2825
      %v2827 = vpop.f32.mrf.mxu0
      %v2828 = vadd.f32 %v652, %v2827
      %2829 = vmatmul.bf16.gmra.mxu0 %v528
      %v2830 = vpop.f32.mrf.mxu0
      %v2831 = vadd.f32 %v652, %v2830
      %v2832 = vpop.f32.mrf.mxu0
      %v2833 = vadd.f32 %v652, %v2832
      %2834 = vmatmul.bf16.gmra.mxu0 %v530
      %v2835 = vpop.f32.mrf.mxu0
      %v2836 = vadd.f32 %v652, %v2835
      %v2837 = vpop.f32.mrf.mxu0
      %v2838 = vadd.f32 %v652, %v2837
      %2839 = vmatmul.bf16.gmra.mxu0 %v532
      %v2840 = vpop.f32.mrf.mxu0
      %v2841 = vadd.f32 %v652, %v2840
      %v2842 = vpop.f32.mrf.mxu0
      %v2843 = vadd.f32 %v652, %v2842
      %2844 = vmatmul.bf16.gmra.mxu0 %v534
      %v2845 = vpop.f32.mrf.mxu0
      %v2846 = vadd.f32 %v652, %v2845
      %v2847 = vpop.f32.mrf.mxu0
      %v2848 = vadd.f32 %v652, %v2847
      %2849 = vmatmul.bf16.gmra.mxu0 %v536
      %v2850 = vpop.f32.mrf.mxu0
      %v2851 = vadd.f32 %v652, %v2850
      %v2852 = vpop.f32.mrf.mxu0
      %v2853 = vadd.f32 %v652, %v2852
      %2854 = vmatmul.bf16.gmra.mxu0 %v538
      %v2855 = vpop.f32.mrf.mxu0
      %v2856 = vadd.f32 %v652, %v2855
      %v2857 = vpop.f32.mrf.mxu0
      %v2858 = vadd.f32 %v652, %v2857
      %2859 = vmatmul.bf16.gmra.mxu0 %v540
      %v2860 = vpop.f32.mrf.mxu0
      %v2861 = vadd.f32 %v652, %v2860
      %v2862 = vpop.f32.mrf.mxu0
      %v2863 = vadd.f32 %v652, %v2862
      %2864 = vmatmul.bf16.gmra.mxu0 %v542
      %v2865 = vpop.f32.mrf.mxu0
      %v2866 = vadd.f32 %v652, %v2865
      %v2867 = vpop.f32.mrf.mxu0
      %v2868 = vadd.f32 %v652, %v2867
      %2869 = vmatmul.bf16.gmra.mxu0 %v544
      %v2870 = vpop.f32.mrf.mxu0
      %v2871 = vadd.f32 %v652, %v2870
      %v2872 = vpop.f32.mrf.mxu0
      %v2873 = vadd.f32 %v652, %v2872
      %2874 = vmatmul.bf16.gmra.mxu0 %v546
      %v2875 = vpop.f32.mrf.mxu0
      %v2876 = vadd.f32 %v652, %v2875
      %v2877 = vpop.f32.mrf.mxu0
      %v2878 = vadd.f32 %v652, %v2877
      %2879 = vmatmul.bf16.gmra.mxu0 %v548
      %v2880 = vpop.f32.mrf.mxu0
      %v2881 = vadd.f32 %v652, %v2880
      %v2882 = vpop.f32.mrf.mxu0
      %v2883 = vadd.f32 %v652, %v2882
      %2884 = vmatmul.bf16.gmra.mxu0 %v550
      %v2885 = vpop.f32.mrf.mxu0
      %v2886 = vadd.f32 %v652, %v2885
      %v2887 = vpop.f32.mrf.mxu0
      %v2888 = vadd.f32 %v652, %v2887
      %2889 = vmatmul.bf16.gmra.mxu0 %v552
      %v2890 = vpop.f32.mrf.mxu0
      %v2891 = vadd.f32 %v652, %v2890
      %v2892 = vpop.f32.mrf.mxu0
      %v2893 = vadd.f32 %v652, %v2892
      %2894 = vmatmul.bf16.gmra.mxu0 %v554
      %v2895 = vpop.f32.mrf.mxu0
      %v2896 = vadd.f32 %v652, %v2895
      %v2897 = vpop.f32.mrf.mxu0
      %v2898 = vadd.f32 %v652, %v2897
      %2899 = vmatmul.bf16.gmra.mxu0 %v556
      %v2900 = vpop.f32.mrf.mxu0
      %v2901 = vadd.f32 %v652, %v2900
      %v2902 = vpop.f32.mrf.mxu0
      %v2903 = vadd.f32 %v652, %v2902
      %2904 = vmatmul.bf16.gmra.mxu0 %v558
      %v2905 = vpop.f32.mrf.mxu0
      %v2906 = vadd.f32 %v652, %v2905
      %v2907 = vpop.f32.mrf.mxu0
      %v2908 = vadd.f32 %v652, %v2907
      %2909 = vmatmul.bf16.gmra.mxu0 %v560
      %v2910 = vpop.f32.mrf.mxu0
      %v2911 = vadd.f32 %v652, %v2910
      %v2912 = vpop.f32.mrf.mxu0
      %v2913 = vadd.f32 %v652, %v2912
      %2914 = vmatmul.bf16.gmra.mxu0 %v562
      %v2915 = vpop.f32.mrf.mxu0
      %v2916 = vadd.f32 %v652, %v2915
      %v2917 = vpop.f32.mrf.mxu0
      %v2918 = vadd.f32 %v652, %v2917
      %2919 = vdwg.mxu0
      %2920 = vmatpush.bf16.msra.mxu0 0
      %2921 = vmatpush.bf16.msra.mxu0 0
      %2922 = vmatpush.bf16.msra.mxu0 %v994
      %2923 = vmatpush.bf16.msra.mxu0 %v988
      %2924 = vmatpush.bf16.msra.mxu0 %v982
      %2925 = vmatpush.bf16.msra.mxu0 %v976
      %2926 = vmatpush.bf16.msra.mxu0 %v970
      %2927 = vmatpush.bf16.msra.mxu0 %v964
      %2928 = vmatmul.bf16.gmra.mxu0 %v1084
      %v2929 = vpop.f32.mrf.mxu0
      %v2930 = vadd.f32 %v2601, %v2929
      %v2931 = vpop.f32.mrf.mxu0
      %v2932 = vadd.f32 %v2603, %v2931
      %2933 = vmatmul.bf16.gmra.mxu0 %v1087
      %v2934 = vpop.f32.mrf.mxu0
      %v2935 = vadd.f32 %v2606, %v2934
      %v2936 = vpop.f32.mrf.mxu0
      %v2937 = vadd.f32 %v2608, %v2936
      %2938 = vmatmul.bf16.gmra.mxu0 %v1090
      %v2939 = vpop.f32.mrf.mxu0
      %v2940 = vadd.f32 %v2611, %v2939
      %v2941 = vpop.f32.mrf.mxu0
      %v2942 = vadd.f32 %v2613, %v2941
      %2943 = vmatmul.bf16.gmra.mxu0 %v1093
      %v2944 = vpop.f32.mrf.mxu0
      %v2945 = vadd.f32 %v2616, %v2944
      %v2946 = vpop.f32.mrf.mxu0
      %v2947 = vadd.f32 %v2618, %v2946
      %2948 = vmatmul.bf16.gmra.mxu0 %v1096
      %v2949 = vpop.f32.mrf.mxu0
      %v2950 = vadd.f32 %v2621, %v2949
      %v2951 = vpop.f32.mrf.mxu0
      %v2952 = vadd.f32 %v2623, %v2951
      %2953 = vmatmul.bf16.gmra.mxu0 %v1099
      %v2954 = vpop.f32.mrf.mxu0
      %v2955 = vadd.f32 %v2626, %v2954
      %v2956 = vpop.f32.mrf.mxu0
      %v2957 = vadd.f32 %v2628, %v2956
      %2958 = vmatmul.bf16.gmra.mxu0 %v1102
      %v2959 = vpop.f32.mrf.mxu0
      %v2960 = vadd.f32 %v2631, %v2959
      %v2961 = vpop.f32.mrf.mxu0
      %v2962 = vadd.f32 %v2633, %v2961
      %2963 = vmatmul.bf16.gmra.mxu0 %v1105
      %v2964 = vpop.f32.mrf.mxu0
      %v2965 = vadd.f32 %v2636, %v2964
      %v2966 = vpop.f32.mrf.mxu0
      %v2967 = vadd.f32 %v2638, %v2966
      %2968 = vmatmul.bf16.gmra.mxu0 %v1108
      %v2969 = vpop.f32.mrf.mxu0
      %v2970 = vadd.f32 %v2641, %v2969
      %v2971 = vpop.f32.mrf.mxu0
      %v2972 = vadd.f32 %v2643, %v2971
      %2973 = vmatmul.bf16.gmra.mxu0 %v1111
      %v2974 = vpop.f32.mrf.mxu0
      %v2975 = vadd.f32 %v2646, %v2974
      %v2976 = vpop.f32.mrf.mxu0
      %v2977 = vadd.f32 %v2648, %v2976
      %2978 = vmatmul.bf16.gmra.mxu0 %v1114
      %v2979 = vpop.f32.mrf.mxu0
      %v2980 = vadd.f32 %v2651, %v2979
      %v2981 = vpop.f32.mrf.mxu0
      %v2982 = vadd.f32 %v2653, %v2981
      %2983 = vmatmul.bf16.gmra.mxu0 %v1117
      %v2984 = vpop.f32.mrf.mxu0
      %v2985 = vadd.f32 %v2656, %v2984
      %v2986 = vpop.f32.mrf.mxu0
      %v2987 = vadd.f32 %v2658, %v2986
      %2988 = vmatmul.bf16.gmra.mxu0 %v1120
      %v2989 = vpop.f32.mrf.mxu0
      %v2990 = vadd.f32 %v2661, %v2989
      %v2991 = vpop.f32.mrf.mxu0
      %v2992 = vadd.f32 %v2663, %v2991
      %2993 = vmatmul.bf16.gmra.mxu0 %v1123
      %v2994 = vpop.f32.mrf.mxu0
      %v2995 = vadd.f32 %v2666, %v2994
      %v2996 = vpop.f32.mrf.mxu0
      %v2997 = vadd.f32 %v2668, %v2996
      %2998 = vmatmul.bf16.gmra.mxu0 %v1126
      %v2999 = vpop.f32.mrf.mxu0
      %v3000 = vadd.f32 %v2671, %v2999
      %v3001 = vpop.f32.mrf.mxu0
      %v3002 = vadd.f32 %v2673, %v3001
      %3003 = vmatmul.bf16.gmra.mxu0 %v1129
      %v3004 = vpop.f32.mrf.mxu0
      %v3005 = vadd.f32 %v2676, %v3004
      %v3006 = vpop.f32.mrf.mxu0
      %v3007 = vadd.f32 %v2678, %v3006
      %3008 = vmatmul.bf16.gmra.mxu0 %v1132
      %v3009 = vpop.f32.mrf.mxu0
      %v3010 = vadd.f32 %v2681, %v3009
      %v3011 = vpop.f32.mrf.mxu0
      %v3012 = vadd.f32 %v2683, %v3011
      %3013 = vmatmul.bf16.gmra.mxu0 %v1135
      %v3014 = vpop.f32.mrf.mxu0
      %v3015 = vadd.f32 %v2686, %v3014
      %v3016 = vpop.f32.mrf.mxu0
      %v3017 = vadd.f32 %v2688, %v3016
      %3018 = vmatmul.bf16.gmra.mxu0 %v1138
      %v3019 = vpop.f32.mrf.mxu0
      %v3020 = vadd.f32 %v2691, %v3019
      %v3021 = vpop.f32.mrf.mxu0
      %v3022 = vadd.f32 %v2693, %v3021
      %3023 = vmatmul.bf16.gmra.mxu0 %v1141
      %v3024 = vpop.f32.mrf.mxu0
      %v3025 = vadd.f32 %v2696, %v3024
      %v3026 = vpop.f32.mrf.mxu0
      %v3027 = vadd.f32 %v2698, %v3026
      %3028 = vmatmul.bf16.gmra.mxu0 %v1144
      %v3029 = vpop.f32.mrf.mxu0
      %v3030 = vadd.f32 %v2701, %v3029
      %v3031 = vpop.f32.mrf.mxu0
      %v3032 = vadd.f32 %v2703, %v3031
      %3033 = vmatmul.bf16.gmra.mxu0 %v1147
      %v3034 = vpop.f32.mrf.mxu0
      %v3035 = vadd.f32 %v2706, %v3034
      %v3036 = vpop.f32.mrf.mxu0
      %v3037 = vadd.f32 %v2708, %v3036
      %3038 = vmatmul.bf16.gmra.mxu0 %v1150
      %v3039 = vpop.f32.mrf.mxu0
      %v3040 = vadd.f32 %v2711, %v3039
      %v3041 = vpop.f32.mrf.mxu0
      %v3042 = vadd.f32 %v2713, %v3041
      %3043 = vmatmul.bf16.gmra.mxu0 %v1153
      %v3044 = vpop.f32.mrf.mxu0
      %v3045 = vadd.f32 %v2716, %v3044
      %v3046 = vpop.f32.mrf.mxu0
      %v3047 = vadd.f32 %v2718, %v3046
      %3048 = vmatmul.bf16.gmra.mxu0 %v1156
      %v3049 = vpop.f32.mrf.mxu0
      %v3050 = vadd.f32 %v2721, %v3049
      %v3051 = vpop.f32.mrf.mxu0
      %v3052 = vadd.f32 %v2723, %v3051
      %3053 = vmatmul.bf16.gmra.mxu0 %v1159
      %v3054 = vpop.f32.mrf.mxu0
      %v3055 = vadd.f32 %v2726, %v3054
      %v3056 = vpop.f32.mrf.mxu0
      %v3057 = vadd.f32 %v2728, %v3056
      %3058 = vmatmul.bf16.gmra.mxu0 %v1162
      %v3059 = vpop.f32.mrf.mxu0
      %v3060 = vadd.f32 %v2731, %v3059
      %v3061 = vpop.f32.mrf.mxu0
      %v3062 = vadd.f32 %v2733, %v3061
      %3063 = vmatmul.bf16.gmra.mxu0 %v1165
      %v3064 = vpop.f32.mrf.mxu0
      %v3065 = vadd.f32 %v2736, %v3064
      %v3066 = vpop.f32.mrf.mxu0
      %v3067 = vadd.f32 %v2738, %v3066
      %3068 = vmatmul.bf16.gmra.mxu0 %v1168
      %v3069 = vpop.f32.mrf.mxu0
      %v3070 = vadd.f32 %v2741, %v3069
      %v3071 = vpop.f32.mrf.mxu0
      %v3072 = vadd.f32 %v2743, %v3071
      %3073 = vmatmul.bf16.gmra.mxu0 %v1171
      %v3074 = vpop.f32.mrf.mxu0
      %v3075 = vadd.f32 %v2746, %v3074
      %v3076 = vpop.f32.mrf.mxu0
      %v3077 = vadd.f32 %v2748, %v3076
      %3078 = vmatmul.bf16.gmra.mxu0 %v1174
      %v3079 = vpop.f32.mrf.mxu0
      %v3080 = vadd.f32 %v2751, %v3079
      %v3081 = vpop.f32.mrf.mxu0
      %v3082 = vadd.f32 %v2753, %v3081
      %3083 = vmatmul.bf16.gmra.mxu0 %v1177
      %v3084 = vpop.f32.mrf.mxu0
      %v3085 = vadd.f32 %v2756, %v3084
      %v3086 = vpop.f32.mrf.mxu0
      %v3087 = vadd.f32 %v2758, %v3086
      %3088 = vmatmul.bf16.gmra.mxu0 %v1180
      %v3089 = vpop.f32.mrf.mxu0
      %v3090 = vadd.f32 %v2761, %v3089
      %v3091 = vpop.f32.mrf.mxu0
      %v3092 = vadd.f32 %v2763, %v3091
      %3093 = vmatmul.bf16.gmra.mxu0 %v1183
      %v3094 = vpop.f32.mrf.mxu0
      %v3095 = vadd.f32 %v2766, %v3094
      %v3096 = vpop.f32.mrf.mxu0
      %v3097 = vadd.f32 %v2768, %v3096
      %3098 = vmatmul.bf16.gmra.mxu0 %v1186
      %v3099 = vpop.f32.mrf.mxu0
      %v3100 = vadd.f32 %v2771, %v3099
      %v3101 = vpop.f32.mrf.mxu0
      %v3102 = vadd.f32 %v2773, %v3101
      %3103 = vmatmul.bf16.gmra.mxu0 %v1189
      %v3104 = vpop.f32.mrf.mxu0
      %v3105 = vadd.f32 %v2776, %v3104
      %v3106 = vpop.f32.mrf.mxu0
      %v3107 = vadd.f32 %v2778, %v3106
      %3108 = vmatmul.bf16.gmra.mxu0 %v1192
      %v3109 = vpop.f32.mrf.mxu0
      %v3110 = vadd.f32 %v2781, %v3109
      %v3111 = vpop.f32.mrf.mxu0
      %v3112 = vadd.f32 %v2783, %v3111
      %3113 = vmatmul.bf16.gmra.mxu0 %v1195
      %v3114 = vpop.f32.mrf.mxu0
      %v3115 = vadd.f32 %v2786, %v3114
      %v3116 = vpop.f32.mrf.mxu0
      %v3117 = vadd.f32 %v2788, %v3116
      %3118 = vmatmul.bf16.gmra.mxu0 %v1198
      %v3119 = vpop.f32.mrf.mxu0
      %v3120 = vadd.f32 %v2791, %v3119
      %v3121 = vpop.f32.mrf.mxu0
      %v3122 = vadd.f32 %v2793, %v3121
      %3123 = vmatmul.bf16.gmra.mxu0 %v1201
      %v3124 = vpop.f32.mrf.mxu0
      %v3125 = vadd.f32 %v2796, %v3124
      %v3126 = vpop.f32.mrf.mxu0
      %v3127 = vadd.f32 %v2798, %v3126
      %3128 = vmatmul.bf16.gmra.mxu0 %v1204
      %v3129 = vpop.f32.mrf.mxu0
      %v3130 = vadd.f32 %v2801, %v3129
      %v3131 = vpop.f32.mrf.mxu0
      %v3132 = vadd.f32 %v2803, %v3131
      %3133 = vmatmul.bf16.gmra.mxu0 %v1207
      %v3134 = vpop.f32.mrf.mxu0
      %v3135 = vadd.f32 %v2806, %v3134
      %v3136 = vpop.f32.mrf.mxu0
      %v3137 = vadd.f32 %v2808, %v3136
      %3138 = vmatmul.bf16.gmra.mxu0 %v1210
      %v3139 = vpop.f32.mrf.mxu0
      %v3140 = vadd.f32 %v2811, %v3139
      %v3141 = vpop.f32.mrf.mxu0
      %v3142 = vadd.f32 %v2813, %v3141
      %3143 = vmatmul.bf16.gmra.mxu0 %v1213
      %v3144 = vpop.f32.mrf.mxu0
      %v3145 = vadd.f32 %v2816, %v3144
      %v3146 = vpop.f32.mrf.mxu0
      %v3147 = vadd.f32 %v2818, %v3146
      %3148 = vmatmul.bf16.gmra.mxu0 %v1216
      %v3149 = vpop.f32.mrf.mxu0
      %v3150 = vadd.f32 %v2821, %v3149
      %v3151 = vpop.f32.mrf.mxu0
      %v3152 = vadd.f32 %v2823, %v3151
      %3153 = vmatmul.bf16.gmra.mxu0 %v1219
      %v3154 = vpop.f32.mrf.mxu0
      %v3155 = vadd.f32 %v2826, %v3154
      %v3156 = vpop.f32.mrf.mxu0
      %v3157 = vadd.f32 %v2828, %v3156
      %3158 = vmatmul.bf16.gmra.mxu0 %v1222
      %v3159 = vpop.f32.mrf.mxu0
      %v3160 = vadd.f32 %v2831, %v3159
      %v3161 = vpop.f32.mrf.mxu0
      %v3162 = vadd.f32 %v2833, %v3161
      %3163 = vmatmul.bf16.gmra.mxu0 %v1225
      %v3164 = vpop.f32.mrf.mxu0
      %v3165 = vadd.f32 %v2836, %v3164
      %v3166 = vpop.f32.mrf.mxu0
      %v3167 = vadd.f32 %v2838, %v3166
      %3168 = vmatmul.bf16.gmra.mxu0 %v1228
      %v3169 = vpop.f32.mrf.mxu0
      %v3170 = vadd.f32 %v2841, %v3169
      %v3171 = vpop.f32.mrf.mxu0
      %v3172 = vadd.f32 %v2843, %v3171
      %3173 = vmatmul.bf16.gmra.mxu0 %v1231
      %v3174 = vpop.f32.mrf.mxu0
      %v3175 = vadd.f32 %v2846, %v3174
      %v3176 = vpop.f32.mrf.mxu0
      %v3177 = vadd.f32 %v2848, %v3176
      %3178 = vmatmul.bf16.gmra.mxu0 %v1234
      %v3179 = vpop.f32.mrf.mxu0
      %v3180 = vadd.f32 %v2851, %v3179
      %v3181 = vpop.f32.mrf.mxu0
      %v3182 = vadd.f32 %v2853, %v3181
      %3183 = vmatmul.bf16.gmra.mxu0 %v1237
      %v3184 = vpop.f32.mrf.mxu0
      %v3185 = vadd.f32 %v2856, %v3184
      %v3186 = vpop.f32.mrf.mxu0
      %v3187 = vadd.f32 %v2858, %v3186
      %3188 = vmatmul.bf16.gmra.mxu0 %v1240
      %v3189 = vpop.f32.mrf.mxu0
      %v3190 = vadd.f32 %v2861, %v3189
      %v3191 = vpop.f32.mrf.mxu0
      %v3192 = vadd.f32 %v2863, %v3191
      %3193 = vmatmul.bf16.gmra.mxu0 %v1243
      %v3194 = vpop.f32.mrf.mxu0
      %v3195 = vadd.f32 %v2866, %v3194
      %v3196 = vpop.f32.mrf.mxu0
      %v3197 = vadd.f32 %v2868, %v3196
      %3198 = vmatmul.bf16.gmra.mxu0 %v1246
      %v3199 = vpop.f32.mrf.mxu0
      %v3200 = vadd.f32 %v2871, %v3199
      %v3201 = vpop.f32.mrf.mxu0
      %v3202 = vadd.f32 %v2873, %v3201
      %3203 = vmatmul.bf16.gmra.mxu0 %v1249
      %v3204 = vpop.f32.mrf.mxu0
      %v3205 = vadd.f32 %v2876, %v3204
      %v3206 = vpop.f32.mrf.mxu0
      %v3207 = vadd.f32 %v2878, %v3206
      %3208 = vmatmul.bf16.gmra.mxu0 %v1252
      %v3209 = vpop.f32.mrf.mxu0
      %v3210 = vadd.f32 %v2881, %v3209
      %v3211 = vpop.f32.mrf.mxu0
      %v3212 = vadd.f32 %v2883, %v3211
      %3213 = vmatmul.bf16.gmra.mxu0 %v1255
      %v3214 = vpop.f32.mrf.mxu0
      %v3215 = vadd.f32 %v2886, %v3214
      %v3216 = vpop.f32.mrf.mxu0
      %v3217 = vadd.f32 %v2888, %v3216
      %3218 = vmatmul.bf16.gmra.mxu0 %v1258
      %v3219 = vpop.f32.mrf.mxu0
      %v3220 = vadd.f32 %v2891, %v3219
      %v3221 = vpop.f32.mrf.mxu0
      %v3222 = vadd.f32 %v2893, %v3221
      %3223 = vmatmul.bf16.gmra.mxu0 %v1261
      %v3224 = vpop.f32.mrf.mxu0
      %v3225 = vadd.f32 %v2896, %v3224
      %v3226 = vpop.f32.mrf.mxu0
      %v3227 = vadd.f32 %v2898, %v3226
      %3228 = vmatmul.bf16.gmra.mxu0 %v1264
      %v3229 = vpop.f32.mrf.mxu0
      %v3230 = vadd.f32 %v2901, %v3229
      %v3231 = vpop.f32.mrf.mxu0
      %v3232 = vadd.f32 %v2903, %v3231
      %3233 = vmatmul.bf16.gmra.mxu0 %v1267
      %v3234 = vpop.f32.mrf.mxu0
      %v3235 = vadd.f32 %v2906, %v3234
      %v3236 = vpop.f32.mrf.mxu0
      %v3237 = vadd.f32 %v2908, %v3236
      %3238 = vmatmul.bf16.gmra.mxu0 %v1270
      %v3239 = vpop.f32.mrf.mxu0
      %v3240 = vadd.f32 %v2911, %v3239
      %v3241 = vpop.f32.mrf.mxu0
      %v3242 = vadd.f32 %v2913, %v3241
      %3243 = vmatmul.bf16.gmra.mxu0 %v1273
      %v3244 = vpop.f32.mrf.mxu0
      %v3245 = vadd.f32 %v2916, %v3244
      %v3246 = vpop.f32.mrf.mxu0
      %v3247 = vadd.f32 %v2918, %v3246
      %3248 = vdwg.mxu0
      %3249 = vmatpush.bf16.msra.mxu0 %v959
      %3250 = vmatpush.bf16.msra.mxu0 %v953
      %3251 = vmatpush.bf16.msra.mxu0 %v947
      %3252 = vmatpush.bf16.msra.mxu0 %v941
      %3253 = vmatpush.bf16.msra.mxu0 %v935
      %3254 = vmatpush.bf16.msra.mxu0 %v929
      %3255 = vmatpush.bf16.msra.mxu0 %v923
      %3256 = vmatpush.bf16.msra.mxu0 %v917
      %3257 = vmatmul.bf16.gmra.mxu0 %v436
      %v3258 = vpop.f32.mrf.mxu0
      %v3259 = vadd.f32 %v653, %v3258
      %v3260 = vpop.f32.mrf.mxu0
      %v3261 = vadd.f32 %v653, %v3260
      %3262 = vmatmul.bf16.gmra.mxu0 %v438
      %v3263 = vpop.f32.mrf.mxu0
      %v3264 = vadd.f32 %v653, %v3263
      %v3265 = vpop.f32.mrf.mxu0
      %v3266 = vadd.f32 %v653, %v3265
      %3267 = vmatmul.bf16.gmra.mxu0 %v440
      %v3268 = vpop.f32.mrf.mxu0
      %v3269 = vadd.f32 %v653, %v3268
      %v3270 = vpop.f32.mrf.mxu0
      %v3271 = vadd.f32 %v653, %v3270
      %3272 = vmatmul.bf16.gmra.mxu0 %v442
      %v3273 = vpop.f32.mrf.mxu0
      %v3274 = vadd.f32 %v653, %v3273
      %v3275 = vpop.f32.mrf.mxu0
      %v3276 = vadd.f32 %v653, %v3275
      %3277 = vmatmul.bf16.gmra.mxu0 %v444
      %v3278 = vpop.f32.mrf.mxu0
      %v3279 = vadd.f32 %v653, %v3278
      %v3280 = vpop.f32.mrf.mxu0
      %v3281 = vadd.f32 %v653, %v3280
      %3282 = vmatmul.bf16.gmra.mxu0 %v446
      %v3283 = vpop.f32.mrf.mxu0
      %v3284 = vadd.f32 %v653, %v3283
      %v3285 = vpop.f32.mrf.mxu0
      %v3286 = vadd.f32 %v653, %v3285
      %3287 = vmatmul.bf16.gmra.mxu0 %v448
      %v3288 = vpop.f32.mrf.mxu0
      %v3289 = vadd.f32 %v653, %v3288
      %v3290 = vpop.f32.mrf.mxu0
      %v3291 = vadd.f32 %v653, %v3290
      %3292 = vmatmul.bf16.gmra.mxu0 %v450
      %v3293 = vpop.f32.mrf.mxu0
      %v3294 = vadd.f32 %v653, %v3293
      %v3295 = vpop.f32.mrf.mxu0
      %v3296 = vadd.f32 %v653, %v3295
      %3297 = vmatmul.bf16.gmra.mxu0 %v452
      %v3298 = vpop.f32.mrf.mxu0
      %v3299 = vadd.f32 %v653, %v3298
      %v3300 = vpop.f32.mrf.mxu0
      %v3301 = vadd.f32 %v653, %v3300
      %3302 = vmatmul.bf16.gmra.mxu0 %v454
      %v3303 = vpop.f32.mrf.mxu0
      %v3304 = vadd.f32 %v653, %v3303
      %v3305 = vpop.f32.mrf.mxu0
      %v3306 = vadd.f32 %v653, %v3305
      %3307 = vmatmul.bf16.gmra.mxu0 %v456
      %v3308 = vpop.f32.mrf.mxu0
      %v3309 = vadd.f32 %v653, %v3308
      %v3310 = vpop.f32.mrf.mxu0
      %v3311 = vadd.f32 %v653, %v3310
      %3312 = vmatmul.bf16.gmra.mxu0 %v458
      %v3313 = vpop.f32.mrf.mxu0
      %v3314 = vadd.f32 %v653, %v3313
      %v3315 = vpop.f32.mrf.mxu0
      %v3316 = vadd.f32 %v653, %v3315
      %3317 = vmatmul.bf16.gmra.mxu0 %v460
      %v3318 = vpop.f32.mrf.mxu0
      %v3319 = vadd.f32 %v653, %v3318
      %v3320 = vpop.f32.mrf.mxu0
      %v3321 = vadd.f32 %v653, %v3320
      %3322 = vmatmul.bf16.gmra.mxu0 %v462
      %v3323 = vpop.f32.mrf.mxu0
      %v3324 = vadd.f32 %v653, %v3323
      %v3325 = vpop.f32.mrf.mxu0
      %v3326 = vadd.f32 %v653, %v3325
      %3327 = vmatmul.bf16.gmra.mxu0 %v464
      %v3328 = vpop.f32.mrf.mxu0
      %v3329 = vadd.f32 %v653, %v3328
      %v3330 = vpop.f32.mrf.mxu0
      %v3331 = vadd.f32 %v653, %v3330
      %3332 = vmatmul.bf16.gmra.mxu0 %v466
      %v3333 = vpop.f32.mrf.mxu0
      %v3334 = vadd.f32 %v653, %v3333
      %v3335 = vpop.f32.mrf.mxu0
      %v3336 = vadd.f32 %v653, %v3335
      %3337 = vmatmul.bf16.gmra.mxu0 %v468
      %v3338 = vpop.f32.mrf.mxu0
      %v3339 = vadd.f32 %v653, %v3338
      %v3340 = vpop.f32.mrf.mxu0
      %v3341 = vadd.f32 %v653, %v3340
      %3342 = vmatmul.bf16.gmra.mxu0 %v470
      %v3343 = vpop.f32.mrf.mxu0
      %v3344 = vadd.f32 %v653, %v3343
      %v3345 = vpop.f32.mrf.mxu0
      %v3346 = vadd.f32 %v653, %v3345
      %3347 = vmatmul.bf16.gmra.mxu0 %v472
      %v3348 = vpop.f32.mrf.mxu0
      %v3349 = vadd.f32 %v653, %v3348
      %v3350 = vpop.f32.mrf.mxu0
      %v3351 = vadd.f32 %v653, %v3350
      %3352 = vmatmul.bf16.gmra.mxu0 %v474
      %v3353 = vpop.f32.mrf.mxu0
      %v3354 = vadd.f32 %v653, %v3353
      %v3355 = vpop.f32.mrf.mxu0
      %v3356 = vadd.f32 %v653, %v3355
      %3357 = vmatmul.bf16.gmra.mxu0 %v476
      %v3358 = vpop.f32.mrf.mxu0
      %v3359 = vadd.f32 %v653, %v3358
      %v3360 = vpop.f32.mrf.mxu0
      %v3361 = vadd.f32 %v653, %v3360
      %3362 = vmatmul.bf16.gmra.mxu0 %v478
      %v3363 = vpop.f32.mrf.mxu0
      %v3364 = vadd.f32 %v653, %v3363
      %v3365 = vpop.f32.mrf.mxu0
      %v3366 = vadd.f32 %v653, %v3365
      %3367 = vmatmul.bf16.gmra.mxu0 %v480
      %v3368 = vpop.f32.mrf.mxu0
      %v3369 = vadd.f32 %v653, %v3368
      %v3370 = vpop.f32.mrf.mxu0
      %v3371 = vadd.f32 %v653, %v3370
      %3372 = vmatmul.bf16.gmra.mxu0 %v482
      %v3373 = vpop.f32.mrf.mxu0
      %v3374 = vadd.f32 %v653, %v3373
      %v3375 = vpop.f32.mrf.mxu0
      %v3376 = vadd.f32 %v653, %v3375
      %3377 = vmatmul.bf16.gmra.mxu0 %v484
      %v3378 = vpop.f32.mrf.mxu0
      %v3379 = vadd.f32 %v653, %v3378
      %v3380 = vpop.f32.mrf.mxu0
      %v3381 = vadd.f32 %v653, %v3380
      %3382 = vmatmul.bf16.gmra.mxu0 %v486
      %v3383 = vpop.f32.mrf.mxu0
      %v3384 = vadd.f32 %v653, %v3383
      %v3385 = vpop.f32.mrf.mxu0
      %v3386 = vadd.f32 %v653, %v3385
      %3387 = vmatmul.bf16.gmra.mxu0 %v488
      %v3388 = vpop.f32.mrf.mxu0
      %v3389 = vadd.f32 %v653, %v3388
      %v3390 = vpop.f32.mrf.mxu0
      %v3391 = vadd.f32 %v653, %v3390
      %3392 = vmatmul.bf16.gmra.mxu0 %v490
      %v3393 = vpop.f32.mrf.mxu0
      %v3394 = vadd.f32 %v653, %v3393
      %v3395 = vpop.f32.mrf.mxu0
      %v3396 = vadd.f32 %v653, %v3395
      %3397 = vmatmul.bf16.gmra.mxu0 %v492
      %v3398 = vpop.f32.mrf.mxu0
      %v3399 = vadd.f32 %v653, %v3398
      %v3400 = vpop.f32.mrf.mxu0
      %v3401 = vadd.f32 %v653, %v3400
      %3402 = vmatmul.bf16.gmra.mxu0 %v494
      %v3403 = vpop.f32.mrf.mxu0
      %v3404 = vadd.f32 %v653, %v3403
      %v3405 = vpop.f32.mrf.mxu0
      %v3406 = vadd.f32 %v653, %v3405
      %3407 = vmatmul.bf16.gmra.mxu0 %v496
      %v3408 = vpop.f32.mrf.mxu0
      %v3409 = vadd.f32 %v653, %v3408
      %v3410 = vpop.f32.mrf.mxu0
      %v3411 = vadd.f32 %v653, %v3410
      %3412 = vmatmul.bf16.gmra.mxu0 %v498
      %v3413 = vpop.f32.mrf.mxu0
      %v3414 = vadd.f32 %v653, %v3413
      %v3415 = vpop.f32.mrf.mxu0
      %v3416 = vadd.f32 %v653, %v3415
      %3417 = vmatmul.bf16.gmra.mxu0 %v500
      %v3418 = vpop.f32.mrf.mxu0
      %v3419 = vadd.f32 %v653, %v3418
      %v3420 = vpop.f32.mrf.mxu0
      %v3421 = vadd.f32 %v653, %v3420
      %3422 = vmatmul.bf16.gmra.mxu0 %v502
      %v3423 = vpop.f32.mrf.mxu0
      %v3424 = vadd.f32 %v653, %v3423
      %v3425 = vpop.f32.mrf.mxu0
      %v3426 = vadd.f32 %v653, %v3425
      %3427 = vmatmul.bf16.gmra.mxu0 %v504
      %v3428 = vpop.f32.mrf.mxu0
      %v3429 = vadd.f32 %v653, %v3428
      %v3430 = vpop.f32.mrf.mxu0
      %v3431 = vadd.f32 %v653, %v3430
      %3432 = vmatmul.bf16.gmra.mxu0 %v506
      %v3433 = vpop.f32.mrf.mxu0
      %v3434 = vadd.f32 %v653, %v3433
      %v3435 = vpop.f32.mrf.mxu0
      %v3436 = vadd.f32 %v653, %v3435
      %3437 = vmatmul.bf16.gmra.mxu0 %v508
      %v3438 = vpop.f32.mrf.mxu0
      %v3439 = vadd.f32 %v653, %v3438
      %v3440 = vpop.f32.mrf.mxu0
      %v3441 = vadd.f32 %v653, %v3440
      %3442 = vmatmul.bf16.gmra.mxu0 %v510
      %v3443 = vpop.f32.mrf.mxu0
      %v3444 = vadd.f32 %v653, %v3443
      %v3445 = vpop.f32.mrf.mxu0
      %v3446 = vadd.f32 %v653, %v3445
      %3447 = vmatmul.bf16.gmra.mxu0 %v512
      %v3448 = vpop.f32.mrf.mxu0
      %v3449 = vadd.f32 %v653, %v3448
      %v3450 = vpop.f32.mrf.mxu0
      %v3451 = vadd.f32 %v653, %v3450
      %3452 = vmatmul.bf16.gmra.mxu0 %v514
      %v3453 = vpop.f32.mrf.mxu0
      %v3454 = vadd.f32 %v653, %v3453
      %v3455 = vpop.f32.mrf.mxu0
      %v3456 = vadd.f32 %v653, %v3455
      %3457 = vmatmul.bf16.gmra.mxu0 %v516
      %v3458 = vpop.f32.mrf.mxu0
      %v3459 = vadd.f32 %v653, %v3458
      %v3460 = vpop.f32.mrf.mxu0
      %v3461 = vadd.f32 %v653, %v3460
      %3462 = vmatmul.bf16.gmra.mxu0 %v518
      %v3463 = vpop.f32.mrf.mxu0
      %v3464 = vadd.f32 %v653, %v3463
      %v3465 = vpop.f32.mrf.mxu0
      %v3466 = vadd.f32 %v653, %v3465
      %3467 = vmatmul.bf16.gmra.mxu0 %v520
      %v3468 = vpop.f32.mrf.mxu0
      %v3469 = vadd.f32 %v653, %v3468
      %v3470 = vpop.f32.mrf.mxu0
      %v3471 = vadd.f32 %v653, %v3470
      %3472 = vmatmul.bf16.gmra.mxu0 %v522
      %v3473 = vpop.f32.mrf.mxu0
      %v3474 = vadd.f32 %v653, %v3473
      %v3475 = vpop.f32.mrf.mxu0
      %v3476 = vadd.f32 %v653, %v3475
      %3477 = vmatmul.bf16.gmra.mxu0 %v524
      %v3478 = vpop.f32.mrf.mxu0
      %v3479 = vadd.f32 %v653, %v3478
      %v3480 = vpop.f32.mrf.mxu0
      %v3481 = vadd.f32 %v653, %v3480
      %3482 = vmatmul.bf16.gmra.mxu0 %v526
      %v3483 = vpop.f32.mrf.mxu0
      %v3484 = vadd.f32 %v653, %v3483
      %v3485 = vpop.f32.mrf.mxu0
      %v3486 = vadd.f32 %v653, %v3485
      %3487 = vmatmul.bf16.gmra.mxu0 %v528
      %v3488 = vpop.f32.mrf.mxu0
      %v3489 = vadd.f32 %v653, %v3488
      %v3490 = vpop.f32.mrf.mxu0
      %v3491 = vadd.f32 %v653, %v3490
      %3492 = vmatmul.bf16.gmra.mxu0 %v530
      %v3493 = vpop.f32.mrf.mxu0
      %v3494 = vadd.f32 %v653, %v3493
      %v3495 = vpop.f32.mrf.mxu0
      %v3496 = vadd.f32 %v653, %v3495
      %3497 = vmatmul.bf16.gmra.mxu0 %v532
      %v3498 = vpop.f32.mrf.mxu0
      %v3499 = vadd.f32 %v653, %v3498
      %v3500 = vpop.f32.mrf.mxu0
      %v3501 = vadd.f32 %v653, %v3500
      %3502 = vmatmul.bf16.gmra.mxu0 %v534
      %v3503 = vpop.f32.mrf.mxu0
      %v3504 = vadd.f32 %v653, %v3503
      %v3505 = vpop.f32.mrf.mxu0
      %v3506 = vadd.f32 %v653, %v3505
      %3507 = vmatmul.bf16.gmra.mxu0 %v536
      %v3508 = vpop.f32.mrf.mxu0
      %v3509 = vadd.f32 %v653, %v3508
      %v3510 = vpop.f32.mrf.mxu0
      %v3511 = vadd.f32 %v653, %v3510
      %3512 = vmatmul.bf16.gmra.mxu0 %v538
      %v3513 = vpop.f32.mrf.mxu0
      %v3514 = vadd.f32 %v653, %v3513
      %v3515 = vpop.f32.mrf.mxu0
      %v3516 = vadd.f32 %v653, %v3515
      %3517 = vmatmul.bf16.gmra.mxu0 %v540
      %v3518 = vpop.f32.mrf.mxu0
      %v3519 = vadd.f32 %v653, %v3518
      %v3520 = vpop.f32.mrf.mxu0
      %v3521 = vadd.f32 %v653, %v3520
      %3522 = vmatmul.bf16.gmra.mxu0 %v542
      %v3523 = vpop.f32.mrf.mxu0
      %v3524 = vadd.f32 %v653, %v3523
      %v3525 = vpop.f32.mrf.mxu0
      %v3526 = vadd.f32 %v653, %v3525
      %3527 = vmatmul.bf16.gmra.mxu0 %v544
      %v3528 = vpop.f32.mrf.mxu0
      %v3529 = vadd.f32 %v653, %v3528
      %v3530 = vpop.f32.mrf.mxu0
      %v3531 = vadd.f32 %v653, %v3530
      %3532 = vmatmul.bf16.gmra.mxu0 %v546
      %v3533 = vpop.f32.mrf.mxu0
      %v3534 = vadd.f32 %v653, %v3533
      %v3535 = vpop.f32.mrf.mxu0
      %v3536 = vadd.f32 %v653, %v3535
      %3537 = vmatmul.bf16.gmra.mxu0 %v548
      %v3538 = vpop.f32.mrf.mxu0
      %v3539 = vadd.f32 %v653, %v3538
      %v3540 = vpop.f32.mrf.mxu0
      %v3541 = vadd.f32 %v653, %v3540
      %3542 = vmatmul.bf16.gmra.mxu0 %v550
      %v3543 = vpop.f32.mrf.mxu0
      %v3544 = vadd.f32 %v653, %v3543
      %v3545 = vpop.f32.mrf.mxu0
      %v3546 = vadd.f32 %v653, %v3545
      %3547 = vmatmul.bf16.gmra.mxu0 %v552
      %v3548 = vpop.f32.mrf.mxu0
      %v3549 = vadd.f32 %v653, %v3548
      %v3550 = vpop.f32.mrf.mxu0
      %v3551 = vadd.f32 %v653, %v3550
      %3552 = vmatmul.bf16.gmra.mxu0 %v554
      %v3553 = vpop.f32.mrf.mxu0
      %v3554 = vadd.f32 %v653, %v3553
      %v3555 = vpop.f32.mrf.mxu0
      %v3556 = vadd.f32 %v653, %v3555
      %3557 = vmatmul.bf16.gmra.mxu0 %v556
      %v3558 = vpop.f32.mrf.mxu0
      %v3559 = vadd.f32 %v653, %v3558
      %v3560 = vpop.f32.mrf.mxu0
      %v3561 = vadd.f32 %v653, %v3560
      %3562 = vmatmul.bf16.gmra.mxu0 %v558
      %v3563 = vpop.f32.mrf.mxu0
      %v3564 = vadd.f32 %v653, %v3563
      %v3565 = vpop.f32.mrf.mxu0
      %v3566 = vadd.f32 %v653, %v3565
      %3567 = vmatmul.bf16.gmra.mxu0 %v560
      %v3568 = vpop.f32.mrf.mxu0
      %v3569 = vadd.f32 %v653, %v3568
      %v3570 = vpop.f32.mrf.mxu0
      %v3571 = vadd.f32 %v653, %v3570
      %3572 = vmatmul.bf16.gmra.mxu0 %v562
      %v3573 = vpop.f32.mrf.mxu0
      %v3574 = vadd.f32 %v653, %v3573
      %v3575 = vpop.f32.mrf.mxu0
      %v3576 = vadd.f32 %v653, %v3575
      %3577 = vdwg.mxu0
      %3578 = vmatpush.bf16.msra.mxu0 0
      %3579 = vmatpush.bf16.msra.mxu0 0
      %3580 = vmatpush.bf16.msra.mxu0 %v995
      %3581 = vmatpush.bf16.msra.mxu0 %v989
      %3582 = vmatpush.bf16.msra.mxu0 %v983
      %3583 = vmatpush.bf16.msra.mxu0 %v977
      %3584 = vmatpush.bf16.msra.mxu0 %v971
      %3585 = vmatpush.bf16.msra.mxu0 %v965
      %3586 = vmatmul.bf16.gmra.mxu0 %v1084
      %v3587 = vpop.f32.mrf.mxu0
      %v3588 = vadd.f32 %v3259, %v3587
      %v3589 = vpop.f32.mrf.mxu0
      %v3590 = vadd.f32 %v3261, %v3589
      %3591 = vmatmul.bf16.gmra.mxu0 %v1087
      %v3592 = vpop.f32.mrf.mxu0
      %v3593 = vadd.f32 %v3264, %v3592
      %v3594 = vpop.f32.mrf.mxu0
      %v3595 = vadd.f32 %v3266, %v3594
      %3596 = vmatmul.bf16.gmra.mxu0 %v1090
      %v3597 = vpop.f32.mrf.mxu0
      %v3598 = vadd.f32 %v3269, %v3597
      %v3599 = vpop.f32.mrf.mxu0
      %v3600 = vadd.f32 %v3271, %v3599
      %3601 = vmatmul.bf16.gmra.mxu0 %v1093
      %v3602 = vpop.f32.mrf.mxu0
      %v3603 = vadd.f32 %v3274, %v3602
      %v3604 = vpop.f32.mrf.mxu0
      %v3605 = vadd.f32 %v3276, %v3604
      %3606 = vmatmul.bf16.gmra.mxu0 %v1096
      %v3607 = vpop.f32.mrf.mxu0
      %v3608 = vadd.f32 %v3279, %v3607
      %v3609 = vpop.f32.mrf.mxu0
      %v3610 = vadd.f32 %v3281, %v3609
      %3611 = vmatmul.bf16.gmra.mxu0 %v1099
      %v3612 = vpop.f32.mrf.mxu0
      %v3613 = vadd.f32 %v3284, %v3612
      %v3614 = vpop.f32.mrf.mxu0
      %v3615 = vadd.f32 %v3286, %v3614
      %3616 = vmatmul.bf16.gmra.mxu0 %v1102
      %v3617 = vpop.f32.mrf.mxu0
      %v3618 = vadd.f32 %v3289, %v3617
      %v3619 = vpop.f32.mrf.mxu0
      %v3620 = vadd.f32 %v3291, %v3619
      %3621 = vmatmul.bf16.gmra.mxu0 %v1105
      %v3622 = vpop.f32.mrf.mxu0
      %v3623 = vadd.f32 %v3294, %v3622
      %v3624 = vpop.f32.mrf.mxu0
      %v3625 = vadd.f32 %v3296, %v3624
      %3626 = vmatmul.bf16.gmra.mxu0 %v1108
      %v3627 = vpop.f32.mrf.mxu0
      %v3628 = vadd.f32 %v3299, %v3627
      %v3629 = vpop.f32.mrf.mxu0
      %v3630 = vadd.f32 %v3301, %v3629
      %3631 = vmatmul.bf16.gmra.mxu0 %v1111
      %v3632 = vpop.f32.mrf.mxu0
      %v3633 = vadd.f32 %v3304, %v3632
      %v3634 = vpop.f32.mrf.mxu0
      %v3635 = vadd.f32 %v3306, %v3634
      %3636 = vmatmul.bf16.gmra.mxu0 %v1114
      %v3637 = vpop.f32.mrf.mxu0
      %v3638 = vadd.f32 %v3309, %v3637
      %v3639 = vpop.f32.mrf.mxu0
      %v3640 = vadd.f32 %v3311, %v3639
      %3641 = vmatmul.bf16.gmra.mxu0 %v1117
      %v3642 = vpop.f32.mrf.mxu0
      %v3643 = vadd.f32 %v3314, %v3642
      %v3644 = vpop.f32.mrf.mxu0
      %v3645 = vadd.f32 %v3316, %v3644
      %3646 = vmatmul.bf16.gmra.mxu0 %v1120
      %v3647 = vpop.f32.mrf.mxu0
      %v3648 = vadd.f32 %v3319, %v3647
      %v3649 = vpop.f32.mrf.mxu0
      %v3650 = vadd.f32 %v3321, %v3649
      %3651 = vmatmul.bf16.gmra.mxu0 %v1123
      %v3652 = vpop.f32.mrf.mxu0
      %v3653 = vadd.f32 %v3324, %v3652
      %v3654 = vpop.f32.mrf.mxu0
      %v3655 = vadd.f32 %v3326, %v3654
      %3656 = vmatmul.bf16.gmra.mxu0 %v1126
      %v3657 = vpop.f32.mrf.mxu0
      %v3658 = vadd.f32 %v3329, %v3657
      %v3659 = vpop.f32.mrf.mxu0
      %v3660 = vadd.f32 %v3331, %v3659
      %3661 = vmatmul.bf16.gmra.mxu0 %v1129
      %v3662 = vpop.f32.mrf.mxu0
      %v3663 = vadd.f32 %v3334, %v3662
      %v3664 = vpop.f32.mrf.mxu0
      %v3665 = vadd.f32 %v3336, %v3664
      %3666 = vmatmul.bf16.gmra.mxu0 %v1132
      %v3667 = vpop.f32.mrf.mxu0
      %v3668 = vadd.f32 %v3339, %v3667
      %v3669 = vpop.f32.mrf.mxu0
      %v3670 = vadd.f32 %v3341, %v3669
      %3671 = vmatmul.bf16.gmra.mxu0 %v1135
      %v3672 = vpop.f32.mrf.mxu0
      %v3673 = vadd.f32 %v3344, %v3672
      %v3674 = vpop.f32.mrf.mxu0
      %v3675 = vadd.f32 %v3346, %v3674
      %3676 = vmatmul.bf16.gmra.mxu0 %v1138
      %v3677 = vpop.f32.mrf.mxu0
      %v3678 = vadd.f32 %v3349, %v3677
      %v3679 = vpop.f32.mrf.mxu0
      %v3680 = vadd.f32 %v3351, %v3679
      %3681 = vmatmul.bf16.gmra.mxu0 %v1141
      %v3682 = vpop.f32.mrf.mxu0
      %v3683 = vadd.f32 %v3354, %v3682
      %v3684 = vpop.f32.mrf.mxu0
      %v3685 = vadd.f32 %v3356, %v3684
      %3686 = vmatmul.bf16.gmra.mxu0 %v1144
      %v3687 = vpop.f32.mrf.mxu0
      %v3688 = vadd.f32 %v3359, %v3687
      %v3689 = vpop.f32.mrf.mxu0
      %v3690 = vadd.f32 %v3361, %v3689
      %3691 = vmatmul.bf16.gmra.mxu0 %v1147
      %v3692 = vpop.f32.mrf.mxu0
      %v3693 = vadd.f32 %v3364, %v3692
      %v3694 = vpop.f32.mrf.mxu0
      %v3695 = vadd.f32 %v3366, %v3694
      %3696 = vmatmul.bf16.gmra.mxu0 %v1150
      %v3697 = vpop.f32.mrf.mxu0
      %v3698 = vadd.f32 %v3369, %v3697
      %v3699 = vpop.f32.mrf.mxu0
      %v3700 = vadd.f32 %v3371, %v3699
      %3701 = vmatmul.bf16.gmra.mxu0 %v1153
      %v3702 = vpop.f32.mrf.mxu0
      %v3703 = vadd.f32 %v3374, %v3702
      %v3704 = vpop.f32.mrf.mxu0
      %v3705 = vadd.f32 %v3376, %v3704
      %3706 = vmatmul.bf16.gmra.mxu0 %v1156
      %v3707 = vpop.f32.mrf.mxu0
      %v3708 = vadd.f32 %v3379, %v3707
      %v3709 = vpop.f32.mrf.mxu0
      %v3710 = vadd.f32 %v3381, %v3709
      %3711 = vmatmul.bf16.gmra.mxu0 %v1159
      %v3712 = vpop.f32.mrf.mxu0
      %v3713 = vadd.f32 %v3384, %v3712
      %v3714 = vpop.f32.mrf.mxu0
      %v3715 = vadd.f32 %v3386, %v3714
      %3716 = vmatmul.bf16.gmra.mxu0 %v1162
      %v3717 = vpop.f32.mrf.mxu0
      %v3718 = vadd.f32 %v3389, %v3717
      %v3719 = vpop.f32.mrf.mxu0
      %v3720 = vadd.f32 %v3391, %v3719
      %3721 = vmatmul.bf16.gmra.mxu0 %v1165
      %v3722 = vpop.f32.mrf.mxu0
      %v3723 = vadd.f32 %v3394, %v3722
      %v3724 = vpop.f32.mrf.mxu0
      %v3725 = vadd.f32 %v3396, %v3724
      %3726 = vmatmul.bf16.gmra.mxu0 %v1168
      %v3727 = vpop.f32.mrf.mxu0
      %v3728 = vadd.f32 %v3399, %v3727
      %v3729 = vpop.f32.mrf.mxu0
      %v3730 = vadd.f32 %v3401, %v3729
      %3731 = vmatmul.bf16.gmra.mxu0 %v1171
      %v3732 = vpop.f32.mrf.mxu0
      %v3733 = vadd.f32 %v3404, %v3732
      %v3734 = vpop.f32.mrf.mxu0
      %v3735 = vadd.f32 %v3406, %v3734
      %3736 = vmatmul.bf16.gmra.mxu0 %v1174
      %v3737 = vpop.f32.mrf.mxu0
      %v3738 = vadd.f32 %v3409, %v3737
      %v3739 = vpop.f32.mrf.mxu0
      %v3740 = vadd.f32 %v3411, %v3739
      %3741 = vmatmul.bf16.gmra.mxu0 %v1177
      %v3742 = vpop.f32.mrf.mxu0
      %v3743 = vadd.f32 %v3414, %v3742
      %v3744 = vpop.f32.mrf.mxu0
      %v3745 = vadd.f32 %v3416, %v3744
      %3746 = vmatmul.bf16.gmra.mxu0 %v1180
      %v3747 = vpop.f32.mrf.mxu0
      %v3748 = vadd.f32 %v3419, %v3747
      %v3749 = vpop.f32.mrf.mxu0
      %v3750 = vadd.f32 %v3421, %v3749
      %3751 = vmatmul.bf16.gmra.mxu0 %v1183
      %v3752 = vpop.f32.mrf.mxu0
      %v3753 = vadd.f32 %v3424, %v3752
      %v3754 = vpop.f32.mrf.mxu0
      %v3755 = vadd.f32 %v3426, %v3754
      %3756 = vmatmul.bf16.gmra.mxu0 %v1186
      %v3757 = vpop.f32.mrf.mxu0
      %v3758 = vadd.f32 %v3429, %v3757
      %v3759 = vpop.f32.mrf.mxu0
      %v3760 = vadd.f32 %v3431, %v3759
      %3761 = vmatmul.bf16.gmra.mxu0 %v1189
      %v3762 = vpop.f32.mrf.mxu0
      %v3763 = vadd.f32 %v3434, %v3762
      %v3764 = vpop.f32.mrf.mxu0
      %v3765 = vadd.f32 %v3436, %v3764
      %3766 = vmatmul.bf16.gmra.mxu0 %v1192
      %v3767 = vpop.f32.mrf.mxu0
      %v3768 = vadd.f32 %v3439, %v3767
      %v3769 = vpop.f32.mrf.mxu0
      %v3770 = vadd.f32 %v3441, %v3769
      %3771 = vmatmul.bf16.gmra.mxu0 %v1195
      %v3772 = vpop.f32.mrf.mxu0
      %v3773 = vadd.f32 %v3444, %v3772
      %v3774 = vpop.f32.mrf.mxu0
      %v3775 = vadd.f32 %v3446, %v3774
      %3776 = vmatmul.bf16.gmra.mxu0 %v1198
      %v3777 = vpop.f32.mrf.mxu0
      %v3778 = vadd.f32 %v3449, %v3777
      %v3779 = vpop.f32.mrf.mxu0
      %v3780 = vadd.f32 %v3451, %v3779
      %3781 = vmatmul.bf16.gmra.mxu0 %v1201
      %v3782 = vpop.f32.mrf.mxu0
      %v3783 = vadd.f32 %v3454, %v3782
      %v3784 = vpop.f32.mrf.mxu0
      %v3785 = vadd.f32 %v3456, %v3784
      %3786 = vmatmul.bf16.gmra.mxu0 %v1204
      %v3787 = vpop.f32.mrf.mxu0
      %v3788 = vadd.f32 %v3459, %v3787
      %v3789 = vpop.f32.mrf.mxu0
      %v3790 = vadd.f32 %v3461, %v3789
      %3791 = vmatmul.bf16.gmra.mxu0 %v1207
      %v3792 = vpop.f32.mrf.mxu0
      %v3793 = vadd.f32 %v3464, %v3792
      %v3794 = vpop.f32.mrf.mxu0
      %v3795 = vadd.f32 %v3466, %v3794
      %3796 = vmatmul.bf16.gmra.mxu0 %v1210
      %v3797 = vpop.f32.mrf.mxu0
      %v3798 = vadd.f32 %v3469, %v3797
      %v3799 = vpop.f32.mrf.mxu0
      %v3800 = vadd.f32 %v3471, %v3799
      %3801 = vmatmul.bf16.gmra.mxu0 %v1213
      %v3802 = vpop.f32.mrf.mxu0
      %v3803 = vadd.f32 %v3474, %v3802
      %v3804 = vpop.f32.mrf.mxu0
      %v3805 = vadd.f32 %v3476, %v3804
      %3806 = vmatmul.bf16.gmra.mxu0 %v1216
      %v3807 = vpop.f32.mrf.mxu0
      %v3808 = vadd.f32 %v3479, %v3807
      %v3809 = vpop.f32.mrf.mxu0
      %v3810 = vadd.f32 %v3481, %v3809
      %3811 = vmatmul.bf16.gmra.mxu0 %v1219
      %v3812 = vpop.f32.mrf.mxu0
      %v3813 = vadd.f32 %v3484, %v3812
      %v3814 = vpop.f32.mrf.mxu0
      %v3815 = vadd.f32 %v3486, %v3814
      %3816 = vmatmul.bf16.gmra.mxu0 %v1222
      %v3817 = vpop.f32.mrf.mxu0
      %v3818 = vadd.f32 %v3489, %v3817
      %v3819 = vpop.f32.mrf.mxu0
      %v3820 = vadd.f32 %v3491, %v3819
      %3821 = vmatmul.bf16.gmra.mxu0 %v1225
      %v3822 = vpop.f32.mrf.mxu0
      %v3823 = vadd.f32 %v3494, %v3822
      %v3824 = vpop.f32.mrf.mxu0
      %v3825 = vadd.f32 %v3496, %v3824
      %3826 = vmatmul.bf16.gmra.mxu0 %v1228
      %v3827 = vpop.f32.mrf.mxu0
      %v3828 = vadd.f32 %v3499, %v3827
      %v3829 = vpop.f32.mrf.mxu0
      %v3830 = vadd.f32 %v3501, %v3829
      %3831 = vmatmul.bf16.gmra.mxu0 %v1231
      %v3832 = vpop.f32.mrf.mxu0
      %v3833 = vadd.f32 %v3504, %v3832
      %v3834 = vpop.f32.mrf.mxu0
      %v3835 = vadd.f32 %v3506, %v3834
      %3836 = vmatmul.bf16.gmra.mxu0 %v1234
      %v3837 = vpop.f32.mrf.mxu0
      %v3838 = vadd.f32 %v3509, %v3837
      %v3839 = vpop.f32.mrf.mxu0
      %v3840 = vadd.f32 %v3511, %v3839
      %3841 = vmatmul.bf16.gmra.mxu0 %v1237
      %v3842 = vpop.f32.mrf.mxu0
      %v3843 = vadd.f32 %v3514, %v3842
      %v3844 = vpop.f32.mrf.mxu0
      %v3845 = vadd.f32 %v3516, %v3844
      %3846 = vmatmul.bf16.gmra.mxu0 %v1240
      %v3847 = vpop.f32.mrf.mxu0
      %v3848 = vadd.f32 %v3519, %v3847
      %v3849 = vpop.f32.mrf.mxu0
      %v3850 = vadd.f32 %v3521, %v3849
      %3851 = vmatmul.bf16.gmra.mxu0 %v1243
      %v3852 = vpop.f32.mrf.mxu0
      %v3853 = vadd.f32 %v3524, %v3852
      %v3854 = vpop.f32.mrf.mxu0
      %v3855 = vadd.f32 %v3526, %v3854
      %3856 = vmatmul.bf16.gmra.mxu0 %v1246
      %v3857 = vpop.f32.mrf.mxu0
      %v3858 = vadd.f32 %v3529, %v3857
      %v3859 = vpop.f32.mrf.mxu0
      %v3860 = vadd.f32 %v3531, %v3859
      %3861 = vmatmul.bf16.gmra.mxu0 %v1249
      %v3862 = vpop.f32.mrf.mxu0
      %v3863 = vadd.f32 %v3534, %v3862
      %v3864 = vpop.f32.mrf.mxu0
      %v3865 = vadd.f32 %v3536, %v3864
      %3866 = vmatmul.bf16.gmra.mxu0 %v1252
      %v3867 = vpop.f32.mrf.mxu0
      %v3868 = vadd.f32 %v3539, %v3867
      %v3869 = vpop.f32.mrf.mxu0
      %v3870 = vadd.f32 %v3541, %v3869
      %3871 = vmatmul.bf16.gmra.mxu0 %v1255
      %v3872 = vpop.f32.mrf.mxu0
      %v3873 = vadd.f32 %v3544, %v3872
      %v3874 = vpop.f32.mrf.mxu0
      %v3875 = vadd.f32 %v3546, %v3874
      %3876 = vmatmul.bf16.gmra.mxu0 %v1258
      %v3877 = vpop.f32.mrf.mxu0
      %v3878 = vadd.f32 %v3549, %v3877
      %v3879 = vpop.f32.mrf.mxu0
      %v3880 = vadd.f32 %v3551, %v3879
      %3881 = vmatmul.bf16.gmra.mxu0 %v1261
      %v3882 = vpop.f32.mrf.mxu0
      %v3883 = vadd.f32 %v3554, %v3882
      %v3884 = vpop.f32.mrf.mxu0
      %v3885 = vadd.f32 %v3556, %v3884
      %3886 = vmatmul.bf16.gmra.mxu0 %v1264
      %v3887 = vpop.f32.mrf.mxu0
      %v3888 = vadd.f32 %v3559, %v3887
      %v3889 = vpop.f32.mrf.mxu0
      %v3890 = vadd.f32 %v3561, %v3889
      %3891 = vmatmul.bf16.gmra.mxu0 %v1267
      %v3892 = vpop.f32.mrf.mxu0
      %v3893 = vadd.f32 %v3564, %v3892
      %v3894 = vpop.f32.mrf.mxu0
      %v3895 = vadd.f32 %v3566, %v3894
      %3896 = vmatmul.bf16.gmra.mxu0 %v1270
      %v3897 = vpop.f32.mrf.mxu0
      %v3898 = vadd.f32 %v3569, %v3897
      %v3899 = vpop.f32.mrf.mxu0
      %v3900 = vadd.f32 %v3571, %v3899
      %3901 = vmatmul.bf16.gmra.mxu0 %v1273
      %v3902 = vpop.f32.mrf.mxu0
      %v3903 = vadd.f32 %v3574, %v3902
      %v3904 = vpop.f32.mrf.mxu0
      %v3905 = vadd.f32 %v3576, %v3904
      %3906 = vdwg.mxu0
      %3907 = vmatpush.bf16.msra.mxu0 %v960
      %3908 = vmatpush.bf16.msra.mxu0 %v954
      %3909 = vmatpush.bf16.msra.mxu0 %v948
      %3910 = vmatpush.bf16.msra.mxu0 %v942
      %3911 = vmatpush.bf16.msra.mxu0 %v936
      %3912 = vmatpush.bf16.msra.mxu0 %v930
      %3913 = vmatpush.bf16.msra.mxu0 %v924
      %3914 = vmatpush.bf16.msra.mxu0 %v918
      %3915 = vmatmul.bf16.gmra.mxu0 %v436
      %v3916 = vpop.f32.mrf.mxu0
      %v3917 = vadd.f32 %v654, %v3916
      %v3918 = vpop.f32.mrf.mxu0
      %v3919 = vadd.f32 %v654, %v3918
      %3920 = vmatmul.bf16.gmra.mxu0 %v438
      %v3921 = vpop.f32.mrf.mxu0
      %v3922 = vadd.f32 %v654, %v3921
      %v3923 = vpop.f32.mrf.mxu0
      %v3924 = vadd.f32 %v654, %v3923
      %3925 = vmatmul.bf16.gmra.mxu0 %v440
      %v3926 = vpop.f32.mrf.mxu0
      %v3927 = vadd.f32 %v654, %v3926
      %v3928 = vpop.f32.mrf.mxu0
      %v3929 = vadd.f32 %v654, %v3928
      %3930 = vmatmul.bf16.gmra.mxu0 %v442
      %v3931 = vpop.f32.mrf.mxu0
      %v3932 = vadd.f32 %v654, %v3931
      %v3933 = vpop.f32.mrf.mxu0
      %v3934 = vadd.f32 %v654, %v3933
      %3935 = vmatmul.bf16.gmra.mxu0 %v444
      %v3936 = vpop.f32.mrf.mxu0
      %v3937 = vadd.f32 %v654, %v3936
      %v3938 = vpop.f32.mrf.mxu0
      %v3939 = vadd.f32 %v654, %v3938
      %3940 = vmatmul.bf16.gmra.mxu0 %v446
      %v3941 = vpop.f32.mrf.mxu0
      %v3942 = vadd.f32 %v654, %v3941
      %v3943 = vpop.f32.mrf.mxu0
      %v3944 = vadd.f32 %v654, %v3943
      %3945 = vmatmul.bf16.gmra.mxu0 %v448
      %v3946 = vpop.f32.mrf.mxu0
      %v3947 = vadd.f32 %v654, %v3946
      %v3948 = vpop.f32.mrf.mxu0
      %v3949 = vadd.f32 %v654, %v3948
      %3950 = vmatmul.bf16.gmra.mxu0 %v450
      %v3951 = vpop.f32.mrf.mxu0
      %v3952 = vadd.f32 %v654, %v3951
      %v3953 = vpop.f32.mrf.mxu0
      %v3954 = vadd.f32 %v654, %v3953
      %3955 = vmatmul.bf16.gmra.mxu0 %v452
      %v3956 = vpop.f32.mrf.mxu0
      %v3957 = vadd.f32 %v654, %v3956
      %v3958 = vpop.f32.mrf.mxu0
      %v3959 = vadd.f32 %v654, %v3958
      %3960 = vmatmul.bf16.gmra.mxu0 %v454
      %v3961 = vpop.f32.mrf.mxu0
      %v3962 = vadd.f32 %v654, %v3961
      %v3963 = vpop.f32.mrf.mxu0
      %v3964 = vadd.f32 %v654, %v3963
      %3965 = vmatmul.bf16.gmra.mxu0 %v456
      %v3966 = vpop.f32.mrf.mxu0
      %v3967 = vadd.f32 %v654, %v3966
      %v3968 = vpop.f32.mrf.mxu0
      %v3969 = vadd.f32 %v654, %v3968
      %3970 = vmatmul.bf16.gmra.mxu0 %v458
      %v3971 = vpop.f32.mrf.mxu0
      %v3972 = vadd.f32 %v654, %v3971
      %v3973 = vpop.f32.mrf.mxu0
      %v3974 = vadd.f32 %v654, %v3973
      %3975 = vmatmul.bf16.gmra.mxu0 %v460
      %v3976 = vpop.f32.mrf.mxu0
      %v3977 = vadd.f32 %v654, %v3976
      %v3978 = vpop.f32.mrf.mxu0
      %v3979 = vadd.f32 %v654, %v3978
      %3980 = vmatmul.bf16.gmra.mxu0 %v462
      %v3981 = vpop.f32.mrf.mxu0
      %v3982 = vadd.f32 %v654, %v3981
      %v3983 = vpop.f32.mrf.mxu0
      %v3984 = vadd.f32 %v654, %v3983
      %3985 = vmatmul.bf16.gmra.mxu0 %v464
      %v3986 = vpop.f32.mrf.mxu0
      %v3987 = vadd.f32 %v654, %v3986
      %v3988 = vpop.f32.mrf.mxu0
      %v3989 = vadd.f32 %v654, %v3988
      %3990 = vmatmul.bf16.gmra.mxu0 %v466
      %v3991 = vpop.f32.mrf.mxu0
      %v3992 = vadd.f32 %v654, %v3991
      %v3993 = vpop.f32.mrf.mxu0
      %v3994 = vadd.f32 %v654, %v3993
      %3995 = vmatmul.bf16.gmra.mxu0 %v468
      %v3996 = vpop.f32.mrf.mxu0
      %v3997 = vadd.f32 %v654, %v3996
      %v3998 = vpop.f32.mrf.mxu0
      %v3999 = vadd.f32 %v654, %v3998
      %4000 = vmatmul.bf16.gmra.mxu0 %v470
      %v4001 = vpop.f32.mrf.mxu0
      %v4002 = vadd.f32 %v654, %v4001
      %v4003 = vpop.f32.mrf.mxu0
      %v4004 = vadd.f32 %v654, %v4003
      %4005 = vmatmul.bf16.gmra.mxu0 %v472
      %v4006 = vpop.f32.mrf.mxu0
      %v4007 = vadd.f32 %v654, %v4006
      %v4008 = vpop.f32.mrf.mxu0
      %v4009 = vadd.f32 %v654, %v4008
      %4010 = vmatmul.bf16.gmra.mxu0 %v474
      %v4011 = vpop.f32.mrf.mxu0
      %v4012 = vadd.f32 %v654, %v4011
      %v4013 = vpop.f32.mrf.mxu0
      %v4014 = vadd.f32 %v654, %v4013
      %4015 = vmatmul.bf16.gmra.mxu0 %v476
      %v4016 = vpop.f32.mrf.mxu0
      %v4017 = vadd.f32 %v654, %v4016
      %v4018 = vpop.f32.mrf.mxu0
      %v4019 = vadd.f32 %v654, %v4018
      %4020 = vmatmul.bf16.gmra.mxu0 %v478
      %v4021 = vpop.f32.mrf.mxu0
      %v4022 = vadd.f32 %v654, %v4021
      %v4023 = vpop.f32.mrf.mxu0
      %v4024 = vadd.f32 %v654, %v4023
      %4025 = vmatmul.bf16.gmra.mxu0 %v480
      %v4026 = vpop.f32.mrf.mxu0
      %v4027 = vadd.f32 %v654, %v4026
      %v4028 = vpop.f32.mrf.mxu0
      %v4029 = vadd.f32 %v654, %v4028
      %4030 = vmatmul.bf16.gmra.mxu0 %v482
      %v4031 = vpop.f32.mrf.mxu0
      %v4032 = vadd.f32 %v654, %v4031
      %v4033 = vpop.f32.mrf.mxu0
      %v4034 = vadd.f32 %v654, %v4033
      %4035 = vmatmul.bf16.gmra.mxu0 %v484
      %v4036 = vpop.f32.mrf.mxu0
      %v4037 = vadd.f32 %v654, %v4036
      %v4038 = vpop.f32.mrf.mxu0
      %v4039 = vadd.f32 %v654, %v4038
      %4040 = vmatmul.bf16.gmra.mxu0 %v486
      %v4041 = vpop.f32.mrf.mxu0
      %v4042 = vadd.f32 %v654, %v4041
      %v4043 = vpop.f32.mrf.mxu0
      %v4044 = vadd.f32 %v654, %v4043
      %4045 = vmatmul.bf16.gmra.mxu0 %v488
      %v4046 = vpop.f32.mrf.mxu0
      %v4047 = vadd.f32 %v654, %v4046
      %v4048 = vpop.f32.mrf.mxu0
      %v4049 = vadd.f32 %v654, %v4048
      %4050 = vmatmul.bf16.gmra.mxu0 %v490
      %v4051 = vpop.f32.mrf.mxu0
      %v4052 = vadd.f32 %v654, %v4051
      %v4053 = vpop.f32.mrf.mxu0
      %v4054 = vadd.f32 %v654, %v4053
      %4055 = vmatmul.bf16.gmra.mxu0 %v492
      %v4056 = vpop.f32.mrf.mxu0
      %v4057 = vadd.f32 %v654, %v4056
      %v4058 = vpop.f32.mrf.mxu0
      %v4059 = vadd.f32 %v654, %v4058
      %4060 = vmatmul.bf16.gmra.mxu0 %v494
      %v4061 = vpop.f32.mrf.mxu0
      %v4062 = vadd.f32 %v654, %v4061
      %v4063 = vpop.f32.mrf.mxu0
      %v4064 = vadd.f32 %v654, %v4063
      %4065 = vmatmul.bf16.gmra.mxu0 %v496
      %v4066 = vpop.f32.mrf.mxu0
      %v4067 = vadd.f32 %v654, %v4066
      %v4068 = vpop.f32.mrf.mxu0
      %v4069 = vadd.f32 %v654, %v4068
      %4070 = vmatmul.bf16.gmra.mxu0 %v498
      %v4071 = vpop.f32.mrf.mxu0
      %v4072 = vadd.f32 %v654, %v4071
      %v4073 = vpop.f32.mrf.mxu0
      %v4074 = vadd.f32 %v654, %v4073
      %4075 = vmatmul.bf16.gmra.mxu0 %v500
      %v4076 = vpop.f32.mrf.mxu0
      %v4077 = vadd.f32 %v654, %v4076
      %v4078 = vpop.f32.mrf.mxu0
      %v4079 = vadd.f32 %v654, %v4078
      %4080 = vmatmul.bf16.gmra.mxu0 %v502
      %v4081 = vpop.f32.mrf.mxu0
      %v4082 = vadd.f32 %v654, %v4081
      %v4083 = vpop.f32.mrf.mxu0
      %v4084 = vadd.f32 %v654, %v4083
      %4085 = vmatmul.bf16.gmra.mxu0 %v504
      %v4086 = vpop.f32.mrf.mxu0
      %v4087 = vadd.f32 %v654, %v4086
      %v4088 = vpop.f32.mrf.mxu0
      %v4089 = vadd.f32 %v654, %v4088
      %4090 = vmatmul.bf16.gmra.mxu0 %v506
      %v4091 = vpop.f32.mrf.mxu0
      %v4092 = vadd.f32 %v654, %v4091
      %v4093 = vpop.f32.mrf.mxu0
      %v4094 = vadd.f32 %v654, %v4093
      %4095 = vmatmul.bf16.gmra.mxu0 %v508
      %v4096 = vpop.f32.mrf.mxu0
      %v4097 = vadd.f32 %v654, %v4096
      %v4098 = vpop.f32.mrf.mxu0
      %v4099 = vadd.f32 %v654, %v4098
      %4100 = vmatmul.bf16.gmra.mxu0 %v510
      %v4101 = vpop.f32.mrf.mxu0
      %v4102 = vadd.f32 %v654, %v4101
      %v4103 = vpop.f32.mrf.mxu0
      %v4104 = vadd.f32 %v654, %v4103
      %4105 = vmatmul.bf16.gmra.mxu0 %v512
      %v4106 = vpop.f32.mrf.mxu0
      %v4107 = vadd.f32 %v654, %v4106
      %v4108 = vpop.f32.mrf.mxu0
      %v4109 = vadd.f32 %v654, %v4108
      %4110 = vmatmul.bf16.gmra.mxu0 %v514
      %v4111 = vpop.f32.mrf.mxu0
      %v4112 = vadd.f32 %v654, %v4111
      %v4113 = vpop.f32.mrf.mxu0
      %v4114 = vadd.f32 %v654, %v4113
      %4115 = vmatmul.bf16.gmra.mxu0 %v516
      %v4116 = vpop.f32.mrf.mxu0
      %v4117 = vadd.f32 %v654, %v4116
      %v4118 = vpop.f32.mrf.mxu0
      %v4119 = vadd.f32 %v654, %v4118
      %4120 = vmatmul.bf16.gmra.mxu0 %v518
      %v4121 = vpop.f32.mrf.mxu0
      %v4122 = vadd.f32 %v654, %v4121
      %v4123 = vpop.f32.mrf.mxu0
      %v4124 = vadd.f32 %v654, %v4123
      %4125 = vmatmul.bf16.gmra.mxu0 %v520
      %v4126 = vpop.f32.mrf.mxu0
      %v4127 = vadd.f32 %v654, %v4126
      %v4128 = vpop.f32.mrf.mxu0
      %v4129 = vadd.f32 %v654, %v4128
      %4130 = vmatmul.bf16.gmra.mxu0 %v522
      %v4131 = vpop.f32.mrf.mxu0
      %v4132 = vadd.f32 %v654, %v4131
      %v4133 = vpop.f32.mrf.mxu0
      %v4134 = vadd.f32 %v654, %v4133
      %4135 = vmatmul.bf16.gmra.mxu0 %v524
      %v4136 = vpop.f32.mrf.mxu0
      %v4137 = vadd.f32 %v654, %v4136
      %v4138 = vpop.f32.mrf.mxu0
      %v4139 = vadd.f32 %v654, %v4138
      %4140 = vmatmul.bf16.gmra.mxu0 %v526
      %v4141 = vpop.f32.mrf.mxu0
      %v4142 = vadd.f32 %v654, %v4141
      %v4143 = vpop.f32.mrf.mxu0
      %v4144 = vadd.f32 %v654, %v4143
      %4145 = vmatmul.bf16.gmra.mxu0 %v528
      %v4146 = vpop.f32.mrf.mxu0
      %v4147 = vadd.f32 %v654, %v4146
      %v4148 = vpop.f32.mrf.mxu0
      %v4149 = vadd.f32 %v654, %v4148
      %4150 = vmatmul.bf16.gmra.mxu0 %v530
      %v4151 = vpop.f32.mrf.mxu0
      %v4152 = vadd.f32 %v654, %v4151
      %v4153 = vpop.f32.mrf.mxu0
      %v4154 = vadd.f32 %v654, %v4153
      %4155 = vmatmul.bf16.gmra.mxu0 %v532
      %v4156 = vpop.f32.mrf.mxu0
      %v4157 = vadd.f32 %v654, %v4156
      %v4158 = vpop.f32.mrf.mxu0
      %v4159 = vadd.f32 %v654, %v4158
      %4160 = vmatmul.bf16.gmra.mxu0 %v534
      %v4161 = vpop.f32.mrf.mxu0
      %v4162 = vadd.f32 %v654, %v4161
      %v4163 = vpop.f32.mrf.mxu0
      %v4164 = vadd.f32 %v654, %v4163
      %4165 = vmatmul.bf16.gmra.mxu0 %v536
      %v4166 = vpop.f32.mrf.mxu0
      %v4167 = vadd.f32 %v654, %v4166
      %v4168 = vpop.f32.mrf.mxu0
      %v4169 = vadd.f32 %v654, %v4168
      %4170 = vmatmul.bf16.gmra.mxu0 %v538
      %v4171 = vpop.f32.mrf.mxu0
      %v4172 = vadd.f32 %v654, %v4171
      %v4173 = vpop.f32.mrf.mxu0
      %v4174 = vadd.f32 %v654, %v4173
      %4175 = vmatmul.bf16.gmra.mxu0 %v540
      %v4176 = vpop.f32.mrf.mxu0
      %v4177 = vadd.f32 %v654, %v4176
      %v4178 = vpop.f32.mrf.mxu0
      %v4179 = vadd.f32 %v654, %v4178
      %4180 = vmatmul.bf16.gmra.mxu0 %v542
      %v4181 = vpop.f32.mrf.mxu0
      %v4182 = vadd.f32 %v654, %v4181
      %v4183 = vpop.f32.mrf.mxu0
      %v4184 = vadd.f32 %v654, %v4183
      %4185 = vmatmul.bf16.gmra.mxu0 %v544
      %v4186 = vpop.f32.mrf.mxu0
      %v4187 = vadd.f32 %v654, %v4186
      %v4188 = vpop.f32.mrf.mxu0
      %v4189 = vadd.f32 %v654, %v4188
      %4190 = vmatmul.bf16.gmra.mxu0 %v546
      %v4191 = vpop.f32.mrf.mxu0
      %v4192 = vadd.f32 %v654, %v4191
      %v4193 = vpop.f32.mrf.mxu0
      %v4194 = vadd.f32 %v654, %v4193
      %4195 = vmatmul.bf16.gmra.mxu0 %v548
      %v4196 = vpop.f32.mrf.mxu0
      %v4197 = vadd.f32 %v654, %v4196
      %v4198 = vpop.f32.mrf.mxu0
      %v4199 = vadd.f32 %v654, %v4198
      %4200 = vmatmul.bf16.gmra.mxu0 %v550
      %v4201 = vpop.f32.mrf.mxu0
      %v4202 = vadd.f32 %v654, %v4201
      %v4203 = vpop.f32.mrf.mxu0
      %v4204 = vadd.f32 %v654, %v4203
      %4205 = vmatmul.bf16.gmra.mxu0 %v552
      %v4206 = vpop.f32.mrf.mxu0
      %v4207 = vadd.f32 %v654, %v4206
      %v4208 = vpop.f32.mrf.mxu0
      %v4209 = vadd.f32 %v654, %v4208
      %4210 = vmatmul.bf16.gmra.mxu0 %v554
      %v4211 = vpop.f32.mrf.mxu0
      %v4212 = vadd.f32 %v654, %v4211
      %v4213 = vpop.f32.mrf.mxu0
      %v4214 = vadd.f32 %v654, %v4213
      %4215 = vmatmul.bf16.gmra.mxu0 %v556
      %v4216 = vpop.f32.mrf.mxu0
      %v4217 = vadd.f32 %v654, %v4216
      %v4218 = vpop.f32.mrf.mxu0
      %v4219 = vadd.f32 %v654, %v4218
      %4220 = vmatmul.bf16.gmra.mxu0 %v558
      %v4221 = vpop.f32.mrf.mxu0
      %v4222 = vadd.f32 %v654, %v4221
      %v4223 = vpop.f32.mrf.mxu0
      %v4224 = vadd.f32 %v654, %v4223
      %4225 = vmatmul.bf16.gmra.mxu0 %v560
      %v4226 = vpop.f32.mrf.mxu0
      %v4227 = vadd.f32 %v654, %v4226
      %v4228 = vpop.f32.mrf.mxu0
      %v4229 = vadd.f32 %v654, %v4228
      %4230 = vmatmul.bf16.gmra.mxu0 %v562
      %v4231 = vpop.f32.mrf.mxu0
      %v4232 = vadd.f32 %v654, %v4231
      %v4233 = vpop.f32.mrf.mxu0
      %v4234 = vadd.f32 %v654, %v4233
      %4235 = vdwg.mxu0
      %4236 = vmatpush.bf16.msra.mxu0 0
      %4237 = vmatpush.bf16.msra.mxu0 0
      %4238 = vmatpush.bf16.msra.mxu0 %v996
      %4239 = vmatpush.bf16.msra.mxu0 %v990
      %4240 = vmatpush.bf16.msra.mxu0 %v984
      %4241 = vmatpush.bf16.msra.mxu0 %v978
      %4242 = vmatpush.bf16.msra.mxu0 %v972
      %4243 = vmatpush.bf16.msra.mxu0 %v966
      %4244 = vmatmul.bf16.gmra.mxu0 %v1084
      %v4245 = vpop.f32.mrf.mxu0
      %v4246 = vadd.f32 %v3917, %v4245
      %v4247 = vpop.f32.mrf.mxu0
      %v4248 = vadd.f32 %v3919, %v4247
      %4249 = vmatmul.bf16.gmra.mxu0 %v1087
      %v4250 = vpop.f32.mrf.mxu0
      %v4251 = vadd.f32 %v3922, %v4250
      %v4252 = vpop.f32.mrf.mxu0
      %v4253 = vadd.f32 %v3924, %v4252
      %4254 = vmatmul.bf16.gmra.mxu0 %v1090
      %v4255 = vpop.f32.mrf.mxu0
      %v4256 = vadd.f32 %v3927, %v4255
      %v4257 = vpop.f32.mrf.mxu0
      %v4258 = vadd.f32 %v3929, %v4257
      %4259 = vmatmul.bf16.gmra.mxu0 %v1093
      %v4260 = vpop.f32.mrf.mxu0
      %v4261 = vadd.f32 %v3932, %v4260
      %v4262 = vpop.f32.mrf.mxu0
      %v4263 = vadd.f32 %v3934, %v4262
      %4264 = vmatmul.bf16.gmra.mxu0 %v1096
      %v4265 = vpop.f32.mrf.mxu0
      %v4266 = vadd.f32 %v3937, %v4265
      %v4267 = vpop.f32.mrf.mxu0
      %v4268 = vadd.f32 %v3939, %v4267
      %4269 = vmatmul.bf16.gmra.mxu0 %v1099
      %v4270 = vpop.f32.mrf.mxu0
      %v4271 = vadd.f32 %v3942, %v4270
      %v4272 = vpop.f32.mrf.mxu0
      %v4273 = vadd.f32 %v3944, %v4272
      %4274 = vmatmul.bf16.gmra.mxu0 %v1102
      %v4275 = vpop.f32.mrf.mxu0
      %v4276 = vadd.f32 %v3947, %v4275
      %v4277 = vpop.f32.mrf.mxu0
      %v4278 = vadd.f32 %v3949, %v4277
      %4279 = vmatmul.bf16.gmra.mxu0 %v1105
      %v4280 = vpop.f32.mrf.mxu0
      %v4281 = vadd.f32 %v3952, %v4280
      %v4282 = vpop.f32.mrf.mxu0
      %v4283 = vadd.f32 %v3954, %v4282
      %4284 = vmatmul.bf16.gmra.mxu0 %v1108
      %v4285 = vpop.f32.mrf.mxu0
      %v4286 = vadd.f32 %v3957, %v4285
      %v4287 = vpop.f32.mrf.mxu0
      %v4288 = vadd.f32 %v3959, %v4287
      %4289 = vmatmul.bf16.gmra.mxu0 %v1111
      %v4290 = vpop.f32.mrf.mxu0
      %v4291 = vadd.f32 %v3962, %v4290
      %v4292 = vpop.f32.mrf.mxu0
      %v4293 = vadd.f32 %v3964, %v4292
      %4294 = vmatmul.bf16.gmra.mxu0 %v1114
      %v4295 = vpop.f32.mrf.mxu0
      %v4296 = vadd.f32 %v3967, %v4295
      %v4297 = vpop.f32.mrf.mxu0
      %v4298 = vadd.f32 %v3969, %v4297
      %4299 = vmatmul.bf16.gmra.mxu0 %v1117
      %v4300 = vpop.f32.mrf.mxu0
      %v4301 = vadd.f32 %v3972, %v4300
      %v4302 = vpop.f32.mrf.mxu0
      %v4303 = vadd.f32 %v3974, %v4302
      %4304 = vmatmul.bf16.gmra.mxu0 %v1120
      %v4305 = vpop.f32.mrf.mxu0
      %v4306 = vadd.f32 %v3977, %v4305
      %v4307 = vpop.f32.mrf.mxu0
      %v4308 = vadd.f32 %v3979, %v4307
      %4309 = vmatmul.bf16.gmra.mxu0 %v1123
      %v4310 = vpop.f32.mrf.mxu0
      %v4311 = vadd.f32 %v3982, %v4310
      %v4312 = vpop.f32.mrf.mxu0
      %v4313 = vadd.f32 %v3984, %v4312
      %4314 = vmatmul.bf16.gmra.mxu0 %v1126
      %v4315 = vpop.f32.mrf.mxu0
      %v4316 = vadd.f32 %v3987, %v4315
      %v4317 = vpop.f32.mrf.mxu0
      %v4318 = vadd.f32 %v3989, %v4317
      %4319 = vmatmul.bf16.gmra.mxu0 %v1129
      %v4320 = vpop.f32.mrf.mxu0
      %v4321 = vadd.f32 %v3992, %v4320
      %v4322 = vpop.f32.mrf.mxu0
      %v4323 = vadd.f32 %v3994, %v4322
      %4324 = vmatmul.bf16.gmra.mxu0 %v1132
      %v4325 = vpop.f32.mrf.mxu0
      %v4326 = vadd.f32 %v3997, %v4325
      %v4327 = vpop.f32.mrf.mxu0
      %v4328 = vadd.f32 %v3999, %v4327
      %4329 = vmatmul.bf16.gmra.mxu0 %v1135
      %v4330 = vpop.f32.mrf.mxu0
      %v4331 = vadd.f32 %v4002, %v4330
      %v4332 = vpop.f32.mrf.mxu0
      %v4333 = vadd.f32 %v4004, %v4332
      %4334 = vmatmul.bf16.gmra.mxu0 %v1138
      %v4335 = vpop.f32.mrf.mxu0
      %v4336 = vadd.f32 %v4007, %v4335
      %v4337 = vpop.f32.mrf.mxu0
      %v4338 = vadd.f32 %v4009, %v4337
      %4339 = vmatmul.bf16.gmra.mxu0 %v1141
      %v4340 = vpop.f32.mrf.mxu0
      %v4341 = vadd.f32 %v4012, %v4340
      %v4342 = vpop.f32.mrf.mxu0
      %v4343 = vadd.f32 %v4014, %v4342
      %4344 = vmatmul.bf16.gmra.mxu0 %v1144
      %v4345 = vpop.f32.mrf.mxu0
      %v4346 = vadd.f32 %v4017, %v4345
      %v4347 = vpop.f32.mrf.mxu0
      %v4348 = vadd.f32 %v4019, %v4347
      %4349 = vmatmul.bf16.gmra.mxu0 %v1147
      %v4350 = vpop.f32.mrf.mxu0
      %v4351 = vadd.f32 %v4022, %v4350
      %v4352 = vpop.f32.mrf.mxu0
      %v4353 = vadd.f32 %v4024, %v4352
      %4354 = vmatmul.bf16.gmra.mxu0 %v1150
      %v4355 = vpop.f32.mrf.mxu0
      %v4356 = vadd.f32 %v4027, %v4355
      %v4357 = vpop.f32.mrf.mxu0
      %v4358 = vadd.f32 %v4029, %v4357
      %4359 = vmatmul.bf16.gmra.mxu0 %v1153
      %v4360 = vpop.f32.mrf.mxu0
      %v4361 = vadd.f32 %v4032, %v4360
      %v4362 = vpop.f32.mrf.mxu0
      %v4363 = vadd.f32 %v4034, %v4362
      %4364 = vmatmul.bf16.gmra.mxu0 %v1156
      %v4365 = vpop.f32.mrf.mxu0
      %v4366 = vadd.f32 %v4037, %v4365
      %v4367 = vpop.f32.mrf.mxu0
      %v4368 = vadd.f32 %v4039, %v4367
      %4369 = vmatmul.bf16.gmra.mxu0 %v1159
      %v4370 = vpop.f32.mrf.mxu0
      %v4371 = vadd.f32 %v4042, %v4370
      %v4372 = vpop.f32.mrf.mxu0
      %v4373 = vadd.f32 %v4044, %v4372
      %4374 = vmatmul.bf16.gmra.mxu0 %v1162
      %v4375 = vpop.f32.mrf.mxu0
      %v4376 = vadd.f32 %v4047, %v4375
      %v4377 = vpop.f32.mrf.mxu0
      %v4378 = vadd.f32 %v4049, %v4377
      %4379 = vmatmul.bf16.gmra.mxu0 %v1165
      %v4380 = vpop.f32.mrf.mxu0
      %v4381 = vadd.f32 %v4052, %v4380
      %v4382 = vpop.f32.mrf.mxu0
      %v4383 = vadd.f32 %v4054, %v4382
      %4384 = vmatmul.bf16.gmra.mxu0 %v1168
      %v4385 = vpop.f32.mrf.mxu0
      %v4386 = vadd.f32 %v4057, %v4385
      %v4387 = vpop.f32.mrf.mxu0
      %v4388 = vadd.f32 %v4059, %v4387
      %4389 = vmatmul.bf16.gmra.mxu0 %v1171
      %v4390 = vpop.f32.mrf.mxu0
      %v4391 = vadd.f32 %v4062, %v4390
      %v4392 = vpop.f32.mrf.mxu0
      %v4393 = vadd.f32 %v4064, %v4392
      %4394 = vmatmul.bf16.gmra.mxu0 %v1174
      %v4395 = vpop.f32.mrf.mxu0
      %v4396 = vadd.f32 %v4067, %v4395
      %v4397 = vpop.f32.mrf.mxu0
      %v4398 = vadd.f32 %v4069, %v4397
      %4399 = vmatmul.bf16.gmra.mxu0 %v1177
      %v4400 = vpop.f32.mrf.mxu0
      %v4401 = vadd.f32 %v4072, %v4400
      %v4402 = vpop.f32.mrf.mxu0
      %v4403 = vadd.f32 %v4074, %v4402
      %4404 = vmatmul.bf16.gmra.mxu0 %v1180
      %v4405 = vpop.f32.mrf.mxu0
      %v4406 = vadd.f32 %v4077, %v4405
      %v4407 = vpop.f32.mrf.mxu0
      %v4408 = vadd.f32 %v4079, %v4407
      %4409 = vmatmul.bf16.gmra.mxu0 %v1183
      %v4410 = vpop.f32.mrf.mxu0
      %v4411 = vadd.f32 %v4082, %v4410
      %v4412 = vpop.f32.mrf.mxu0
      %v4413 = vadd.f32 %v4084, %v4412
      %4414 = vmatmul.bf16.gmra.mxu0 %v1186
      %v4415 = vpop.f32.mrf.mxu0
      %v4416 = vadd.f32 %v4087, %v4415
      %v4417 = vpop.f32.mrf.mxu0
      %v4418 = vadd.f32 %v4089, %v4417
      %4419 = vmatmul.bf16.gmra.mxu0 %v1189
      %v4420 = vpop.f32.mrf.mxu0
      %v4421 = vadd.f32 %v4092, %v4420
      %v4422 = vpop.f32.mrf.mxu0
      %v4423 = vadd.f32 %v4094, %v4422
      %4424 = vmatmul.bf16.gmra.mxu0 %v1192
      %v4425 = vpop.f32.mrf.mxu0
      %v4426 = vadd.f32 %v4097, %v4425
      %v4427 = vpop.f32.mrf.mxu0
      %v4428 = vadd.f32 %v4099, %v4427
      %4429 = vmatmul.bf16.gmra.mxu0 %v1195
      %v4430 = vpop.f32.mrf.mxu0
      %v4431 = vadd.f32 %v4102, %v4430
      %v4432 = vpop.f32.mrf.mxu0
      %v4433 = vadd.f32 %v4104, %v4432
      %4434 = vmatmul.bf16.gmra.mxu0 %v1198
      %v4435 = vpop.f32.mrf.mxu0
      %v4436 = vadd.f32 %v4107, %v4435
      %v4437 = vpop.f32.mrf.mxu0
      %v4438 = vadd.f32 %v4109, %v4437
      %4439 = vmatmul.bf16.gmra.mxu0 %v1201
      %v4440 = vpop.f32.mrf.mxu0
      %v4441 = vadd.f32 %v4112, %v4440
      %v4442 = vpop.f32.mrf.mxu0
      %v4443 = vadd.f32 %v4114, %v4442
      %4444 = vmatmul.bf16.gmra.mxu0 %v1204
      %v4445 = vpop.f32.mrf.mxu0
      %v4446 = vadd.f32 %v4117, %v4445
      %v4447 = vpop.f32.mrf.mxu0
      %v4448 = vadd.f32 %v4119, %v4447
      %4449 = vmatmul.bf16.gmra.mxu0 %v1207
      %v4450 = vpop.f32.mrf.mxu0
      %v4451 = vadd.f32 %v4122, %v4450
      %v4452 = vpop.f32.mrf.mxu0
      %v4453 = vadd.f32 %v4124, %v4452
      %4454 = vmatmul.bf16.gmra.mxu0 %v1210
      %v4455 = vpop.f32.mrf.mxu0
      %v4456 = vadd.f32 %v4127, %v4455
      %v4457 = vpop.f32.mrf.mxu0
      %v4458 = vadd.f32 %v4129, %v4457
      %4459 = vmatmul.bf16.gmra.mxu0 %v1213
      %v4460 = vpop.f32.mrf.mxu0
      %v4461 = vadd.f32 %v4132, %v4460
      %v4462 = vpop.f32.mrf.mxu0
      %v4463 = vadd.f32 %v4134, %v4462
      %4464 = vmatmul.bf16.gmra.mxu0 %v1216
      %v4465 = vpop.f32.mrf.mxu0
      %v4466 = vadd.f32 %v4137, %v4465
      %v4467 = vpop.f32.mrf.mxu0
      %v4468 = vadd.f32 %v4139, %v4467
      %4469 = vmatmul.bf16.gmra.mxu0 %v1219
      %v4470 = vpop.f32.mrf.mxu0
      %v4471 = vadd.f32 %v4142, %v4470
      %v4472 = vpop.f32.mrf.mxu0
      %v4473 = vadd.f32 %v4144, %v4472
      %4474 = vmatmul.bf16.gmra.mxu0 %v1222
      %v4475 = vpop.f32.mrf.mxu0
      %v4476 = vadd.f32 %v4147, %v4475
      %v4477 = vpop.f32.mrf.mxu0
      %v4478 = vadd.f32 %v4149, %v4477
      %4479 = vmatmul.bf16.gmra.mxu0 %v1225
      %v4480 = vpop.f32.mrf.mxu0
      %v4481 = vadd.f32 %v4152, %v4480
      %v4482 = vpop.f32.mrf.mxu0
      %v4483 = vadd.f32 %v4154, %v4482
      %4484 = vmatmul.bf16.gmra.mxu0 %v1228
      %v4485 = vpop.f32.mrf.mxu0
      %v4486 = vadd.f32 %v4157, %v4485
      %v4487 = vpop.f32.mrf.mxu0
      %v4488 = vadd.f32 %v4159, %v4487
      %4489 = vmatmul.bf16.gmra.mxu0 %v1231
      %v4490 = vpop.f32.mrf.mxu0
      %v4491 = vadd.f32 %v4162, %v4490
      %v4492 = vpop.f32.mrf.mxu0
      %v4493 = vadd.f32 %v4164, %v4492
      %4494 = vmatmul.bf16.gmra.mxu0 %v1234
      %v4495 = vpop.f32.mrf.mxu0
      %v4496 = vadd.f32 %v4167, %v4495
      %v4497 = vpop.f32.mrf.mxu0
      %v4498 = vadd.f32 %v4169, %v4497
      %4499 = vmatmul.bf16.gmra.mxu0 %v1237
      %v4500 = vpop.f32.mrf.mxu0
      %v4501 = vadd.f32 %v4172, %v4500
      %v4502 = vpop.f32.mrf.mxu0
      %v4503 = vadd.f32 %v4174, %v4502
      %4504 = vmatmul.bf16.gmra.mxu0 %v1240
      %v4505 = vpop.f32.mrf.mxu0
      %v4506 = vadd.f32 %v4177, %v4505
      %v4507 = vpop.f32.mrf.mxu0
      %v4508 = vadd.f32 %v4179, %v4507
      %4509 = vmatmul.bf16.gmra.mxu0 %v1243
      %v4510 = vpop.f32.mrf.mxu0
      %v4511 = vadd.f32 %v4182, %v4510
      %v4512 = vpop.f32.mrf.mxu0
      %v4513 = vadd.f32 %v4184, %v4512
      %4514 = vmatmul.bf16.gmra.mxu0 %v1246
      %v4515 = vpop.f32.mrf.mxu0
      %v4516 = vadd.f32 %v4187, %v4515
      %v4517 = vpop.f32.mrf.mxu0
      %v4518 = vadd.f32 %v4189, %v4517
      %4519 = vmatmul.bf16.gmra.mxu0 %v1249
      %v4520 = vpop.f32.mrf.mxu0
      %v4521 = vadd.f32 %v4192, %v4520
      %v4522 = vpop.f32.mrf.mxu0
      %v4523 = vadd.f32 %v4194, %v4522
      %4524 = vmatmul.bf16.gmra.mxu0 %v1252
      %v4525 = vpop.f32.mrf.mxu0
      %v4526 = vadd.f32 %v4197, %v4525
      %v4527 = vpop.f32.mrf.mxu0
      %v4528 = vadd.f32 %v4199, %v4527
      %4529 = vmatmul.bf16.gmra.mxu0 %v1255
      %v4530 = vpop.f32.mrf.mxu0
      %v4531 = vadd.f32 %v4202, %v4530
      %v4532 = vpop.f32.mrf.mxu0
      %v4533 = vadd.f32 %v4204, %v4532
      %4534 = vmatmul.bf16.gmra.mxu0 %v1258
      %v4535 = vpop.f32.mrf.mxu0
      %v4536 = vadd.f32 %v4207, %v4535
      %v4537 = vpop.f32.mrf.mxu0
      %v4538 = vadd.f32 %v4209, %v4537
      %4539 = vmatmul.bf16.gmra.mxu0 %v1261
      %v4540 = vpop.f32.mrf.mxu0
      %v4541 = vadd.f32 %v4212, %v4540
      %v4542 = vpop.f32.mrf.mxu0
      %v4543 = vadd.f32 %v4214, %v4542
      %4544 = vmatmul.bf16.gmra.mxu0 %v1264
      %v4545 = vpop.f32.mrf.mxu0
      %v4546 = vadd.f32 %v4217, %v4545
      %v4547 = vpop.f32.mrf.mxu0
      %v4548 = vadd.f32 %v4219, %v4547
      %4549 = vmatmul.bf16.gmra.mxu0 %v1267
      %v4550 = vpop.f32.mrf.mxu0
      %v4551 = vadd.f32 %v4222, %v4550
      %v4552 = vpop.f32.mrf.mxu0
      %v4553 = vadd.f32 %v4224, %v4552
      %4554 = vmatmul.bf16.gmra.mxu0 %v1270
      %v4555 = vpop.f32.mrf.mxu0
      %v4556 = vadd.f32 %v4227, %v4555
      %v4557 = vpop.f32.mrf.mxu0
      %v4558 = vadd.f32 %v4229, %v4557
      %4559 = vmatmul.bf16.gmra.mxu0 %v1273
      %v4560 = vpop.f32.mrf.mxu0
      %v4561 = vadd.f32 %v4232, %v4560
      %v4562 = vpop.f32.mrf.mxu0
      %v4563 = vadd.f32 %v4234, %v4562
      %4564 = vdwg.mxu0
      %4565 = vmatpush.bf16.msra.mxu0 %v961
      %4566 = vmatpush.bf16.msra.mxu0 %v955
      %4567 = vmatpush.bf16.msra.mxu0 %v949
      %4568 = vmatpush.bf16.msra.mxu0 %v943
      %4569 = vmatpush.bf16.msra.mxu0 %v937
      %4570 = vmatpush.bf16.msra.mxu0 %v931
      %4571 = vmatpush.bf16.msra.mxu0 %v925
      %4572 = vmatpush.bf16.msra.mxu0 %v919
      %4573 = vmatmul.bf16.gmra.mxu0 %v436
      %v4574 = vpop.f32.mrf.mxu0
      %v4575 = vadd.f32 %v655, %v4574
      %v4576 = vpop.f32.mrf.mxu0
      %v4577 = vadd.f32 %v655, %v4576
      %4578 = vmatmul.bf16.gmra.mxu0 %v438
      %v4579 = vpop.f32.mrf.mxu0
      %v4580 = vadd.f32 %v655, %v4579
      %v4581 = vpop.f32.mrf.mxu0
      %v4582 = vadd.f32 %v655, %v4581
      %4583 = vmatmul.bf16.gmra.mxu0 %v440
      %v4584 = vpop.f32.mrf.mxu0
      %v4585 = vadd.f32 %v655, %v4584
      %v4586 = vpop.f32.mrf.mxu0
      %v4587 = vadd.f32 %v655, %v4586
      %4588 = vmatmul.bf16.gmra.mxu0 %v442
      %v4589 = vpop.f32.mrf.mxu0
      %v4590 = vadd.f32 %v655, %v4589
      %v4591 = vpop.f32.mrf.mxu0
      %v4592 = vadd.f32 %v655, %v4591
      %4593 = vmatmul.bf16.gmra.mxu0 %v444
      %v4594 = vpop.f32.mrf.mxu0
      %v4595 = vadd.f32 %v655, %v4594
      %v4596 = vpop.f32.mrf.mxu0
      %v4597 = vadd.f32 %v655, %v4596
      %4598 = vmatmul.bf16.gmra.mxu0 %v446
      %v4599 = vpop.f32.mrf.mxu0
      %v4600 = vadd.f32 %v655, %v4599
      %v4601 = vpop.f32.mrf.mxu0
      %v4602 = vadd.f32 %v655, %v4601
      %4603 = vmatmul.bf16.gmra.mxu0 %v448
      %v4604 = vpop.f32.mrf.mxu0
      %v4605 = vadd.f32 %v655, %v4604
      %v4606 = vpop.f32.mrf.mxu0
      %v4607 = vadd.f32 %v655, %v4606
      %4608 = vmatmul.bf16.gmra.mxu0 %v450
      %v4609 = vpop.f32.mrf.mxu0
      %v4610 = vadd.f32 %v655, %v4609
      %v4611 = vpop.f32.mrf.mxu0
      %v4612 = vadd.f32 %v655, %v4611
      %4613 = vmatmul.bf16.gmra.mxu0 %v452
      %v4614 = vpop.f32.mrf.mxu0
      %v4615 = vadd.f32 %v655, %v4614
      %v4616 = vpop.f32.mrf.mxu0
      %v4617 = vadd.f32 %v655, %v4616
      %4618 = vmatmul.bf16.gmra.mxu0 %v454
      %v4619 = vpop.f32.mrf.mxu0
      %v4620 = vadd.f32 %v655, %v4619
      %v4621 = vpop.f32.mrf.mxu0
      %v4622 = vadd.f32 %v655, %v4621
      %4623 = vmatmul.bf16.gmra.mxu0 %v456
      %v4624 = vpop.f32.mrf.mxu0
      %v4625 = vadd.f32 %v655, %v4624
      %v4626 = vpop.f32.mrf.mxu0
      %v4627 = vadd.f32 %v655, %v4626
      %4628 = vmatmul.bf16.gmra.mxu0 %v458
      %v4629 = vpop.f32.mrf.mxu0
      %v4630 = vadd.f32 %v655, %v4629
      %v4631 = vpop.f32.mrf.mxu0
      %v4632 = vadd.f32 %v655, %v4631
      %4633 = vmatmul.bf16.gmra.mxu0 %v460
      %v4634 = vpop.f32.mrf.mxu0
      %v4635 = vadd.f32 %v655, %v4634
      %v4636 = vpop.f32.mrf.mxu0
      %v4637 = vadd.f32 %v655, %v4636
      %4638 = vmatmul.bf16.gmra.mxu0 %v462
      %v4639 = vpop.f32.mrf.mxu0
      %v4640 = vadd.f32 %v655, %v4639
      %v4641 = vpop.f32.mrf.mxu0
      %v4642 = vadd.f32 %v655, %v4641
      %4643 = vmatmul.bf16.gmra.mxu0 %v464
      %v4644 = vpop.f32.mrf.mxu0
      %v4645 = vadd.f32 %v655, %v4644
      %v4646 = vpop.f32.mrf.mxu0
      %v4647 = vadd.f32 %v655, %v4646
      %4648 = vmatmul.bf16.gmra.mxu0 %v466
      %v4649 = vpop.f32.mrf.mxu0
      %v4650 = vadd.f32 %v655, %v4649
      %v4651 = vpop.f32.mrf.mxu0
      %v4652 = vadd.f32 %v655, %v4651
      %4653 = vmatmul.bf16.gmra.mxu0 %v468
      %v4654 = vpop.f32.mrf.mxu0
      %v4655 = vadd.f32 %v655, %v4654
      %v4656 = vpop.f32.mrf.mxu0
      %v4657 = vadd.f32 %v655, %v4656
      %4658 = vmatmul.bf16.gmra.mxu0 %v470
      %v4659 = vpop.f32.mrf.mxu0
      %v4660 = vadd.f32 %v655, %v4659
      %v4661 = vpop.f32.mrf.mxu0
      %v4662 = vadd.f32 %v655, %v4661
      %4663 = vmatmul.bf16.gmra.mxu0 %v472
      %v4664 = vpop.f32.mrf.mxu0
      %v4665 = vadd.f32 %v655, %v4664
      %v4666 = vpop.f32.mrf.mxu0
      %v4667 = vadd.f32 %v655, %v4666
      %4668 = vmatmul.bf16.gmra.mxu0 %v474
      %v4669 = vpop.f32.mrf.mxu0
      %v4670 = vadd.f32 %v655, %v4669
      %v4671 = vpop.f32.mrf.mxu0
      %v4672 = vadd.f32 %v655, %v4671
      %4673 = vmatmul.bf16.gmra.mxu0 %v476
      %v4674 = vpop.f32.mrf.mxu0
      %v4675 = vadd.f32 %v655, %v4674
      %v4676 = vpop.f32.mrf.mxu0
      %v4677 = vadd.f32 %v655, %v4676
      %4678 = vmatmul.bf16.gmra.mxu0 %v478
      %v4679 = vpop.f32.mrf.mxu0
      %v4680 = vadd.f32 %v655, %v4679
      %v4681 = vpop.f32.mrf.mxu0
      %v4682 = vadd.f32 %v655, %v4681
      %4683 = vmatmul.bf16.gmra.mxu0 %v480
      %v4684 = vpop.f32.mrf.mxu0
      %v4685 = vadd.f32 %v655, %v4684
      %v4686 = vpop.f32.mrf.mxu0
      %v4687 = vadd.f32 %v655, %v4686
      %4688 = vmatmul.bf16.gmra.mxu0 %v482
      %v4689 = vpop.f32.mrf.mxu0
      %v4690 = vadd.f32 %v655, %v4689
      %v4691 = vpop.f32.mrf.mxu0
      %v4692 = vadd.f32 %v655, %v4691
      %4693 = vmatmul.bf16.gmra.mxu0 %v484
      %v4694 = vpop.f32.mrf.mxu0
      %v4695 = vadd.f32 %v655, %v4694
      %v4696 = vpop.f32.mrf.mxu0
      %v4697 = vadd.f32 %v655, %v4696
      %4698 = vmatmul.bf16.gmra.mxu0 %v486
      %v4699 = vpop.f32.mrf.mxu0
      %v4700 = vadd.f32 %v655, %v4699
      %v4701 = vpop.f32.mrf.mxu0
      %v4702 = vadd.f32 %v655, %v4701
      %4703 = vmatmul.bf16.gmra.mxu0 %v488
      %v4704 = vpop.f32.mrf.mxu0
      %v4705 = vadd.f32 %v655, %v4704
      %v4706 = vpop.f32.mrf.mxu0
      %v4707 = vadd.f32 %v655, %v4706
      %4708 = vmatmul.bf16.gmra.mxu0 %v490
      %v4709 = vpop.f32.mrf.mxu0
      %v4710 = vadd.f32 %v655, %v4709
      %v4711 = vpop.f32.mrf.mxu0
      %v4712 = vadd.f32 %v655, %v4711
      %4713 = vmatmul.bf16.gmra.mxu0 %v492
      %v4714 = vpop.f32.mrf.mxu0
      %v4715 = vadd.f32 %v655, %v4714
      %v4716 = vpop.f32.mrf.mxu0
      %v4717 = vadd.f32 %v655, %v4716
      %4718 = vmatmul.bf16.gmra.mxu0 %v494
      %v4719 = vpop.f32.mrf.mxu0
      %v4720 = vadd.f32 %v655, %v4719
      %v4721 = vpop.f32.mrf.mxu0
      %v4722 = vadd.f32 %v655, %v4721
      %4723 = vmatmul.bf16.gmra.mxu0 %v496
      %v4724 = vpop.f32.mrf.mxu0
      %v4725 = vadd.f32 %v655, %v4724
      %v4726 = vpop.f32.mrf.mxu0
      %v4727 = vadd.f32 %v655, %v4726
      %4728 = vmatmul.bf16.gmra.mxu0 %v498
      %v4729 = vpop.f32.mrf.mxu0
      %v4730 = vadd.f32 %v655, %v4729
      %v4731 = vpop.f32.mrf.mxu0
      %v4732 = vadd.f32 %v655, %v4731
      %4733 = vmatmul.bf16.gmra.mxu0 %v500
      %v4734 = vpop.f32.mrf.mxu0
      %v4735 = vadd.f32 %v655, %v4734
      %v4736 = vpop.f32.mrf.mxu0
      %v4737 = vadd.f32 %v655, %v4736
      %4738 = vmatmul.bf16.gmra.mxu0 %v502
      %v4739 = vpop.f32.mrf.mxu0
      %v4740 = vadd.f32 %v655, %v4739
      %v4741 = vpop.f32.mrf.mxu0
      %v4742 = vadd.f32 %v655, %v4741
      %4743 = vmatmul.bf16.gmra.mxu0 %v504
      %v4744 = vpop.f32.mrf.mxu0
      %v4745 = vadd.f32 %v655, %v4744
      %v4746 = vpop.f32.mrf.mxu0
      %v4747 = vadd.f32 %v655, %v4746
      %4748 = vmatmul.bf16.gmra.mxu0 %v506
      %v4749 = vpop.f32.mrf.mxu0
      %v4750 = vadd.f32 %v655, %v4749
      %v4751 = vpop.f32.mrf.mxu0
      %v4752 = vadd.f32 %v655, %v4751
      %4753 = vmatmul.bf16.gmra.mxu0 %v508
      %v4754 = vpop.f32.mrf.mxu0
      %v4755 = vadd.f32 %v655, %v4754
      %v4756 = vpop.f32.mrf.mxu0
      %v4757 = vadd.f32 %v655, %v4756
      %4758 = vmatmul.bf16.gmra.mxu0 %v510
      %v4759 = vpop.f32.mrf.mxu0
      %v4760 = vadd.f32 %v655, %v4759
      %v4761 = vpop.f32.mrf.mxu0
      %v4762 = vadd.f32 %v655, %v4761
      %4763 = vmatmul.bf16.gmra.mxu0 %v512
      %v4764 = vpop.f32.mrf.mxu0
      %v4765 = vadd.f32 %v655, %v4764
      %v4766 = vpop.f32.mrf.mxu0
      %v4767 = vadd.f32 %v655, %v4766
      %4768 = vmatmul.bf16.gmra.mxu0 %v514
      %v4769 = vpop.f32.mrf.mxu0
      %v4770 = vadd.f32 %v655, %v4769
      %v4771 = vpop.f32.mrf.mxu0
      %v4772 = vadd.f32 %v655, %v4771
      %4773 = vmatmul.bf16.gmra.mxu0 %v516
      %v4774 = vpop.f32.mrf.mxu0
      %v4775 = vadd.f32 %v655, %v4774
      %v4776 = vpop.f32.mrf.mxu0
      %v4777 = vadd.f32 %v655, %v4776
      %4778 = vmatmul.bf16.gmra.mxu0 %v518
      %v4779 = vpop.f32.mrf.mxu0
      %v4780 = vadd.f32 %v655, %v4779
      %v4781 = vpop.f32.mrf.mxu0
      %v4782 = vadd.f32 %v655, %v4781
      %4783 = vmatmul.bf16.gmra.mxu0 %v520
      %v4784 = vpop.f32.mrf.mxu0
      %v4785 = vadd.f32 %v655, %v4784
      %v4786 = vpop.f32.mrf.mxu0
      %v4787 = vadd.f32 %v655, %v4786
      %4788 = vmatmul.bf16.gmra.mxu0 %v522
      %v4789 = vpop.f32.mrf.mxu0
      %v4790 = vadd.f32 %v655, %v4789
      %v4791 = vpop.f32.mrf.mxu0
      %v4792 = vadd.f32 %v655, %v4791
      %4793 = vmatmul.bf16.gmra.mxu0 %v524
      %v4794 = vpop.f32.mrf.mxu0
      %v4795 = vadd.f32 %v655, %v4794
      %v4796 = vpop.f32.mrf.mxu0
      %v4797 = vadd.f32 %v655, %v4796
      %4798 = vmatmul.bf16.gmra.mxu0 %v526
      %v4799 = vpop.f32.mrf.mxu0
      %v4800 = vadd.f32 %v655, %v4799
      %v4801 = vpop.f32.mrf.mxu0
      %v4802 = vadd.f32 %v655, %v4801
      %4803 = vmatmul.bf16.gmra.mxu0 %v528
      %v4804 = vpop.f32.mrf.mxu0
      %v4805 = vadd.f32 %v655, %v4804
      %v4806 = vpop.f32.mrf.mxu0
      %v4807 = vadd.f32 %v655, %v4806
      %4808 = vmatmul.bf16.gmra.mxu0 %v530
      %v4809 = vpop.f32.mrf.mxu0
      %v4810 = vadd.f32 %v655, %v4809
      %v4811 = vpop.f32.mrf.mxu0
      %v4812 = vadd.f32 %v655, %v4811
      %4813 = vmatmul.bf16.gmra.mxu0 %v532
      %v4814 = vpop.f32.mrf.mxu0
      %v4815 = vadd.f32 %v655, %v4814
      %v4816 = vpop.f32.mrf.mxu0
      %v4817 = vadd.f32 %v655, %v4816
      %4818 = vmatmul.bf16.gmra.mxu0 %v534
      %v4819 = vpop.f32.mrf.mxu0
      %v4820 = vadd.f32 %v655, %v4819
      %v4821 = vpop.f32.mrf.mxu0
      %v4822 = vadd.f32 %v655, %v4821
      %4823 = vmatmul.bf16.gmra.mxu0 %v536
      %v4824 = vpop.f32.mrf.mxu0
      %v4825 = vadd.f32 %v655, %v4824
      %v4826 = vpop.f32.mrf.mxu0
      %v4827 = vadd.f32 %v655, %v4826
      %4828 = vmatmul.bf16.gmra.mxu0 %v538
      %v4829 = vpop.f32.mrf.mxu0
      %v4830 = vadd.f32 %v655, %v4829
      %v4831 = vpop.f32.mrf.mxu0
      %v4832 = vadd.f32 %v655, %v4831
      %4833 = vmatmul.bf16.gmra.mxu0 %v540
      %v4834 = vpop.f32.mrf.mxu0
      %v4835 = vadd.f32 %v655, %v4834
      %v4836 = vpop.f32.mrf.mxu0
      %v4837 = vadd.f32 %v655, %v4836
      %4838 = vmatmul.bf16.gmra.mxu0 %v542
      %v4839 = vpop.f32.mrf.mxu0
      %v4840 = vadd.f32 %v655, %v4839
      %v4841 = vpop.f32.mrf.mxu0
      %v4842 = vadd.f32 %v655, %v4841
      %4843 = vmatmul.bf16.gmra.mxu0 %v544
      %v4844 = vpop.f32.mrf.mxu0
      %v4845 = vadd.f32 %v655, %v4844
      %v4846 = vpop.f32.mrf.mxu0
      %v4847 = vadd.f32 %v655, %v4846
      %4848 = vmatmul.bf16.gmra.mxu0 %v546
      %v4849 = vpop.f32.mrf.mxu0
      %v4850 = vadd.f32 %v655, %v4849
      %v4851 = vpop.f32.mrf.mxu0
      %v4852 = vadd.f32 %v655, %v4851
      %4853 = vmatmul.bf16.gmra.mxu0 %v548
      %v4854 = vpop.f32.mrf.mxu0
      %v4855 = vadd.f32 %v655, %v4854
      %v4856 = vpop.f32.mrf.mxu0
      %v4857 = vadd.f32 %v655, %v4856
      %4858 = vmatmul.bf16.gmra.mxu0 %v550
      %v4859 = vpop.f32.mrf.mxu0
      %v4860 = vadd.f32 %v655, %v4859
      %v4861 = vpop.f32.mrf.mxu0
      %v4862 = vadd.f32 %v655, %v4861
      %4863 = vmatmul.bf16.gmra.mxu0 %v552
      %v4864 = vpop.f32.mrf.mxu0
      %v4865 = vadd.f32 %v655, %v4864
      %v4866 = vpop.f32.mrf.mxu0
      %v4867 = vadd.f32 %v655, %v4866
      %4868 = vmatmul.bf16.gmra.mxu0 %v554
      %v4869 = vpop.f32.mrf.mxu0
      %v4870 = vadd.f32 %v655, %v4869
      %v4871 = vpop.f32.mrf.mxu0
      %v4872 = vadd.f32 %v655, %v4871
      %4873 = vmatmul.bf16.gmra.mxu0 %v556
      %v4874 = vpop.f32.mrf.mxu0
      %v4875 = vadd.f32 %v655, %v4874
      %v4876 = vpop.f32.mrf.mxu0
      %v4877 = vadd.f32 %v655, %v4876
      %4878 = vmatmul.bf16.gmra.mxu0 %v558
      %v4879 = vpop.f32.mrf.mxu0
      %v4880 = vadd.f32 %v655, %v4879
      %v4881 = vpop.f32.mrf.mxu0
      %v4882 = vadd.f32 %v655, %v4881
      %4883 = vmatmul.bf16.gmra.mxu0 %v560
      %v4884 = vpop.f32.mrf.mxu0
      %v4885 = vadd.f32 %v655, %v4884
      %v4886 = vpop.f32.mrf.mxu0
      %v4887 = vadd.f32 %v655, %v4886
      %4888 = vmatmul.bf16.gmra.mxu0 %v562
      %v4889 = vpop.f32.mrf.mxu0
      %v4890 = vadd.f32 %v655, %v4889
      %v4891 = vpop.f32.mrf.mxu0
      %v4892 = vadd.f32 %v655, %v4891
      %4893 = vdwg.mxu0
      %4894 = vmatpush.bf16.msra.mxu0 0
      %4895 = vmatpush.bf16.msra.mxu0 0
      %4896 = vmatpush.bf16.msra.mxu0 %v997
      %4897 = vmatpush.bf16.msra.mxu0 %v991
      %4898 = vmatpush.bf16.msra.mxu0 %v985
      %4899 = vmatpush.bf16.msra.mxu0 %v979
      %4900 = vmatpush.bf16.msra.mxu0 %v973
      %4901 = vmatpush.bf16.msra.mxu0 %v967
      %4902 = vmatmul.bf16.gmra.mxu0 %v1084
      %v4903 = vpop.f32.mrf.mxu0
      %v4904 = vadd.f32 %v4575, %v4903
      %v4905 = vpop.f32.mrf.mxu0
      %v4906 = vadd.f32 %v4577, %v4905
      %4907 = vmatmul.bf16.gmra.mxu0 %v1087
      %v4908 = vpop.f32.mrf.mxu0
      %v4909 = vadd.f32 %v4580, %v4908
      %v4910 = vpop.f32.mrf.mxu0
      %v4911 = vadd.f32 %v4582, %v4910
      %4912 = vmatmul.bf16.gmra.mxu0 %v1090
      %v4913 = vpop.f32.mrf.mxu0
      %v4914 = vadd.f32 %v4585, %v4913
      %v4915 = vpop.f32.mrf.mxu0
      %v4916 = vadd.f32 %v4587, %v4915
      %4917 = vmatmul.bf16.gmra.mxu0 %v1093
      %v4918 = vpop.f32.mrf.mxu0
      %v4919 = vadd.f32 %v4590, %v4918
      %v4920 = vpop.f32.mrf.mxu0
      %v4921 = vadd.f32 %v4592, %v4920
      %4922 = vmatmul.bf16.gmra.mxu0 %v1096
      %v4923 = vpop.f32.mrf.mxu0
      %v4924 = vadd.f32 %v4595, %v4923
      %v4925 = vpop.f32.mrf.mxu0
      %v4926 = vadd.f32 %v4597, %v4925
      %4927 = vmatmul.bf16.gmra.mxu0 %v1099
      %v4928 = vpop.f32.mrf.mxu0
      %v4929 = vadd.f32 %v4600, %v4928
      %v4930 = vpop.f32.mrf.mxu0
      %v4931 = vadd.f32 %v4602, %v4930
      %4932 = vmatmul.bf16.gmra.mxu0 %v1102
      %v4933 = vpop.f32.mrf.mxu0
      %v4934 = vadd.f32 %v4605, %v4933
      %v4935 = vpop.f32.mrf.mxu0
      %v4936 = vadd.f32 %v4607, %v4935
      %4937 = vmatmul.bf16.gmra.mxu0 %v1105
      %v4938 = vpop.f32.mrf.mxu0
      %v4939 = vadd.f32 %v4610, %v4938
      %v4940 = vpop.f32.mrf.mxu0
      %v4941 = vadd.f32 %v4612, %v4940
      %4942 = vmatmul.bf16.gmra.mxu0 %v1108
      %v4943 = vpop.f32.mrf.mxu0
      %v4944 = vadd.f32 %v4615, %v4943
      %v4945 = vpop.f32.mrf.mxu0
      %v4946 = vadd.f32 %v4617, %v4945
      %4947 = vmatmul.bf16.gmra.mxu0 %v1111
      %v4948 = vpop.f32.mrf.mxu0
      %v4949 = vadd.f32 %v4620, %v4948
      %v4950 = vpop.f32.mrf.mxu0
      %v4951 = vadd.f32 %v4622, %v4950
      %4952 = vmatmul.bf16.gmra.mxu0 %v1114
      %v4953 = vpop.f32.mrf.mxu0
      %v4954 = vadd.f32 %v4625, %v4953
      %v4955 = vpop.f32.mrf.mxu0
      %v4956 = vadd.f32 %v4627, %v4955
      %4957 = vmatmul.bf16.gmra.mxu0 %v1117
      %v4958 = vpop.f32.mrf.mxu0
      %v4959 = vadd.f32 %v4630, %v4958
      %v4960 = vpop.f32.mrf.mxu0
      %v4961 = vadd.f32 %v4632, %v4960
      %4962 = vmatmul.bf16.gmra.mxu0 %v1120
      %v4963 = vpop.f32.mrf.mxu0
      %v4964 = vadd.f32 %v4635, %v4963
      %v4965 = vpop.f32.mrf.mxu0
      %v4966 = vadd.f32 %v4637, %v4965
      %4967 = vmatmul.bf16.gmra.mxu0 %v1123
      %v4968 = vpop.f32.mrf.mxu0
      %v4969 = vadd.f32 %v4640, %v4968
      %v4970 = vpop.f32.mrf.mxu0
      %v4971 = vadd.f32 %v4642, %v4970
      %4972 = vmatmul.bf16.gmra.mxu0 %v1126
      %v4973 = vpop.f32.mrf.mxu0
      %v4974 = vadd.f32 %v4645, %v4973
      %v4975 = vpop.f32.mrf.mxu0
      %v4976 = vadd.f32 %v4647, %v4975
      %4977 = vmatmul.bf16.gmra.mxu0 %v1129
      %v4978 = vpop.f32.mrf.mxu0
      %v4979 = vadd.f32 %v4650, %v4978
      %v4980 = vpop.f32.mrf.mxu0
      %v4981 = vadd.f32 %v4652, %v4980
      %4982 = vmatmul.bf16.gmra.mxu0 %v1132
      %v4983 = vpop.f32.mrf.mxu0
      %v4984 = vadd.f32 %v4655, %v4983
      %v4985 = vpop.f32.mrf.mxu0
      %v4986 = vadd.f32 %v4657, %v4985
      %4987 = vmatmul.bf16.gmra.mxu0 %v1135
      %v4988 = vpop.f32.mrf.mxu0
      %v4989 = vadd.f32 %v4660, %v4988
      %v4990 = vpop.f32.mrf.mxu0
      %v4991 = vadd.f32 %v4662, %v4990
      %4992 = vmatmul.bf16.gmra.mxu0 %v1138
      %v4993 = vpop.f32.mrf.mxu0
      %v4994 = vadd.f32 %v4665, %v4993
      %v4995 = vpop.f32.mrf.mxu0
      %v4996 = vadd.f32 %v4667, %v4995
      %4997 = vmatmul.bf16.gmra.mxu0 %v1141
      %v4998 = vpop.f32.mrf.mxu0
      %v4999 = vadd.f32 %v4670, %v4998
      %v5000 = vpop.f32.mrf.mxu0
      %v5001 = vadd.f32 %v4672, %v5000
      %5002 = vmatmul.bf16.gmra.mxu0 %v1144
      %v5003 = vpop.f32.mrf.mxu0
      %v5004 = vadd.f32 %v4675, %v5003
      %v5005 = vpop.f32.mrf.mxu0
      %v5006 = vadd.f32 %v4677, %v5005
      %5007 = vmatmul.bf16.gmra.mxu0 %v1147
      %v5008 = vpop.f32.mrf.mxu0
      %v5009 = vadd.f32 %v4680, %v5008
      %v5010 = vpop.f32.mrf.mxu0
      %v5011 = vadd.f32 %v4682, %v5010
      %5012 = vmatmul.bf16.gmra.mxu0 %v1150
      %v5013 = vpop.f32.mrf.mxu0
      %v5014 = vadd.f32 %v4685, %v5013
      %v5015 = vpop.f32.mrf.mxu0
      %v5016 = vadd.f32 %v4687, %v5015
      %5017 = vmatmul.bf16.gmra.mxu0 %v1153
      %v5018 = vpop.f32.mrf.mxu0
      %v5019 = vadd.f32 %v4690, %v5018
      %v5020 = vpop.f32.mrf.mxu0
      %v5021 = vadd.f32 %v4692, %v5020
      %5022 = vmatmul.bf16.gmra.mxu0 %v1156
      %v5023 = vpop.f32.mrf.mxu0
      %v5024 = vadd.f32 %v4695, %v5023
      %v5025 = vpop.f32.mrf.mxu0
      %v5026 = vadd.f32 %v4697, %v5025
      %5027 = vmatmul.bf16.gmra.mxu0 %v1159
      %v5028 = vpop.f32.mrf.mxu0
      %v5029 = vadd.f32 %v4700, %v5028
      %v5030 = vpop.f32.mrf.mxu0
      %v5031 = vadd.f32 %v4702, %v5030
      %5032 = vmatmul.bf16.gmra.mxu0 %v1162
      %v5033 = vpop.f32.mrf.mxu0
      %v5034 = vadd.f32 %v4705, %v5033
      %v5035 = vpop.f32.mrf.mxu0
      %v5036 = vadd.f32 %v4707, %v5035
      %5037 = vmatmul.bf16.gmra.mxu0 %v1165
      %v5038 = vpop.f32.mrf.mxu0
      %v5039 = vadd.f32 %v4710, %v5038
      %v5040 = vpop.f32.mrf.mxu0
      %v5041 = vadd.f32 %v4712, %v5040
      %5042 = vmatmul.bf16.gmra.mxu0 %v1168
      %v5043 = vpop.f32.mrf.mxu0
      %v5044 = vadd.f32 %v4715, %v5043
      %v5045 = vpop.f32.mrf.mxu0
      %v5046 = vadd.f32 %v4717, %v5045
      %5047 = vmatmul.bf16.gmra.mxu0 %v1171
      %v5048 = vpop.f32.mrf.mxu0
      %v5049 = vadd.f32 %v4720, %v5048
      %v5050 = vpop.f32.mrf.mxu0
      %v5051 = vadd.f32 %v4722, %v5050
      %5052 = vmatmul.bf16.gmra.mxu0 %v1174
      %v5053 = vpop.f32.mrf.mxu0
      %v5054 = vadd.f32 %v4725, %v5053
      %v5055 = vpop.f32.mrf.mxu0
      %v5056 = vadd.f32 %v4727, %v5055
      %5057 = vmatmul.bf16.gmra.mxu0 %v1177
      %v5058 = vpop.f32.mrf.mxu0
      %v5059 = vadd.f32 %v4730, %v5058
      %v5060 = vpop.f32.mrf.mxu0
      %v5061 = vadd.f32 %v4732, %v5060
      %5062 = vmatmul.bf16.gmra.mxu0 %v1180
      %v5063 = vpop.f32.mrf.mxu0
      %v5064 = vadd.f32 %v4735, %v5063
      %v5065 = vpop.f32.mrf.mxu0
      %v5066 = vadd.f32 %v4737, %v5065
      %5067 = vmatmul.bf16.gmra.mxu0 %v1183
      %v5068 = vpop.f32.mrf.mxu0
      %v5069 = vadd.f32 %v4740, %v5068
      %v5070 = vpop.f32.mrf.mxu0
      %v5071 = vadd.f32 %v4742, %v5070
      %5072 = vmatmul.bf16.gmra.mxu0 %v1186
      %v5073 = vpop.f32.mrf.mxu0
      %v5074 = vadd.f32 %v4745, %v5073
      %v5075 = vpop.f32.mrf.mxu0
      %v5076 = vadd.f32 %v4747, %v5075
      %5077 = vmatmul.bf16.gmra.mxu0 %v1189
      %v5078 = vpop.f32.mrf.mxu0
      %v5079 = vadd.f32 %v4750, %v5078
      %v5080 = vpop.f32.mrf.mxu0
      %v5081 = vadd.f32 %v4752, %v5080
      %5082 = vmatmul.bf16.gmra.mxu0 %v1192
      %v5083 = vpop.f32.mrf.mxu0
      %v5084 = vadd.f32 %v4755, %v5083
      %v5085 = vpop.f32.mrf.mxu0
      %v5086 = vadd.f32 %v4757, %v5085
      %5087 = vmatmul.bf16.gmra.mxu0 %v1195
      %v5088 = vpop.f32.mrf.mxu0
      %v5089 = vadd.f32 %v4760, %v5088
      %v5090 = vpop.f32.mrf.mxu0
      %v5091 = vadd.f32 %v4762, %v5090
      %5092 = vmatmul.bf16.gmra.mxu0 %v1198
      %v5093 = vpop.f32.mrf.mxu0
      %v5094 = vadd.f32 %v4765, %v5093
      %v5095 = vpop.f32.mrf.mxu0
      %v5096 = vadd.f32 %v4767, %v5095
      %5097 = vmatmul.bf16.gmra.mxu0 %v1201
      %v5098 = vpop.f32.mrf.mxu0
      %v5099 = vadd.f32 %v4770, %v5098
      %v5100 = vpop.f32.mrf.mxu0
      %v5101 = vadd.f32 %v4772, %v5100
      %5102 = vmatmul.bf16.gmra.mxu0 %v1204
      %v5103 = vpop.f32.mrf.mxu0
      %v5104 = vadd.f32 %v4775, %v5103
      %v5105 = vpop.f32.mrf.mxu0
      %v5106 = vadd.f32 %v4777, %v5105
      %5107 = vmatmul.bf16.gmra.mxu0 %v1207
      %v5108 = vpop.f32.mrf.mxu0
      %v5109 = vadd.f32 %v4780, %v5108
      %v5110 = vpop.f32.mrf.mxu0
      %v5111 = vadd.f32 %v4782, %v5110
      %5112 = vmatmul.bf16.gmra.mxu0 %v1210
      %v5113 = vpop.f32.mrf.mxu0
      %v5114 = vadd.f32 %v4785, %v5113
      %v5115 = vpop.f32.mrf.mxu0
      %v5116 = vadd.f32 %v4787, %v5115
      %5117 = vmatmul.bf16.gmra.mxu0 %v1213
      %v5118 = vpop.f32.mrf.mxu0
      %v5119 = vadd.f32 %v4790, %v5118
      %v5120 = vpop.f32.mrf.mxu0
      %v5121 = vadd.f32 %v4792, %v5120
      %5122 = vmatmul.bf16.gmra.mxu0 %v1216
      %v5123 = vpop.f32.mrf.mxu0
      %v5124 = vadd.f32 %v4795, %v5123
      %v5125 = vpop.f32.mrf.mxu0
      %v5126 = vadd.f32 %v4797, %v5125
      %5127 = vmatmul.bf16.gmra.mxu0 %v1219
      %v5128 = vpop.f32.mrf.mxu0
      %v5129 = vadd.f32 %v4800, %v5128
      %v5130 = vpop.f32.mrf.mxu0
      %v5131 = vadd.f32 %v4802, %v5130
      %5132 = vmatmul.bf16.gmra.mxu0 %v1222
      %v5133 = vpop.f32.mrf.mxu0
      %v5134 = vadd.f32 %v4805, %v5133
      %v5135 = vpop.f32.mrf.mxu0
      %v5136 = vadd.f32 %v4807, %v5135
      %5137 = vmatmul.bf16.gmra.mxu0 %v1225
      %v5138 = vpop.f32.mrf.mxu0
      %v5139 = vadd.f32 %v4810, %v5138
      %v5140 = vpop.f32.mrf.mxu0
      %v5141 = vadd.f32 %v4812, %v5140
      %5142 = vmatmul.bf16.gmra.mxu0 %v1228
      %v5143 = vpop.f32.mrf.mxu0
      %v5144 = vadd.f32 %v4815, %v5143
      %v5145 = vpop.f32.mrf.mxu0
      %v5146 = vadd.f32 %v4817, %v5145
      %5147 = vmatmul.bf16.gmra.mxu0 %v1231
      %v5148 = vpop.f32.mrf.mxu0
      %v5149 = vadd.f32 %v4820, %v5148
      %v5150 = vpop.f32.mrf.mxu0
      %v5151 = vadd.f32 %v4822, %v5150
      %5152 = vmatmul.bf16.gmra.mxu0 %v1234
      %v5153 = vpop.f32.mrf.mxu0
      %v5154 = vadd.f32 %v4825, %v5153
      %v5155 = vpop.f32.mrf.mxu0
      %v5156 = vadd.f32 %v4827, %v5155
      %5157 = vmatmul.bf16.gmra.mxu0 %v1237
      %v5158 = vpop.f32.mrf.mxu0
      %v5159 = vadd.f32 %v4830, %v5158
      %v5160 = vpop.f32.mrf.mxu0
      %v5161 = vadd.f32 %v4832, %v5160
      %5162 = vmatmul.bf16.gmra.mxu0 %v1240
      %v5163 = vpop.f32.mrf.mxu0
      %v5164 = vadd.f32 %v4835, %v5163
      %v5165 = vpop.f32.mrf.mxu0
      %v5166 = vadd.f32 %v4837, %v5165
      %5167 = vmatmul.bf16.gmra.mxu0 %v1243
      %v5168 = vpop.f32.mrf.mxu0
      %v5169 = vadd.f32 %v4840, %v5168
      %v5170 = vpop.f32.mrf.mxu0
      %v5171 = vadd.f32 %v4842, %v5170
      %5172 = vmatmul.bf16.gmra.mxu0 %v1246
      %v5173 = vpop.f32.mrf.mxu0
      %v5174 = vadd.f32 %v4845, %v5173
      %v5175 = vpop.f32.mrf.mxu0
      %v5176 = vadd.f32 %v4847, %v5175
      %5177 = vmatmul.bf16.gmra.mxu0 %v1249
      %v5178 = vpop.f32.mrf.mxu0
      %v5179 = vadd.f32 %v4850, %v5178
      %v5180 = vpop.f32.mrf.mxu0
      %v5181 = vadd.f32 %v4852, %v5180
      %5182 = vmatmul.bf16.gmra.mxu0 %v1252
      %v5183 = vpop.f32.mrf.mxu0
      %v5184 = vadd.f32 %v4855, %v5183
      %v5185 = vpop.f32.mrf.mxu0
      %v5186 = vadd.f32 %v4857, %v5185
      %5187 = vmatmul.bf16.gmra.mxu0 %v1255
      %v5188 = vpop.f32.mrf.mxu0
      %v5189 = vadd.f32 %v4860, %v5188
      %v5190 = vpop.f32.mrf.mxu0
      %v5191 = vadd.f32 %v4862, %v5190
      %5192 = vmatmul.bf16.gmra.mxu0 %v1258
      %v5193 = vpop.f32.mrf.mxu0
      %v5194 = vadd.f32 %v4865, %v5193
      %v5195 = vpop.f32.mrf.mxu0
      %v5196 = vadd.f32 %v4867, %v5195
      %5197 = vmatmul.bf16.gmra.mxu0 %v1261
      %v5198 = vpop.f32.mrf.mxu0
      %v5199 = vadd.f32 %v4870, %v5198
      %v5200 = vpop.f32.mrf.mxu0
      %v5201 = vadd.f32 %v4872, %v5200
      %5202 = vmatmul.bf16.gmra.mxu0 %v1264
      %v5203 = vpop.f32.mrf.mxu0
      %v5204 = vadd.f32 %v4875, %v5203
      %v5205 = vpop.f32.mrf.mxu0
      %v5206 = vadd.f32 %v4877, %v5205
      %5207 = vmatmul.bf16.gmra.mxu0 %v1267
      %v5208 = vpop.f32.mrf.mxu0
      %v5209 = vadd.f32 %v4880, %v5208
      %v5210 = vpop.f32.mrf.mxu0
      %v5211 = vadd.f32 %v4882, %v5210
      %5212 = vmatmul.bf16.gmra.mxu0 %v1270
      %v5213 = vpop.f32.mrf.mxu0
      %v5214 = vadd.f32 %v4885, %v5213
      %v5215 = vpop.f32.mrf.mxu0
      %v5216 = vadd.f32 %v4887, %v5215
      %5217 = vmatmul.bf16.gmra.mxu0 %v1273
      %v5218 = vpop.f32.mrf.mxu0
      %v5219 = vadd.f32 %v4890, %v5218
      %v5220 = vpop.f32.mrf.mxu0
      %v5221 = vadd.f32 %v4892, %v5220
      %5222 = vdwg.mxu0
      %v5223 = vpack.c.bf16 %v2272, %v1614
      %v5224 = vpack.c.bf16 %v3588, %v2930
      %v5225 = vpack.c.bf16 %v4904, %v4246
      %v5226 = vpack.c.bf16 %v2274, %v1616
      %v5227 = vpack.c.bf16 %v3590, %v2932
      %v5228 = vpack.c.bf16 %v4906, %v4248
      %v5229 = vpack.c.bf16 %v2277, %v1619
      %v5230 = vpack.c.bf16 %v3593, %v2935
      %v5231 = vpack.c.bf16 %v4909, %v4251
      %v5232 = vpack.c.bf16 %v2279, %v1621
      %v5233 = vpack.c.bf16 %v3595, %v2937
      %v5234 = vpack.c.bf16 %v4911, %v4253
      %v5235 = vpack.c.bf16 %v2282, %v1624
      %v5236 = vpack.c.bf16 %v3598, %v2940
      %v5237 = vpack.c.bf16 %v4914, %v4256
      %v5238 = vpack.c.bf16 %v2284, %v1626
      %v5239 = vpack.c.bf16 %v3600, %v2942
      %v5240 = vpack.c.bf16 %v4916, %v4258
      %v5241 = vpack.c.bf16 %v2287, %v1629
      %v5242 = vpack.c.bf16 %v3603, %v2945
      %v5243 = vpack.c.bf16 %v4919, %v4261
      %v5244 = vpack.c.bf16 %v2289, %v1631
      %v5245 = vpack.c.bf16 %v3605, %v2947
      %v5246 = vpack.c.bf16 %v4921, %v4263
      %v5247 = vpack.c.bf16 %v2292, %v1634
      %v5248 = vpack.c.bf16 %v3608, %v2950
      %v5249 = vpack.c.bf16 %v4924, %v4266
      %v5250 = vpack.c.bf16 %v2294, %v1636
      %v5251 = vpack.c.bf16 %v3610, %v2952
      %v5252 = vpack.c.bf16 %v4926, %v4268
      %v5253 = vpack.c.bf16 %v2297, %v1639
      %v5254 = vpack.c.bf16 %v3613, %v2955
      %v5255 = vpack.c.bf16 %v4929, %v4271
      %v5256 = vpack.c.bf16 %v2299, %v1641
      %v5257 = vpack.c.bf16 %v3615, %v2957
      %v5258 = vpack.c.bf16 %v4931, %v4273
      %v5259 = vpack.c.bf16 %v2302, %v1644
      %v5260 = vpack.c.bf16 %v3618, %v2960
      %v5261 = vpack.c.bf16 %v4934, %v4276
      %v5262 = vpack.c.bf16 %v2304, %v1646
      %v5263 = vpack.c.bf16 %v3620, %v2962
      %v5264 = vpack.c.bf16 %v4936, %v4278
      %v5265 = vpack.c.bf16 %v2307, %v1649
      %v5266 = vpack.c.bf16 %v3623, %v2965
      %v5267 = vpack.c.bf16 %v4939, %v4281
      %v5268 = vpack.c.bf16 %v2309, %v1651
      %v5269 = vpack.c.bf16 %v3625, %v2967
      %v5270 = vpack.c.bf16 %v4941, %v4283
      %v5271 = vpack.c.bf16 %v2312, %v1654
      %v5272 = vpack.c.bf16 %v3628, %v2970
      %v5273 = vpack.c.bf16 %v4944, %v4286
      %v5274 = vpack.c.bf16 %v2314, %v1656
      %v5275 = vpack.c.bf16 %v3630, %v2972
      %v5276 = vpack.c.bf16 %v4946, %v4288
      %v5277 = vpack.c.bf16 %v2317, %v1659
      %v5278 = vpack.c.bf16 %v3633, %v2975
      %v5279 = vpack.c.bf16 %v4949, %v4291
      %v5280 = vpack.c.bf16 %v2319, %v1661
      %v5281 = vpack.c.bf16 %v3635, %v2977
      %v5282 = vpack.c.bf16 %v4951, %v4293
      %v5283 = vpack.c.bf16 %v2322, %v1664
      %v5284 = vpack.c.bf16 %v3638, %v2980
      %v5285 = vpack.c.bf16 %v4954, %v4296
      %v5286 = vpack.c.bf16 %v2324, %v1666
      %v5287 = vpack.c.bf16 %v3640, %v2982
      %v5288 = vpack.c.bf16 %v4956, %v4298
      %v5289 = vpack.c.bf16 %v2327, %v1669
      %v5290 = vpack.c.bf16 %v3643, %v2985
      %v5291 = vpack.c.bf16 %v4959, %v4301
      %v5292 = vpack.c.bf16 %v2329, %v1671
      %v5293 = vpack.c.bf16 %v3645, %v2987
      %v5294 = vpack.c.bf16 %v4961, %v4303
      %v5295 = vpack.c.bf16 %v2332, %v1674
      %v5296 = vpack.c.bf16 %v3648, %v2990
      %v5297 = vpack.c.bf16 %v4964, %v4306
      %v5298 = vpack.c.bf16 %v2334, %v1676
      %v5299 = vpack.c.bf16 %v3650, %v2992
      %v5300 = vpack.c.bf16 %v4966, %v4308
      %v5301 = vpack.c.bf16 %v2337, %v1679
      %v5302 = vpack.c.bf16 %v3653, %v2995
      %v5303 = vpack.c.bf16 %v4969, %v4311
      %v5304 = vpack.c.bf16 %v2339, %v1681
      %v5305 = vpack.c.bf16 %v3655, %v2997
      %v5306 = vpack.c.bf16 %v4971, %v4313
      %v5307 = vpack.c.bf16 %v2342, %v1684
      %v5308 = vpack.c.bf16 %v3658, %v3000
      %v5309 = vpack.c.bf16 %v4974, %v4316
      %v5310 = vpack.c.bf16 %v2344, %v1686
      %v5311 = vpack.c.bf16 %v3660, %v3002
      %v5312 = vpack.c.bf16 %v4976, %v4318
      %v5313 = vpack.c.bf16 %v2347, %v1689
      %v5314 = vpack.c.bf16 %v3663, %v3005
      %v5315 = vpack.c.bf16 %v4979, %v4321
      %v5316 = vpack.c.bf16 %v2349, %v1691
      %v5317 = vpack.c.bf16 %v3665, %v3007
      %v5318 = vpack.c.bf16 %v4981, %v4323
      %v5319 = vpack.c.bf16 %v2352, %v1694
      %v5320 = vpack.c.bf16 %v3668, %v3010
      %v5321 = vpack.c.bf16 %v4984, %v4326
      %v5322 = vpack.c.bf16 %v2354, %v1696
      %v5323 = vpack.c.bf16 %v3670, %v3012
      %v5324 = vpack.c.bf16 %v4986, %v4328
      %v5325 = vpack.c.bf16 %v2357, %v1699
      %v5326 = vpack.c.bf16 %v3673, %v3015
      %v5327 = vpack.c.bf16 %v4989, %v4331
      %v5328 = vpack.c.bf16 %v2359, %v1701
      %v5329 = vpack.c.bf16 %v3675, %v3017
      %v5330 = vpack.c.bf16 %v4991, %v4333
      %v5331 = vpack.c.bf16 %v2362, %v1704
      %v5332 = vpack.c.bf16 %v3678, %v3020
      %v5333 = vpack.c.bf16 %v4994, %v4336
      %v5334 = vpack.c.bf16 %v2364, %v1706
      %v5335 = vpack.c.bf16 %v3680, %v3022
      %v5336 = vpack.c.bf16 %v4996, %v4338
      %v5337 = vpack.c.bf16 %v2367, %v1709
      %v5338 = vpack.c.bf16 %v3683, %v3025
      %v5339 = vpack.c.bf16 %v4999, %v4341
      %v5340 = vpack.c.bf16 %v2369, %v1711
      %v5341 = vpack.c.bf16 %v3685, %v3027
      %v5342 = vpack.c.bf16 %v5001, %v4343
      %v5343 = vpack.c.bf16 %v2372, %v1714
      %v5344 = vpack.c.bf16 %v3688, %v3030
      %v5345 = vpack.c.bf16 %v5004, %v4346
      %v5346 = vpack.c.bf16 %v2374, %v1716
      %v5347 = vpack.c.bf16 %v3690, %v3032
      %v5348 = vpack.c.bf16 %v5006, %v4348
      %v5349 = vpack.c.bf16 %v2377, %v1719
      %v5350 = vpack.c.bf16 %v3693, %v3035
      %v5351 = vpack.c.bf16 %v5009, %v4351
      %v5352 = vpack.c.bf16 %v2379, %v1721
      %v5353 = vpack.c.bf16 %v3695, %v3037
      %v5354 = vpack.c.bf16 %v5011, %v4353
      %v5355 = vpack.c.bf16 %v2382, %v1724
      %v5356 = vpack.c.bf16 %v3698, %v3040
      %v5357 = vpack.c.bf16 %v5014, %v4356
      %v5358 = vpack.c.bf16 %v2384, %v1726
      %v5359 = vpack.c.bf16 %v3700, %v3042
      %v5360 = vpack.c.bf16 %v5016, %v4358
      %v5361 = vpack.c.bf16 %v2387, %v1729
      %v5362 = vpack.c.bf16 %v3703, %v3045
      %v5363 = vpack.c.bf16 %v5019, %v4361
      %v5364 = vpack.c.bf16 %v2389, %v1731
      %v5365 = vpack.c.bf16 %v3705, %v3047
      %v5366 = vpack.c.bf16 %v5021, %v4363
      %v5367 = vpack.c.bf16 %v2392, %v1734
      %v5368 = vpack.c.bf16 %v3708, %v3050
      %v5369 = vpack.c.bf16 %v5024, %v4366
      %v5370 = vpack.c.bf16 %v2394, %v1736
      %v5371 = vpack.c.bf16 %v3710, %v3052
      %v5372 = vpack.c.bf16 %v5026, %v4368
      %v5373 = vpack.c.bf16 %v2397, %v1739
      %v5374 = vpack.c.bf16 %v3713, %v3055
      %v5375 = vpack.c.bf16 %v5029, %v4371
      %v5376 = vpack.c.bf16 %v2399, %v1741
      %v5377 = vpack.c.bf16 %v3715, %v3057
      %v5378 = vpack.c.bf16 %v5031, %v4373
      %v5379 = vpack.c.bf16 %v2402, %v1744
      %v5380 = vpack.c.bf16 %v3718, %v3060
      %v5381 = vpack.c.bf16 %v5034, %v4376
      %v5382 = vpack.c.bf16 %v2404, %v1746
      %v5383 = vpack.c.bf16 %v3720, %v3062
      %v5384 = vpack.c.bf16 %v5036, %v4378
      %v5385 = vpack.c.bf16 %v2407, %v1749
      %v5386 = vpack.c.bf16 %v3723, %v3065
      %v5387 = vpack.c.bf16 %v5039, %v4381
      %v5388 = vpack.c.bf16 %v2409, %v1751
      %v5389 = vpack.c.bf16 %v3725, %v3067
      %v5390 = vpack.c.bf16 %v5041, %v4383
      %v5391 = vpack.c.bf16 %v2412, %v1754
      %v5392 = vpack.c.bf16 %v3728, %v3070
      %v5393 = vpack.c.bf16 %v5044, %v4386
      %v5394 = vpack.c.bf16 %v2414, %v1756
      %v5395 = vpack.c.bf16 %v3730, %v3072
      %v5396 = vpack.c.bf16 %v5046, %v4388
      %v5397 = vpack.c.bf16 %v2417, %v1759
      %v5398 = vpack.c.bf16 %v3733, %v3075
      %v5399 = vpack.c.bf16 %v5049, %v4391
      %v5400 = vpack.c.bf16 %v2419, %v1761
      %v5401 = vpack.c.bf16 %v3735, %v3077
      %v5402 = vpack.c.bf16 %v5051, %v4393
      %v5403 = vpack.c.bf16 %v2422, %v1764
      %v5404 = vpack.c.bf16 %v3738, %v3080
      %v5405 = vpack.c.bf16 %v5054, %v4396
      %v5406 = vpack.c.bf16 %v2424, %v1766
      %v5407 = vpack.c.bf16 %v3740, %v3082
      %v5408 = vpack.c.bf16 %v5056, %v4398
      %v5409 = vpack.c.bf16 %v2427, %v1769
      %v5410 = vpack.c.bf16 %v3743, %v3085
      %v5411 = vpack.c.bf16 %v5059, %v4401
      %v5412 = vpack.c.bf16 %v2429, %v1771
      %v5413 = vpack.c.bf16 %v3745, %v3087
      %v5414 = vpack.c.bf16 %v5061, %v4403
      %v5415 = vpack.c.bf16 %v2432, %v1774
      %v5416 = vpack.c.bf16 %v3748, %v3090
      %v5417 = vpack.c.bf16 %v5064, %v4406
      %v5418 = vpack.c.bf16 %v2434, %v1776
      %v5419 = vpack.c.bf16 %v3750, %v3092
      %v5420 = vpack.c.bf16 %v5066, %v4408
      %v5421 = vpack.c.bf16 %v2437, %v1779
      %v5422 = vpack.c.bf16 %v3753, %v3095
      %v5423 = vpack.c.bf16 %v5069, %v4411
      %v5424 = vpack.c.bf16 %v2439, %v1781
      %v5425 = vpack.c.bf16 %v3755, %v3097
      %v5426 = vpack.c.bf16 %v5071, %v4413
      %v5427 = vpack.c.bf16 %v2442, %v1784
      %v5428 = vpack.c.bf16 %v3758, %v3100
      %v5429 = vpack.c.bf16 %v5074, %v4416
      %v5430 = vpack.c.bf16 %v2444, %v1786
      %v5431 = vpack.c.bf16 %v3760, %v3102
      %v5432 = vpack.c.bf16 %v5076, %v4418
      %v5433 = vpack.c.bf16 %v2447, %v1789
      %v5434 = vpack.c.bf16 %v3763, %v3105
      %v5435 = vpack.c.bf16 %v5079, %v4421
      %v5436 = vpack.c.bf16 %v2449, %v1791
      %v5437 = vpack.c.bf16 %v3765, %v3107
      %v5438 = vpack.c.bf16 %v5081, %v4423
      %v5439 = vpack.c.bf16 %v2452, %v1794
      %v5440 = vpack.c.bf16 %v3768, %v3110
      %v5441 = vpack.c.bf16 %v5084, %v4426
      %v5442 = vpack.c.bf16 %v2454, %v1796
      %v5443 = vpack.c.bf16 %v3770, %v3112
      %v5444 = vpack.c.bf16 %v5086, %v4428
      %v5445 = vpack.c.bf16 %v2457, %v1799
      %v5446 = vpack.c.bf16 %v3773, %v3115
      %v5447 = vpack.c.bf16 %v5089, %v4431
      %v5448 = vpack.c.bf16 %v2459, %v1801
      %v5449 = vpack.c.bf16 %v3775, %v3117
      %v5450 = vpack.c.bf16 %v5091, %v4433
      %v5451 = vpack.c.bf16 %v2462, %v1804
      %v5452 = vpack.c.bf16 %v3778, %v3120
      %v5453 = vpack.c.bf16 %v5094, %v4436
      %v5454 = vpack.c.bf16 %v2464, %v1806
      %v5455 = vpack.c.bf16 %v3780, %v3122
      %v5456 = vpack.c.bf16 %v5096, %v4438
      %v5457 = vpack.c.bf16 %v2467, %v1809
      %v5458 = vpack.c.bf16 %v3783, %v3125
      %v5459 = vpack.c.bf16 %v5099, %v4441
      %v5460 = vpack.c.bf16 %v2469, %v1811
      %v5461 = vpack.c.bf16 %v3785, %v3127
      %v5462 = vpack.c.bf16 %v5101, %v4443
      %v5463 = vpack.c.bf16 %v2472, %v1814
      %v5464 = vpack.c.bf16 %v3788, %v3130
      %v5465 = vpack.c.bf16 %v5104, %v4446
      %v5466 = vpack.c.bf16 %v2474, %v1816
      %v5467 = vpack.c.bf16 %v3790, %v3132
      %v5468 = vpack.c.bf16 %v5106, %v4448
      %v5469 = vpack.c.bf16 %v2477, %v1819
      %v5470 = vpack.c.bf16 %v3793, %v3135
      %v5471 = vpack.c.bf16 %v5109, %v4451
      %v5472 = vpack.c.bf16 %v2479, %v1821
      %v5473 = vpack.c.bf16 %v3795, %v3137
      %v5474 = vpack.c.bf16 %v5111, %v4453
      %v5475 = vpack.c.bf16 %v2482, %v1824
      %v5476 = vpack.c.bf16 %v3798, %v3140
      %v5477 = vpack.c.bf16 %v5114, %v4456
      %v5478 = vpack.c.bf16 %v2484, %v1826
      %v5479 = vpack.c.bf16 %v3800, %v3142
      %v5480 = vpack.c.bf16 %v5116, %v4458
      %v5481 = vpack.c.bf16 %v2487, %v1829
      %v5482 = vpack.c.bf16 %v3803, %v3145
      %v5483 = vpack.c.bf16 %v5119, %v4461
      %v5484 = vpack.c.bf16 %v2489, %v1831
      %v5485 = vpack.c.bf16 %v3805, %v3147
      %v5486 = vpack.c.bf16 %v5121, %v4463
      %v5487 = vpack.c.bf16 %v2492, %v1834
      %v5488 = vpack.c.bf16 %v3808, %v3150
      %v5489 = vpack.c.bf16 %v5124, %v4466
      %v5490 = vpack.c.bf16 %v2494, %v1836
      %v5491 = vpack.c.bf16 %v3810, %v3152
      %v5492 = vpack.c.bf16 %v5126, %v4468
      %v5493 = vpack.c.bf16 %v2497, %v1839
      %v5494 = vpack.c.bf16 %v3813, %v3155
      %v5495 = vpack.c.bf16 %v5129, %v4471
      %v5496 = vpack.c.bf16 %v2499, %v1841
      %v5497 = vpack.c.bf16 %v3815, %v3157
      %v5498 = vpack.c.bf16 %v5131, %v4473
      %v5499 = vpack.c.bf16 %v2502, %v1844
      %v5500 = vpack.c.bf16 %v3818, %v3160
      %v5501 = vpack.c.bf16 %v5134, %v4476
      %v5502 = vpack.c.bf16 %v2504, %v1846
      %v5503 = vpack.c.bf16 %v3820, %v3162
      %v5504 = vpack.c.bf16 %v5136, %v4478
      %v5505 = vpack.c.bf16 %v2507, %v1849
      %v5506 = vpack.c.bf16 %v3823, %v3165
      %v5507 = vpack.c.bf16 %v5139, %v4481
      %v5508 = vpack.c.bf16 %v2509, %v1851
      %v5509 = vpack.c.bf16 %v3825, %v3167
      %v5510 = vpack.c.bf16 %v5141, %v4483
      %v5511 = vpack.c.bf16 %v2512, %v1854
      %v5512 = vpack.c.bf16 %v3828, %v3170
      %v5513 = vpack.c.bf16 %v5144, %v4486
      %v5514 = vpack.c.bf16 %v2514, %v1856
      %v5515 = vpack.c.bf16 %v3830, %v3172
      %v5516 = vpack.c.bf16 %v5146, %v4488
      %v5517 = vpack.c.bf16 %v2517, %v1859
      %v5518 = vpack.c.bf16 %v3833, %v3175
      %v5519 = vpack.c.bf16 %v5149, %v4491
      %v5520 = vpack.c.bf16 %v2519, %v1861
      %v5521 = vpack.c.bf16 %v3835, %v3177
      %v5522 = vpack.c.bf16 %v5151, %v4493
      %v5523 = vpack.c.bf16 %v2522, %v1864
      %v5524 = vpack.c.bf16 %v3838, %v3180
      %v5525 = vpack.c.bf16 %v5154, %v4496
      %v5526 = vpack.c.bf16 %v2524, %v1866
      %v5527 = vpack.c.bf16 %v3840, %v3182
      %v5528 = vpack.c.bf16 %v5156, %v4498
      %v5529 = vpack.c.bf16 %v2527, %v1869
      %v5530 = vpack.c.bf16 %v3843, %v3185
      %v5531 = vpack.c.bf16 %v5159, %v4501
      %v5532 = vpack.c.bf16 %v2529, %v1871
      %v5533 = vpack.c.bf16 %v3845, %v3187
      %v5534 = vpack.c.bf16 %v5161, %v4503
      %v5535 = vpack.c.bf16 %v2532, %v1874
      %v5536 = vpack.c.bf16 %v3848, %v3190
      %v5537 = vpack.c.bf16 %v5164, %v4506
      %v5538 = vpack.c.bf16 %v2534, %v1876
      %v5539 = vpack.c.bf16 %v3850, %v3192
      %v5540 = vpack.c.bf16 %v5166, %v4508
      %v5541 = vpack.c.bf16 %v2537, %v1879
      %v5542 = vpack.c.bf16 %v3853, %v3195
      %v5543 = vpack.c.bf16 %v5169, %v4511
      %v5544 = vpack.c.bf16 %v2539, %v1881
      %v5545 = vpack.c.bf16 %v3855, %v3197
      %v5546 = vpack.c.bf16 %v5171, %v4513
      %v5547 = vpack.c.bf16 %v2542, %v1884
      %v5548 = vpack.c.bf16 %v3858, %v3200
      %v5549 = vpack.c.bf16 %v5174, %v4516
      %v5550 = vpack.c.bf16 %v2544, %v1886
      %v5551 = vpack.c.bf16 %v3860, %v3202
      %v5552 = vpack.c.bf16 %v5176, %v4518
      %v5553 = vpack.c.bf16 %v2547, %v1889
      %v5554 = vpack.c.bf16 %v3863, %v3205
      %v5555 = vpack.c.bf16 %v5179, %v4521
      %v5556 = vpack.c.bf16 %v2549, %v1891
      %v5557 = vpack.c.bf16 %v3865, %v3207
      %v5558 = vpack.c.bf16 %v5181, %v4523
      %v5559 = vpack.c.bf16 %v2552, %v1894
      %v5560 = vpack.c.bf16 %v3868, %v3210
      %v5561 = vpack.c.bf16 %v5184, %v4526
      %v5562 = vpack.c.bf16 %v2554, %v1896
      %v5563 = vpack.c.bf16 %v3870, %v3212
      %v5564 = vpack.c.bf16 %v5186, %v4528
      %v5565 = vpack.c.bf16 %v2557, %v1899
      %v5566 = vpack.c.bf16 %v3873, %v3215
      %v5567 = vpack.c.bf16 %v5189, %v4531
      %v5568 = vpack.c.bf16 %v2559, %v1901
      %v5569 = vpack.c.bf16 %v3875, %v3217
      %v5570 = vpack.c.bf16 %v5191, %v4533
      %v5571 = vpack.c.bf16 %v2562, %v1904
      %v5572 = vpack.c.bf16 %v3878, %v3220
      %v5573 = vpack.c.bf16 %v5194, %v4536
      %v5574 = vpack.c.bf16 %v2564, %v1906
      %v5575 = vpack.c.bf16 %v3880, %v3222
      %v5576 = vpack.c.bf16 %v5196, %v4538
      %v5577 = vpack.c.bf16 %v2567, %v1909
      %v5578 = vpack.c.bf16 %v3883, %v3225
      %v5579 = vpack.c.bf16 %v5199, %v4541
      %v5580 = vpack.c.bf16 %v2569, %v1911
      %v5581 = vpack.c.bf16 %v3885, %v3227
      %v5582 = vpack.c.bf16 %v5201, %v4543
      %v5583 = vpack.c.bf16 %v2572, %v1914
      %v5584 = vpack.c.bf16 %v3888, %v3230
      %v5585 = vpack.c.bf16 %v5204, %v4546
      %v5586 = vpack.c.bf16 %v2574, %v1916
      %v5587 = vpack.c.bf16 %v3890, %v3232
      %v5588 = vpack.c.bf16 %v5206, %v4548
      %v5589 = vpack.c.bf16 %v2577, %v1919
      %v5590 = vpack.c.bf16 %v3893, %v3235
      %v5591 = vpack.c.bf16 %v5209, %v4551
      %v5592 = vpack.c.bf16 %v2579, %v1921
      %v5593 = vpack.c.bf16 %v3895, %v3237
      %v5594 = vpack.c.bf16 %v5211, %v4553
      %v5595 = vpack.c.bf16 %v2582, %v1924
      %v5596 = vpack.c.bf16 %v3898, %v3240
      %v5597 = vpack.c.bf16 %v5214, %v4556
      %v5598 = vpack.c.bf16 %v2584, %v1926
      %v5599 = vpack.c.bf16 %v3900, %v3242
      %v5600 = vpack.c.bf16 %v5216, %v4558
      %v5601 = vpack.c.bf16 %v2587, %v1929
      %v5602 = vpack.c.bf16 %v3903, %v3245
      %v5603 = vpack.c.bf16 %v5219, %v4561
      %v5604 = vpack.c.bf16 %v2589, %v1931
      %v5605 = vpack.c.bf16 %v3905, %v3247
      %v5606 = vpack.c.bf16 %v5221, %v4563
      %5607 = vst [vmem:[%s177] sm:$0xff] %v5223
      %5608 = vst [vmem:[%s177 + $0x8] sm:$0xff] %v5224
      %vm5609 = vcmask 1043456
      %vm5610 = vcmask 261124
      %vm5611 = vmor %vm5610, %vm5609
      %5612 = vst.msk [vmem:[%s177 + $0x10] sm:$0xff] %vm5611, %v5225
      %5613 = vst [vmem:[%s177 + $0x18] sm:$0xff] %v5226
      %5614 = vst [vmem:[%s177 + $0x20] sm:$0xff] %v5227
      %5615 = vst.msk [vmem:[%s177 + $0x28] sm:$0xff] %vm5611, %v5228
      %5616 = vst [vmem:[%s177 + $0x30] sm:$0xff] %v5229
      %5617 = vst [vmem:[%s177 + $0x38] sm:$0xff] %v5230
      %5618 = vst.msk [vmem:[%s177 + $0x40] sm:$0xff] %vm5611, %v5231
      %5619 = vst [vmem:[%s177 + $0x48] sm:$0xff] %v5232
      %5620 = vst [vmem:[%s177 + $0x50] sm:$0xff] %v5233
      %5621 = vst.msk [vmem:[%s177 + $0x58] sm:$0xff] %vm5611, %v5234
      %5622 = vst [vmem:[%s177 + $0x60] sm:$0xff] %v5235
      %5623 = vst [vmem:[%s177 + $0x68] sm:$0xff] %v5236
      %5624 = vst.msk [vmem:[%s177 + $0x70] sm:$0xff] %vm5611, %v5237
      %5625 = vst [vmem:[%s177 + $0x78] sm:$0xff] %v5238
      %5626 = vst [vmem:[%s177 + $0x80] sm:$0xff] %v5239
      %5627 = vst.msk [vmem:[%s177 + $0x88] sm:$0xff] %vm5611, %v5240
      %5628 = vst [vmem:[%s177 + $0x90] sm:$0xff] %v5241
      %5629 = vst [vmem:[%s177 + $0x98] sm:$0xff] %v5242
      %5630 = vst.msk [vmem:[%s177 + $0xa0] sm:$0xff] %vm5611, %v5243
      %5631 = vst [vmem:[%s177 + $0xa8] sm:$0xff] %v5244
      %5632 = vst [vmem:[%s177 + $0xb0] sm:$0xff] %v5245
      %5633 = vst.msk [vmem:[%s177 + $0xb8] sm:$0xff] %vm5611, %v5246
      %5634 = vst [vmem:[%s177 + $0xc0] sm:$0xff] %v5247
      %5635 = vst [vmem:[%s177 + $0xc8] sm:$0xff] %v5248
      %5636 = vst.msk [vmem:[%s177 + $0xd0] sm:$0xff] %vm5611, %v5249
      %5637 = vst [vmem:[%s177 + $0xd8] sm:$0xff] %v5250
      %5638 = vst [vmem:[%s177 + $0xe0] sm:$0xff] %v5251
      %5639 = vst.msk [vmem:[%s177 + $0xe8] sm:$0xff] %vm5611, %v5252
      %5640 = vst [vmem:[%s177 + $0xf0] sm:$0xff] %v5253
      %5641 = vst [vmem:[%s177 + $0xf8] sm:$0xff] %v5254
      %5642 = vst.msk [vmem:[%s177 + $0x100] sm:$0xff] %vm5611, %v5255
      %5643 = vst [vmem:[%s177 + $0x108] sm:$0xff] %v5256
      %5644 = vst [vmem:[%s177 + $0x110] sm:$0xff] %v5257
      %5645 = vst.msk [vmem:[%s177 + $0x118] sm:$0xff] %vm5611, %v5258
      %5646 = vst [vmem:[%s177 + $0x120] sm:$0xff] %v5259
      %5647 = vst [vmem:[%s177 + $0x128] sm:$0xff] %v5260
      %5648 = vst.msk [vmem:[%s177 + $0x130] sm:$0xff] %vm5611, %v5261
      %5649 = vst [vmem:[%s177 + $0x138] sm:$0xff] %v5262
      %5650 = vst [vmem:[%s177 + $0x140] sm:$0xff] %v5263
      %5651 = vst.msk [vmem:[%s177 + $0x148] sm:$0xff] %vm5611, %v5264
      %5652 = vst [vmem:[%s177 + $0x150] sm:$0xff] %v5265
      %5653 = vst [vmem:[%s177 + $0x158] sm:$0xff] %v5266
      %5654 = vst.msk [vmem:[%s177 + $0x160] sm:$0xff] %vm5611, %v5267
      %5655 = vst [vmem:[%s177 + $0x168] sm:$0xff] %v5268
      %5656 = vst [vmem:[%s177 + $0x170] sm:$0xff] %v5269
      %5657 = vst.msk [vmem:[%s177 + $0x178] sm:$0xff] %vm5611, %v5270
      %5658 = vst [vmem:[%s177 + $0x180] sm:$0xff] %v5271
      %5659 = vst [vmem:[%s177 + $0x188] sm:$0xff] %v5272
      %5660 = vst.msk [vmem:[%s177 + $0x190] sm:$0xff] %vm5611, %v5273
      %5661 = vst [vmem:[%s177 + $0x198] sm:$0xff] %v5274
      %5662 = vst [vmem:[%s177 + $0x1a0] sm:$0xff] %v5275
      %5663 = vst.msk [vmem:[%s177 + $0x1a8] sm:$0xff] %vm5611, %v5276
      %5664 = vst [vmem:[%s177 + $0x1b0] sm:$0xff] %v5277
      %5665 = vst [vmem:[%s177 + $0x1b8] sm:$0xff] %v5278
      %5666 = vst.msk [vmem:[%s177 + $0x1c0] sm:$0xff] %vm5611, %v5279
      %5667 = vst [vmem:[%s177 + $0x1c8] sm:$0xff] %v5280
      %5668 = vst [vmem:[%s177 + $0x1d0] sm:$0xff] %v5281
      %5669 = vst.msk [vmem:[%s177 + $0x1d8] sm:$0xff] %vm5611, %v5282
      %5670 = vst [vmem:[%s177 + $0x1e0] sm:$0xff] %v5283
      %5671 = vst [vmem:[%s177 + $0x1e8] sm:$0xff] %v5284
      %5672 = vst.msk [vmem:[%s177 + $0x1f0] sm:$0xff] %vm5611, %v5285
      %5673 = vst [vmem:[%s177 + $0x1f8] sm:$0xff] %v5286
      %5674 = vst [vmem:[%s177 + $0x200] sm:$0xff] %v5287
      %5675 = vst.msk [vmem:[%s177 + $0x208] sm:$0xff] %vm5611, %v5288
      %5676 = vst [vmem:[%s177 + $0x210] sm:$0xff] %v5289
      %5677 = vst [vmem:[%s177 + $0x218] sm:$0xff] %v5290
      %5678 = vst.msk [vmem:[%s177 + $0x220] sm:$0xff] %vm5611, %v5291
      %5679 = vst [vmem:[%s177 + $0x228] sm:$0xff] %v5292
      %5680 = vst [vmem:[%s177 + $0x230] sm:$0xff] %v5293
      %5681 = vst.msk [vmem:[%s177 + $0x238] sm:$0xff] %vm5611, %v5294
      %5682 = vst [vmem:[%s177 + $0x240] sm:$0xff] %v5295
      %5683 = vst [vmem:[%s177 + $0x248] sm:$0xff] %v5296
      %5684 = vst.msk [vmem:[%s177 + $0x250] sm:$0xff] %vm5611, %v5297
      %5685 = vst [vmem:[%s177 + $0x258] sm:$0xff] %v5298
      %5686 = vst [vmem:[%s177 + $0x260] sm:$0xff] %v5299
      %5687 = vst.msk [vmem:[%s177 + $0x268] sm:$0xff] %vm5611, %v5300
      %5688 = vst [vmem:[%s177 + $0x270] sm:$0xff] %v5301
      %5689 = vst [vmem:[%s177 + $0x278] sm:$0xff] %v5302
      %5690 = vst.msk [vmem:[%s177 + $0x280] sm:$0xff] %vm5611, %v5303
      %5691 = vst [vmem:[%s177 + $0x288] sm:$0xff] %v5304
      %5692 = vst [vmem:[%s177 + $0x290] sm:$0xff] %v5305
      %5693 = vst.msk [vmem:[%s177 + $0x298] sm:$0xff] %vm5611, %v5306
      %5694 = vst [vmem:[%s177 + $0x2a0] sm:$0xff] %v5307
      %5695 = vst [vmem:[%s177 + $0x2a8] sm:$0xff] %v5308
      %5696 = vst.msk [vmem:[%s177 + $0x2b0] sm:$0xff] %vm5611, %v5309
      %5697 = vst [vmem:[%s177 + $0x2b8] sm:$0xff] %v5310
      %5698 = vst [vmem:[%s177 + $0x2c0] sm:$0xff] %v5311
      %5699 = vst.msk [vmem:[%s177 + $0x2c8] sm:$0xff] %vm5611, %v5312
      %5700 = vst [vmem:[%s177 + $0x2d0] sm:$0xff] %v5313
      %5701 = vst [vmem:[%s177 + $0x2d8] sm:$0xff] %v5314
      %5702 = vst.msk [vmem:[%s177 + $0x2e0] sm:$0xff] %vm5611, %v5315
      %5703 = vst [vmem:[%s177 + $0x2e8] sm:$0xff] %v5316
      %5704 = vst [vmem:[%s177 + $0x2f0] sm:$0xff] %v5317
      %5705 = vst.msk [vmem:[%s177 + $0x2f8] sm:$0xff] %vm5611, %v5318
      %5706 = vst [vmem:[%s177 + $0x300] sm:$0xff] %v5319
      %5707 = vst [vmem:[%s177 + $0x308] sm:$0xff] %v5320
      %5708 = vst.msk [vmem:[%s177 + $0x310] sm:$0xff] %vm5611, %v5321
      %5709 = vst [vmem:[%s177 + $0x318] sm:$0xff] %v5322
      %5710 = vst [vmem:[%s177 + $0x320] sm:$0xff] %v5323
      %5711 = vst.msk [vmem:[%s177 + $0x328] sm:$0xff] %vm5611, %v5324
      %5712 = vst [vmem:[%s177 + $0x330] sm:$0xff] %v5325
      %5713 = vst [vmem:[%s177 + $0x338] sm:$0xff] %v5326
      %5714 = vst.msk [vmem:[%s177 + $0x340] sm:$0xff] %vm5611, %v5327
      %5715 = vst [vmem:[%s177 + $0x348] sm:$0xff] %v5328
      %5716 = vst [vmem:[%s177 + $0x350] sm:$0xff] %v5329
      %5717 = vst.msk [vmem:[%s177 + $0x358] sm:$0xff] %vm5611, %v5330
      %5718 = vst [vmem:[%s177 + $0x360] sm:$0xff] %v5331
      %5719 = vst [vmem:[%s177 + $0x368] sm:$0xff] %v5332
      %5720 = vst.msk [vmem:[%s177 + $0x370] sm:$0xff] %vm5611, %v5333
      %5721 = vst [vmem:[%s177 + $0x378] sm:$0xff] %v5334
      %5722 = vst [vmem:[%s177 + $0x380] sm:$0xff] %v5335
      %5723 = vst.msk [vmem:[%s177 + $0x388] sm:$0xff] %vm5611, %v5336
      %5724 = vst [vmem:[%s177 + $0x390] sm:$0xff] %v5337
      %5725 = vst [vmem:[%s177 + $0x398] sm:$0xff] %v5338
      %5726 = vst.msk [vmem:[%s177 + $0x3a0] sm:$0xff] %vm5611, %v5339
      %5727 = vst [vmem:[%s177 + $0x3a8] sm:$0xff] %v5340
      %5728 = vst [vmem:[%s177 + $0x3b0] sm:$0xff] %v5341
      %5729 = vst.msk [vmem:[%s177 + $0x3b8] sm:$0xff] %vm5611, %v5342
      %5730 = vst [vmem:[%s177 + $0x3c0] sm:$0xff] %v5343
      %5731 = vst [vmem:[%s177 + $0x3c8] sm:$0xff] %v5344
      %5732 = vst.msk [vmem:[%s177 + $0x3d0] sm:$0xff] %vm5611, %v5345
      %5733 = vst [vmem:[%s177 + $0x3d8] sm:$0xff] %v5346
      %5734 = vst [vmem:[%s177 + $0x3e0] sm:$0xff] %v5347
      %5735 = vst.msk [vmem:[%s177 + $0x3e8] sm:$0xff] %vm5611, %v5348
      %5736 = vst [vmem:[%s177 + $0x3f0] sm:$0xff] %v5349
      %5737 = vst [vmem:[%s177 + $0x3f8] sm:$0xff] %v5350
      %5738 = vst.msk [vmem:[%s177 + $0x400] sm:$0xff] %vm5611, %v5351
      %5739 = vst [vmem:[%s177 + $0x408] sm:$0xff] %v5352
      %5740 = vst [vmem:[%s177 + $0x410] sm:$0xff] %v5353
      %5741 = vst.msk [vmem:[%s177 + $0x418] sm:$0xff] %vm5611, %v5354
      %5742 = vst [vmem:[%s177 + $0x420] sm:$0xff] %v5355
      %5743 = vst [vmem:[%s177 + $0x428] sm:$0xff] %v5356
      %5744 = vst.msk [vmem:[%s177 + $0x430] sm:$0xff] %vm5611, %v5357
      %5745 = vst [vmem:[%s177 + $0x438] sm:$0xff] %v5358
      %5746 = vst [vmem:[%s177 + $0x440] sm:$0xff] %v5359
      %5747 = vst.msk [vmem:[%s177 + $0x448] sm:$0xff] %vm5611, %v5360
      %5748 = vst [vmem:[%s177 + $0x450] sm:$0xff] %v5361
      %5749 = vst [vmem:[%s177 + $0x458] sm:$0xff] %v5362
      %5750 = vst.msk [vmem:[%s177 + $0x460] sm:$0xff] %vm5611, %v5363
      %5751 = vst [vmem:[%s177 + $0x468] sm:$0xff] %v5364
      %5752 = vst [vmem:[%s177 + $0x470] sm:$0xff] %v5365
      %5753 = vst.msk [vmem:[%s177 + $0x478] sm:$0xff] %vm5611, %v5366
      %5754 = vst [vmem:[%s177 + $0x480] sm:$0xff] %v5367
      %5755 = vst [vmem:[%s177 + $0x488] sm:$0xff] %v5368
      %5756 = vst.msk [vmem:[%s177 + $0x490] sm:$0xff] %vm5611, %v5369
      %5757 = vst [vmem:[%s177 + $0x498] sm:$0xff] %v5370
      %5758 = vst [vmem:[%s177 + $0x4a0] sm:$0xff] %v5371
      %5759 = vst.msk [vmem:[%s177 + $0x4a8] sm:$0xff] %vm5611, %v5372
      %5760 = vst [vmem:[%s177 + $0x4b0] sm:$0xff] %v5373
      %5761 = vst [vmem:[%s177 + $0x4b8] sm:$0xff] %v5374
      %5762 = vst.msk [vmem:[%s177 + $0x4c0] sm:$0xff] %vm5611, %v5375
      %5763 = vst [vmem:[%s177 + $0x4c8] sm:$0xff] %v5376
      %5764 = vst [vmem:[%s177 + $0x4d0] sm:$0xff] %v5377
      %5765 = vst.msk [vmem:[%s177 + $0x4d8] sm:$0xff] %vm5611, %v5378
      %5766 = vst [vmem:[%s177 + $0x4e0] sm:$0xff] %v5379
      %5767 = vst [vmem:[%s177 + $0x4e8] sm:$0xff] %v5380
      %5768 = vst.msk [vmem:[%s177 + $0x4f0] sm:$0xff] %vm5611, %v5381
      %5769 = vst [vmem:[%s177 + $0x4f8] sm:$0xff] %v5382
      %5770 = vst [vmem:[%s177 + $0x500] sm:$0xff] %v5383
      %5771 = vst.msk [vmem:[%s177 + $0x508] sm:$0xff] %vm5611, %v5384
      %5772 = vst [vmem:[%s177 + $0x510] sm:$0xff] %v5385
      %5773 = vst [vmem:[%s177 + $0x518] sm:$0xff] %v5386
      %5774 = vst.msk [vmem:[%s177 + $0x520] sm:$0xff] %vm5611, %v5387
      %5775 = vst [vmem:[%s177 + $0x528] sm:$0xff] %v5388
      %5776 = vst [vmem:[%s177 + $0x530] sm:$0xff] %v5389
      %5777 = vst.msk [vmem:[%s177 + $0x538] sm:$0xff] %vm5611, %v5390
      %5778 = vst [vmem:[%s177 + $0x540] sm:$0xff] %v5391
      %5779 = vst [vmem:[%s177 + $0x548] sm:$0xff] %v5392
      %5780 = vst.msk [vmem:[%s177 + $0x550] sm:$0xff] %vm5611, %v5393
      %5781 = vst [vmem:[%s177 + $0x558] sm:$0xff] %v5394
      %5782 = vst [vmem:[%s177 + $0x560] sm:$0xff] %v5395
      %5783 = vst.msk [vmem:[%s177 + $0x568] sm:$0xff] %vm5611, %v5396
      %5784 = vst [vmem:[%s177 + $0x570] sm:$0xff] %v5397
      %5785 = vst [vmem:[%s177 + $0x578] sm:$0xff] %v5398
      %5786 = vst.msk [vmem:[%s177 + $0x580] sm:$0xff] %vm5611, %v5399
      %5787 = vst [vmem:[%s177 + $0x588] sm:$0xff] %v5400
      %5788 = vst [vmem:[%s177 + $0x590] sm:$0xff] %v5401
      %5789 = vst.msk [vmem:[%s177 + $0x598] sm:$0xff] %vm5611, %v5402
      %5790 = vst [vmem:[%s177 + $0x5a0] sm:$0xff] %v5403
      %5791 = vst [vmem:[%s177 + $0x5a8] sm:$0xff] %v5404
      %5792 = vst.msk [vmem:[%s177 + $0x5b0] sm:$0xff] %vm5611, %v5405
      %5793 = vst [vmem:[%s177 + $0x5b8] sm:$0xff] %v5406
      %5794 = vst [vmem:[%s177 + $0x5c0] sm:$0xff] %v5407
      %5795 = vst.msk [vmem:[%s177 + $0x5c8] sm:$0xff] %vm5611, %v5408
      %5796 = vst [vmem:[%s177 + $0x5d0] sm:$0xff] %v5409
      %5797 = vst [vmem:[%s177 + $0x5d8] sm:$0xff] %v5410
      %5798 = vst.msk [vmem:[%s177 + $0x5e0] sm:$0xff] %vm5611, %v5411
      %5799 = vst [vmem:[%s177 + $0x5e8] sm:$0xff] %v5412
      %5800 = vst [vmem:[%s177 + $0x5f0] sm:$0xff] %v5413
      %5801 = vst.msk [vmem:[%s177 + $0x5f8] sm:$0xff] %vm5611, %v5414
      %5802 = vst [vmem:[%s177 + $0x600] sm:$0xff] %v5415
      %5803 = vst [vmem:[%s177 + $0x608] sm:$0xff] %v5416
      %5804 = vst.msk [vmem:[%s177 + $0x610] sm:$0xff] %vm5611, %v5417
      %5805 = vst [vmem:[%s177 + $0x618] sm:$0xff] %v5418
      %5806 = vst [vmem:[%s177 + $0x620] sm:$0xff] %v5419
      %5807 = vst.msk [vmem:[%s177 + $0x628] sm:$0xff] %vm5611, %v5420
      %5808 = vst [vmem:[%s177 + $0x630] sm:$0xff] %v5421
      %5809 = vst [vmem:[%s177 + $0x638] sm:$0xff] %v5422
      %5810 = vst.msk [vmem:[%s177 + $0x640] sm:$0xff] %vm5611, %v5423
      %5811 = vst [vmem:[%s177 + $0x648] sm:$0xff] %v5424
      %5812 = vst [vmem:[%s177 + $0x650] sm:$0xff] %v5425
      %5813 = vst.msk [vmem:[%s177 + $0x658] sm:$0xff] %vm5611, %v5426
      %5814 = vst [vmem:[%s177 + $0x660] sm:$0xff] %v5427
      %5815 = vst [vmem:[%s177 + $0x668] sm:$0xff] %v5428
      %5816 = vst.msk [vmem:[%s177 + $0x670] sm:$0xff] %vm5611, %v5429
      %5817 = vst [vmem:[%s177 + $0x678] sm:$0xff] %v5430
      %5818 = vst [vmem:[%s177 + $0x680] sm:$0xff] %v5431
      %5819 = vst.msk [vmem:[%s177 + $0x688] sm:$0xff] %vm5611, %v5432
      %5820 = vst [vmem:[%s177 + $0x690] sm:$0xff] %v5433
      %5821 = vst [vmem:[%s177 + $0x698] sm:$0xff] %v5434
      %5822 = vst.msk [vmem:[%s177 + $0x6a0] sm:$0xff] %vm5611, %v5435
      %5823 = vst [vmem:[%s177 + $0x6a8] sm:$0xff] %v5436
      %5824 = vst [vmem:[%s177 + $0x6b0] sm:$0xff] %v5437
      %5825 = vst.msk [vmem:[%s177 + $0x6b8] sm:$0xff] %vm5611, %v5438
      %5826 = vst [vmem:[%s177 + $0x6c0] sm:$0xff] %v5439
      %5827 = vst [vmem:[%s177 + $0x6c8] sm:$0xff] %v5440
      %5828 = vst.msk [vmem:[%s177 + $0x6d0] sm:$0xff] %vm5611, %v5441
      %5829 = vst [vmem:[%s177 + $0x6d8] sm:$0xff] %v5442
      %5830 = vst [vmem:[%s177 + $0x6e0] sm:$0xff] %v5443
      %5831 = vst.msk [vmem:[%s177 + $0x6e8] sm:$0xff] %vm5611, %v5444
      %5832 = vst [vmem:[%s177 + $0x6f0] sm:$0xff] %v5445
      %5833 = vst [vmem:[%s177 + $0x6f8] sm:$0xff] %v5446
      %5834 = vst.msk [vmem:[%s177 + $0x700] sm:$0xff] %vm5611, %v5447
      %5835 = vst [vmem:[%s177 + $0x708] sm:$0xff] %v5448
      %5836 = vst [vmem:[%s177 + $0x710] sm:$0xff] %v5449
      %5837 = vst.msk [vmem:[%s177 + $0x718] sm:$0xff] %vm5611, %v5450
      %5838 = vst [vmem:[%s177 + $0x720] sm:$0xff] %v5451
      %5839 = vst [vmem:[%s177 + $0x728] sm:$0xff] %v5452
      %5840 = vst.msk [vmem:[%s177 + $0x730] sm:$0xff] %vm5611, %v5453
      %5841 = vst [vmem:[%s177 + $0x738] sm:$0xff] %v5454
      %5842 = vst [vmem:[%s177 + $0x740] sm:$0xff] %v5455
      %5843 = vst.msk [vmem:[%s177 + $0x748] sm:$0xff] %vm5611, %v5456
      %5844 = vst [vmem:[%s177 + $0x750] sm:$0xff] %v5457
      %5845 = vst [vmem:[%s177 + $0x758] sm:$0xff] %v5458
      %5846 = vst.msk [vmem:[%s177 + $0x760] sm:$0xff] %vm5611, %v5459
      %5847 = vst [vmem:[%s177 + $0x768] sm:$0xff] %v5460
      %5848 = vst [vmem:[%s177 + $0x770] sm:$0xff] %v5461
      %5849 = vst.msk [vmem:[%s177 + $0x778] sm:$0xff] %vm5611, %v5462
      %5850 = vst [vmem:[%s177 + $0x780] sm:$0xff] %v5463
      %5851 = vst [vmem:[%s177 + $0x788] sm:$0xff] %v5464
      %5852 = vst.msk [vmem:[%s177 + $0x790] sm:$0xff] %vm5611, %v5465
      %5853 = vst [vmem:[%s177 + $0x798] sm:$0xff] %v5466
      %5854 = vst [vmem:[%s177 + $0x7a0] sm:$0xff] %v5467
      %5855 = vst.msk [vmem:[%s177 + $0x7a8] sm:$0xff] %vm5611, %v5468
      %5856 = vst [vmem:[%s177 + $0x7b0] sm:$0xff] %v5469
      %5857 = vst [vmem:[%s177 + $0x7b8] sm:$0xff] %v5470
      %5858 = vst.msk [vmem:[%s177 + $0x7c0] sm:$0xff] %vm5611, %v5471
      %5859 = vst [vmem:[%s177 + $0x7c8] sm:$0xff] %v5472
      %5860 = vst [vmem:[%s177 + $0x7d0] sm:$0xff] %v5473
      %5861 = vst.msk [vmem:[%s177 + $0x7d8] sm:$0xff] %vm5611, %v5474
      %5862 = vst [vmem:[%s177 + $0x7e0] sm:$0xff] %v5475
      %5863 = vst [vmem:[%s177 + $0x7e8] sm:$0xff] %v5476
      %5864 = vst.msk [vmem:[%s177 + $0x7f0] sm:$0xff] %vm5611, %v5477
      %5865 = vst [vmem:[%s177 + $0x7f8] sm:$0xff] %v5478
      %5866 = vst [vmem:[%s177 + $0x800] sm:$0xff] %v5479
      %5867 = vst.msk [vmem:[%s177 + $0x808] sm:$0xff] %vm5611, %v5480
      %5868 = vst [vmem:[%s177 + $0x810] sm:$0xff] %v5481
      %5869 = vst [vmem:[%s177 + $0x818] sm:$0xff] %v5482
      %5870 = vst.msk [vmem:[%s177 + $0x820] sm:$0xff] %vm5611, %v5483
      %5871 = vst [vmem:[%s177 + $0x828] sm:$0xff] %v5484
      %5872 = vst [vmem:[%s177 + $0x830] sm:$0xff] %v5485
      %5873 = vst.msk [vmem:[%s177 + $0x838] sm:$0xff] %vm5611, %v5486
      %5874 = vst [vmem:[%s177 + $0x840] sm:$0xff] %v5487
      %5875 = vst [vmem:[%s177 + $0x848] sm:$0xff] %v5488
      %5876 = vst.msk [vmem:[%s177 + $0x850] sm:$0xff] %vm5611, %v5489
      %5877 = vst [vmem:[%s177 + $0x858] sm:$0xff] %v5490
      %5878 = vst [vmem:[%s177 + $0x860] sm:$0xff] %v5491
      %5879 = vst.msk [vmem:[%s177 + $0x868] sm:$0xff] %vm5611, %v5492
      %5880 = vst [vmem:[%s177 + $0x870] sm:$0xff] %v5493
      %5881 = vst [vmem:[%s177 + $0x878] sm:$0xff] %v5494
      %5882 = vst.msk [vmem:[%s177 + $0x880] sm:$0xff] %vm5611, %v5495
      %5883 = vst [vmem:[%s177 + $0x888] sm:$0xff] %v5496
      %5884 = vst [vmem:[%s177 + $0x890] sm:$0xff] %v5497
      %5885 = vst.msk [vmem:[%s177 + $0x898] sm:$0xff] %vm5611, %v5498
      %5886 = vst [vmem:[%s177 + $0x8a0] sm:$0xff] %v5499
      %5887 = vst [vmem:[%s177 + $0x8a8] sm:$0xff] %v5500
      %5888 = vst.msk [vmem:[%s177 + $0x8b0] sm:$0xff] %vm5611, %v5501
      %5889 = vst [vmem:[%s177 + $0x8b8] sm:$0xff] %v5502
      %5890 = vst [vmem:[%s177 + $0x8c0] sm:$0xff] %v5503
      %5891 = vst.msk [vmem:[%s177 + $0x8c8] sm:$0xff] %vm5611, %v5504
      %5892 = vst [vmem:[%s177 + $0x8d0] sm:$0xff] %v5505
      %5893 = vst [vmem:[%s177 + $0x8d8] sm:$0xff] %v5506
      %5894 = vst.msk [vmem:[%s177 + $0x8e0] sm:$0xff] %vm5611, %v5507
      %5895 = vst [vmem:[%s177 + $0x8e8] sm:$0xff] %v5508
      %5896 = vst [vmem:[%s177 + $0x8f0] sm:$0xff] %v5509
      %5897 = vst.msk [vmem:[%s177 + $0x8f8] sm:$0xff] %vm5611, %v5510
      %5898 = vst [vmem:[%s177 + $0x900] sm:$0xff] %v5511
      %5899 = vst [vmem:[%s177 + $0x908] sm:$0xff] %v5512
      %5900 = vst.msk [vmem:[%s177 + $0x910] sm:$0xff] %vm5611, %v5513
      %5901 = vst [vmem:[%s177 + $0x918] sm:$0xff] %v5514
      %5902 = vst [vmem:[%s177 + $0x920] sm:$0xff] %v5515
      %5903 = vst.msk [vmem:[%s177 + $0x928] sm:$0xff] %vm5611, %v5516
      %5904 = vst [vmem:[%s177 + $0x930] sm:$0xff] %v5517
      %5905 = vst [vmem:[%s177 + $0x938] sm:$0xff] %v5518
      %5906 = vst.msk [vmem:[%s177 + $0x940] sm:$0xff] %vm5611, %v5519
      %5907 = vst [vmem:[%s177 + $0x948] sm:$0xff] %v5520
      %5908 = vst [vmem:[%s177 + $0x950] sm:$0xff] %v5521
      %5909 = vst.msk [vmem:[%s177 + $0x958] sm:$0xff] %vm5611, %v5522
      %5910 = vst [vmem:[%s177 + $0x960] sm:$0xff] %v5523
      %5911 = vst [vmem:[%s177 + $0x968] sm:$0xff] %v5524
      %5912 = vst.msk [vmem:[%s177 + $0x970] sm:$0xff] %vm5611, %v5525
      %5913 = vst [vmem:[%s177 + $0x978] sm:$0xff] %v5526
      %5914 = vst [vmem:[%s177 + $0x980] sm:$0xff] %v5527
      %5915 = vst.msk [vmem:[%s177 + $0x988] sm:$0xff] %vm5611, %v5528
      %5916 = vst [vmem:[%s177 + $0x990] sm:$0xff] %v5529
      %5917 = vst [vmem:[%s177 + $0x998] sm:$0xff] %v5530
      %5918 = vst.msk [vmem:[%s177 + $0x9a0] sm:$0xff] %vm5611, %v5531
      %5919 = vst [vmem:[%s177 + $0x9a8] sm:$0xff] %v5532
      %5920 = vst [vmem:[%s177 + $0x9b0] sm:$0xff] %v5533
      %5921 = vst.msk [vmem:[%s177 + $0x9b8] sm:$0xff] %vm5611, %v5534
      %5922 = vst [vmem:[%s177 + $0x9c0] sm:$0xff] %v5535
      %5923 = vst [vmem:[%s177 + $0x9c8] sm:$0xff] %v5536
      %5924 = vst.msk [vmem:[%s177 + $0x9d0] sm:$0xff] %vm5611, %v5537
      %5925 = vst [vmem:[%s177 + $0x9d8] sm:$0xff] %v5538
      %5926 = vst [vmem:[%s177 + $0x9e0] sm:$0xff] %v5539
      %5927 = vst.msk [vmem:[%s177 + $0x9e8] sm:$0xff] %vm5611, %v5540
      %5928 = vst [vmem:[%s177 + $0x9f0] sm:$0xff] %v5541
      %5929 = vst [vmem:[%s177 + $0x9f8] sm:$0xff] %v5542
      %5930 = vst.msk [vmem:[%s177 + $0xa00] sm:$0xff] %vm5611, %v5543
      %5931 = vst [vmem:[%s177 + $0xa08] sm:$0xff] %v5544
      %5932 = vst [vmem:[%s177 + $0xa10] sm:$0xff] %v5545
      %5933 = vst.msk [vmem:[%s177 + $0xa18] sm:$0xff] %vm5611, %v5546
      %5934 = vst [vmem:[%s177 + $0xa20] sm:$0xff] %v5547
      %5935 = vst [vmem:[%s177 + $0xa28] sm:$0xff] %v5548
      %5936 = vst.msk [vmem:[%s177 + $0xa30] sm:$0xff] %vm5611, %v5549
      %5937 = vst [vmem:[%s177 + $0xa38] sm:$0xff] %v5550
      %5938 = vst [vmem:[%s177 + $0xa40] sm:$0xff] %v5551
      %5939 = vst.msk [vmem:[%s177 + $0xa48] sm:$0xff] %vm5611, %v5552
      %5940 = vst [vmem:[%s177 + $0xa50] sm:$0xff] %v5553
      %5941 = vst [vmem:[%s177 + $0xa58] sm:$0xff] %v5554
      %5942 = vst.msk [vmem:[%s177 + $0xa60] sm:$0xff] %vm5611, %v5555
      %5943 = vst [vmem:[%s177 + $0xa68] sm:$0xff] %v5556
      %5944 = vst [vmem:[%s177 + $0xa70] sm:$0xff] %v5557
      %5945 = vst.msk [vmem:[%s177 + $0xa78] sm:$0xff] %vm5611, %v5558
      %5946 = vst [vmem:[%s177 + $0xa80] sm:$0xff] %v5559
      %5947 = vst [vmem:[%s177 + $0xa88] sm:$0xff] %v5560
      %5948 = vst.msk [vmem:[%s177 + $0xa90] sm:$0xff] %vm5611, %v5561
      %5949 = vst [vmem:[%s177 + $0xa98] sm:$0xff] %v5562
      %5950 = vst [vmem:[%s177 + $0xaa0] sm:$0xff] %v5563
      %5951 = vst.msk [vmem:[%s177 + $0xaa8] sm:$0xff] %vm5611, %v5564
      %5952 = vst [vmem:[%s177 + $0xab0] sm:$0xff] %v5565
      %5953 = vst [vmem:[%s177 + $0xab8] sm:$0xff] %v5566
      %5954 = vst.msk [vmem:[%s177 + $0xac0] sm:$0xff] %vm5611, %v5567
      %5955 = vst [vmem:[%s177 + $0xac8] sm:$0xff] %v5568
      %5956 = vst [vmem:[%s177 + $0xad0] sm:$0xff] %v5569
      %5957 = vst.msk [vmem:[%s177 + $0xad8] sm:$0xff] %vm5611, %v5570
      %5958 = vst [vmem:[%s177 + $0xae0] sm:$0xff] %v5571
      %5959 = vst [vmem:[%s177 + $0xae8] sm:$0xff] %v5572
      %5960 = vst.msk [vmem:[%s177 + $0xaf0] sm:$0xff] %vm5611, %v5573
      %5961 = vst [vmem:[%s177 + $0xaf8] sm:$0xff] %v5574
      %5962 = vst [vmem:[%s177 + $0xb00] sm:$0xff] %v5575
      %5963 = vst.msk [vmem:[%s177 + $0xb08] sm:$0xff] %vm5611, %v5576
      %5964 = vst [vmem:[%s177 + $0xb10] sm:$0xff] %v5577
      %5965 = vst [vmem:[%s177 + $0xb18] sm:$0xff] %v5578
      %5966 = vst.msk [vmem:[%s177 + $0xb20] sm:$0xff] %vm5611, %v5579
      %5967 = vst [vmem:[%s177 + $0xb28] sm:$0xff] %v5580
      %5968 = vst [vmem:[%s177 + $0xb30] sm:$0xff] %v5581
      %5969 = vst.msk [vmem:[%s177 + $0xb38] sm:$0xff] %vm5611, %v5582
      %5970 = vst [vmem:[%s177 + $0xb40] sm:$0xff] %v5583
      %5971 = vst [vmem:[%s177 + $0xb48] sm:$0xff] %v5584
      %5972 = vst.msk [vmem:[%s177 + $0xb50] sm:$0xff] %vm5611, %v5585
      %5973 = vst [vmem:[%s177 + $0xb58] sm:$0xff] %v5586
      %5974 = vst [vmem:[%s177 + $0xb60] sm:$0xff] %v5587
      %5975 = vst.msk [vmem:[%s177 + $0xb68] sm:$0xff] %vm5611, %v5588
      %5976 = vst [vmem:[%s177 + $0xb70] sm:$0xff] %v5589
      %5977 = vst [vmem:[%s177 + $0xb78] sm:$0xff] %v5590
      %5978 = vst.msk [vmem:[%s177 + $0xb80] sm:$0xff] %vm5611, %v5591
      %5979 = vst [vmem:[%s177 + $0xb88] sm:$0xff] %v5592
      %5980 = vst [vmem:[%s177 + $0xb90] sm:$0xff] %v5593
      %5981 = vst.msk [vmem:[%s177 + $0xb98] sm:$0xff] %vm5611, %v5594
      %5982 = vst [vmem:[%s177 + $0xba0] sm:$0xff] %v5595
      %5983 = vst [vmem:[%s177 + $0xba8] sm:$0xff] %v5596
      %5984 = vst.msk [vmem:[%s177 + $0xbb0] sm:$0xff] %vm5611, %v5597
      %5985 = vst [vmem:[%s177 + $0xbb8] sm:$0xff] %v5598
      %5986 = vst [vmem:[%s177 + $0xbc0] sm:$0xff] %v5599
      %5987 = vst.msk [vmem:[%s177 + $0xbc8] sm:$0xff] %vm5611, %v5600
      %5988 = vst [vmem:[%s177 + $0xbd0] sm:$0xff] %v5601
      %5989 = vst [vmem:[%s177 + $0xbd8] sm:$0xff] %v5602
      %5990 = vst.msk [vmem:[%s177 + $0xbe0] sm:$0xff] %vm5611, %v5603
      %5991 = vst [vmem:[%s177 + $0xbe8] sm:$0xff] %v5604
      %5992 = vst [vmem:[%s177 + $0xbf0] sm:$0xff] %v5605
      %5993 = vst.msk [vmem:[%s177 + $0xbf8] sm:$0xff] %vm5611, %v5606
      %s5994 = smul.u32 128, %s14
      %p5995 = scmp.lt.s32.totalorder %s5994, 255
      %s5996 = scalar_select %p5995, %s5994, 255
      %s5997 = smul.addr %s5996, 6
      %s5998 = smul.addr %s5997, 4
      %s5999 = scalar_lea.vmem %s3, %s5998
      // Predicated region
      $region33: #{tpu_custom_call.1} parent=31 // pred_check
        %p6000 = pneg %p100
      $region34: #{tpu_custom_call.1} parent=31 // pred_check_branch
        %6002 = sbr.rel (%p6000) target = $region36
      $region35: #{tpu_custom_call.1} parent=31 // pred_region
        %s6003 = smul.u32 128, %s14
      $region36: #{tpu_custom_call.1} parent=31 // pred_fallthru
        _
    $region32: #{tpu_custom_call.1} parent=5 // pred_fallthru
      _
    %p6004 = scmp.le.s32.totalorder 2, %s9
    // Predicated region
    $region37: #{tpu_custom_call.1} parent=5 // pred_check
      %p6005 = pneg %p6004
    $region38: #{tpu_custom_call.1} parent=5 // pred_check_branch
      %6007 = sbr.rel (%p6005) target = $region40
    $region39: #{tpu_custom_call.1} parent=5 // pred_region
      %s6008 = ssub.s32 %s9, 2
      // Predicated region
      $region41: #{tpu_custom_call.1} parent=39 // pred_check
        %p6009 = pneg %p106
      $region42: #{tpu_custom_call.1} parent=39 // pred_check_branch
        %6011 = sbr.rel (%p6009) target = $region44
      $region43: #{tpu_custom_call.1} parent=39 // pred_region
        %s6012 = smul.u32 128, %s15
        %p6013 = scmp.lt.s32.totalorder %s6012, 255
        %s6014 = scalar_select %p6013, %s6012, 255
        %s6015 = smul.addr %s6014, 6
        %s6016 = smul.addr %s6015, 4
        %s6017 = scalar_lea.vmem %s3, %s6016
      $region44: #{tpu_custom_call.1} parent=39 // pred_fallthru
        _
    $region40: #{tpu_custom_call.1} parent=5 // pred_fallthru
      _
  $region6: #{tpu_custom_call.1} parent=0 // loop_footer
    %s13 = sadd.s32 1, %s9
  $region7: #{tpu_custom_call.1} parent=0 // loop_footer_branch
    %8 = sbr.rel target = $region3
  $region8: #{tpu_custom_call.1} parent=0 // loop_exit
    _

</llo_original>
